<compile_context>
chip_gen: v6e
topology: v6e:2x2x1
jax: 0.10.0
libtpu: 0.0.40
codegen_flags: <defaults>
</compile_context>

<pallas_src>
import functools

import jax
import jax.numpy as jnp
from jax.experimental import pallas as pl
from jax.experimental.pallas import tpu as pltpu

D_IN = 28 * 28       # 784
H1 = 128
H2 = 64
BOTTLENECK = 25
BN_PAD = 128         # bottleneck padded for the *weights only* (MXU-friendly K/N)


# ---------------------------------------------------------------------------
# Kernel: full forward chain for one batch tile (MB rows).
# ---------------------------------------------------------------------------
def autoencoder_kernel(
    x_ref,
    w1_ref, b1_ref,   # Linear(784->128)
    w2_ref, b2_ref,   # Linear(128->64)
    w3_ref, b3_ref,   # Linear(64->25)    (padded to 64 x 128)
    w4_ref, b4_ref,   # Linear(25->64)    (padded to 128 x 64)
    w5_ref, b5_ref,   # Linear(64->128)
    w6_ref, b6_ref,   # Linear(128->784)
    enc_ref, dec_ref,
):
    # x arrives as f32 straight from the user's array; cast in-kernel for the MXU.
    x = x_ref[...].astype(jnp.bfloat16)                                # (MB, 784)

    # ---- encoder ----
    h = jnp.dot(x, w1_ref[...], preferred_element_type=jnp.float32) + b1_ref[...]
    h = jnp.tanh(h).astype(jnp.bfloat16)
    h = jnp.dot(h, w2_ref[...], preferred_element_type=jnp.float32) + b2_ref[...]
    h = jnp.tanh(h).astype(jnp.bfloat16)
    enc = jnp.dot(h, w3_ref[...], preferred_element_type=jnp.float32) + b3_ref[...]
    # store only the logical 25 lanes (masked vst on a single column group: cheap)
    enc_ref[...] = enc[:, :BOTTLENECK].astype(enc_ref.dtype)

    # ---- decoder ----
    # padded enc lanes (25:128) hit zero rows of the padded w4 -> exact result
    h = jnp.dot(enc.astype(jnp.bfloat16), w4_ref[...],
                preferred_element_type=jnp.float32) + b4_ref[...]
    h = jnp.tanh(h).astype(jnp.bfloat16)
    h = jnp.dot(h, w5_ref[...], preferred_element_type=jnp.float32) + b5_ref[...]
    h = jnp.tanh(h).astype(jnp.bfloat16)
    z = jnp.dot(h, w6_ref[...], preferred_element_type=jnp.float32) + b6_ref[...]
    # sigmoid(z) = 1 / (1 + exp(-z)): exp on the EUP, approx reciprocal (free slot)
    dec = pl.reciprocal(1.0 + jnp.exp(-z), approx=True)
    dec_ref[...] = dec.astype(dec_ref.dtype)                           # bf16 store


# ---------------------------------------------------------------------------
# Parameter prep: weights -> bf16, biases -> f32; only bottleneck dims padded.
# ---------------------------------------------------------------------------
def _pad2d(a, rows, cols, dtype):
    out = jnp.zeros((rows, cols), dtype)
    return out.at[: a.shape[0], : a.shape[1]].set(a.astype(dtype))


def _prep_params(params):
    (w1, b1), (w2, b2), (w3, b3), (w4, b4), (w5, b5), (w6, b6) = params
    wdt, bdt = jnp.bfloat16, jnp.float32
    return [
        w1.astype(wdt),                 b1.reshape(1, -1).astype(bdt),
        w2.astype(wdt),                 b2.reshape(1, -1).astype(bdt),
        _pad2d(w3, H2, BN_PAD, wdt),    _pad2d(b3.reshape(1, -1), 1, BN_PAD, bdt),
        _pad2d(w4, BN_PAD, H2, wdt),    b4.reshape(1, -1).astype(bdt),
        w5.astype(wdt),                 b5.reshape(1, -1).astype(bdt),
        w6.astype(wdt),                 b6.reshape(1, -1).astype(bdt),
    ]


def _round_up(n, m):
    return ((n + m - 1) // m) * m


# ---------------------------------------------------------------------------
# Wrapper: batch grid, weights resident, outputs already at logical widths.
# mb default 1024 fits all generations inside a 48 MiB VMEM budget (v7x-safe);
# on v6e/v5e (128 MiB VMEM) mb=2048-4096 with vmem_limit_bytes ~96 MiB is fine.
# ---------------------------------------------------------------------------
@functools.partial(jax.jit, static_argnames=("mb",))
def autoencoder_forward(x, params, mb=1024):
    """x: (B, 784) f32. params: list of 6 (W, b) with W as (in, out).

    Returns (encoded (B, 25) f32, decoded (B, 784) bf16).
    """
    B = x.shape[0]
    # Never over-pad small batches; keep the tile a multiple of 16 (bf16 sublanes).
    mb_eff = max(16, min(mb, _round_up(B, 16)))
    b_pad = _round_up(B, mb_eff)
    if b_pad != B:                      # rare: row-only pad, no lane padding
        x = jnp.pad(x, ((0, b_pad - B), (0, 0)))

    flat = _prep_params(params)

    def batch_spec(feat):
        return pl.BlockSpec((mb_eff, feat), lambda i: (i, 0))

    def resident_spec(a):
        return pl.BlockSpec(a.shape, lambda i: (0, 0))   # same block every step

    in_specs = [batch_spec(D_IN)] + [resident_spec(a) for a in flat]
    out_specs = (batch_spec(BOTTLENECK), batch_spec(D_IN))

    enc_p, dec_p = pl.pallas_call(
        autoencoder_kernel,
        out_shape=(
            jax.ShapeDtypeStruct((b_pad, BOTTLENECK), jnp.float32),
            jax.ShapeDtypeStruct((b_pad, D_IN), jnp.bfloat16),
        ),
        grid=(b_pad // mb_eff,),
        in_specs=in_specs,
        out_specs=out_specs,
        compiler_params=pltpu.CompilerParams(
            dimension_semantics=("parallel",),          # both TCs on v7x; no-op elsewhere
            vmem_limit_bytes=48 * 1024 * 1024,           # safe on v7x (64 MiB/TC)
        ),
    )(x, *flat)

    if b_pad != B:
        enc_p, dec_p = enc_p[:B], dec_p[:B]
    return enc_p, dec_p


# ---------------------------------------------------------------------------
# Deterministic init (PyTorch Linear default: U(-1/sqrt(in), 1/sqrt(in)))
# ---------------------------------------------------------------------------
def init_params(key):
    dims = [(D_IN, H1), (H1, H2), (H2, BOTTLENECK),
            (BOTTLENECK, H2), (H2, H1), (H1, D_IN)]
    params = []
    for fan_in, fan_out in dims:
        key, kw, kb = jax.random.split(key, 3)
        bound = 1.0 / jnp.sqrt(float(fan_in))
        w = jax.random.uniform(kw, (fan_in, fan_out), jnp.float32, -bound, bound)
        b = jax.random.uniform(kb, (1, fan_out), jnp.float32, -bound, bound)
        params.append((w, b))
    return params


# Pure-JAX reference mirroring the kernel's bf16-matmul / f32-accumulate recipe.
def reference_forward(x, params):
    def lin(h, wb):
        w, b = wb
        return jnp.dot(h.astype(jnp.bfloat16), w.astype(jnp.bfloat16),
                       preferred_element_type=jnp.float32) + b
    h = jnp.tanh(lin(x, params[0]))
    h = jnp.tanh(lin(h, params[1]))
    enc = lin(h, params[2])
    h = jnp.tanh(lin(enc, params[3]))
    h = jnp.tanh(lin(h, params[4]))
    dec = jax.nn.sigmoid(lin(h, params[5]))
    return enc, dec


if __name__ == "__main__":
    key = jax.random.PRNGKey(0)
    key, kx = jax.random.split(key)

    B = 256                                   # exercises the batch grid (2 steps of mb=128)
    x = jax.random.uniform(kx, (B, D_IN), jnp.float32)   # MNIST-like pixels in [0, 1)
    params = init_params(key)

    enc, dec = autoencoder_forward(x, params, mb=128)
    enc = jax.block_until_ready(enc)
    dec = jax.block_until_ready(dec)

    assert enc.shape == (B, BOTTLENECK) and dec.shape == (B, D_IN)
    assert dec.dtype == jnp.bfloat16

    enc_ref, dec_ref = reference_forward(x, params)
    assert jnp.allclose(enc, enc_ref, atol=2e-2, rtol=2e-2), \
        float(jnp.max(jnp.abs(enc - enc_ref)))
    dec_f32 = dec.astype(jnp.float32)
    assert jnp.allclose(dec_f32, dec_ref, atol=2e-2, rtol=2e-2), \
        float(jnp.max(jnp.abs(dec_f32 - dec_ref)))

    print("KERNEL_OK")
</pallas_src>

<mosaic_0001>
module attributes {stable_mosaic.version = 11 : i64} {
  func.func @autoencoder_kernel(%arg0: i32, %arg1: memref<128x784xf32, #tpu.memory_space<vmem>>, %arg2: memref<784x128xbf16, #tpu.memory_space<vmem>>, %arg3: memref<1x128xf32, #tpu.memory_space<vmem>>, %arg4: memref<128x64xbf16, #tpu.memory_space<vmem>>, %arg5: memref<1x64xf32, #tpu.memory_space<vmem>>, %arg6: memref<64x128xbf16, #tpu.memory_space<vmem>>, %arg7: memref<1x128xf32, #tpu.memory_space<vmem>>, %arg8: memref<128x64xbf16, #tpu.memory_space<vmem>>, %arg9: memref<1x64xf32, #tpu.memory_space<vmem>>, %arg10: memref<64x128xbf16, #tpu.memory_space<vmem>>, %arg11: memref<1x128xf32, #tpu.memory_space<vmem>>, %arg12: memref<128x784xbf16, #tpu.memory_space<vmem>>, %arg13: memref<1x784xf32, #tpu.memory_space<vmem>>, %arg14: memref<128x25xf32, #tpu.memory_space<vmem>>, %arg15: memref<128x784xbf16, #tpu.memory_space<vmem>>) attributes {dimension_semantics = [#tpu.dimension_semantics<parallel>], iteration_bounds = array<i64: 2>, scalar_prefetch = 0 : i64, scratch_operands = 0 : i64, tpu.core_type = #tpu.core_type<tc>, window_params = [{transform_indices = @transform_0, window_bounds = array<i64: 128, 784>}, {pipeline_mode = #tpu.pipeline_mode<synchronous>, transform_indices = @transform_1, window_bounds = array<i64: 784, 128>}, {pipeline_mode = #tpu.pipeline_mode<synchronous>, transform_indices = @transform_2, window_bounds = array<i64: 1, 128>}, {pipeline_mode = #tpu.pipeline_mode<synchronous>, transform_indices = @transform_3, window_bounds = array<i64: 128, 64>}, {pipeline_mode = #tpu.pipeline_mode<synchronous>, transform_indices = @transform_4, window_bounds = array<i64: 1, 64>}, {pipeline_mode = #tpu.pipeline_mode<synchronous>, transform_indices = @transform_5, window_bounds = array<i64: 64, 128>}, {pipeline_mode = #tpu.pipeline_mode<synchronous>, transform_indices = @transform_6, window_bounds = array<i64: 1, 128>}, {pipeline_mode = #tpu.pipeline_mode<synchronous>, transform_indices = @transform_7, window_bounds = array<i64: 128, 64>}, {pipeline_mode = #tpu.pipeline_mode<synchronous>, transform_indices = @transform_8, window_bounds = array<i64: 1, 64>}, {pipeline_mode = #tpu.pipeline_mode<synchronous>, transform_indices = @transform_9, window_bounds = array<i64: 64, 128>}, {pipeline_mode = #tpu.pipeline_mode<synchronous>, transform_indices = @transform_10, window_bounds = array<i64: 1, 128>}, {pipeline_mode = #tpu.pipeline_mode<synchronous>, transform_indices = @transform_11, window_bounds = array<i64: 128, 784>}, {pipeline_mode = #tpu.pipeline_mode<synchronous>, transform_indices = @transform_12, window_bounds = array<i64: 1, 784>}, {transform_indices = @transform_13, window_bounds = array<i64: 128, 25>}, {transform_indices = @transform_14, window_bounds = array<i64: 128, 784>}]} {
    %c0 = arith.constant 0 : index
    %c0_0 = arith.constant 0 : index
    %0 = vector.load %arg1[%c0, %c0_0] : memref<128x784xf32, #tpu.memory_space<vmem>>, vector<128x784xf32>
    %1 = arith.truncf %0 : vector<128x784xf32> to vector<128x784xbf16>
    %c0_1 = arith.constant 0 : index
    %c0_2 = arith.constant 0 : index
    %2 = vector.load %arg2[%c0_1, %c0_2] : memref<784x128xbf16, #tpu.memory_space<vmem>>, vector<784x128xbf16>
    %cst = arith.constant dense<0.000000e+00> : vector<128x128xf32>
    %3 = tpu.matmul %1, %2, %cst {dimension_numbers = #tpu.dot_dimension_numbers<[1], [0], [0], [1], [0, 0, 1, 1], [], []>} : vector<128x784xbf16>, vector<784x128xbf16>, vector<128x128xf32> -> vector<128x128xf32>
    %c0_3 = arith.constant 0 : index
    %c0_4 = arith.constant 0 : index
    %4 = vector.load %arg3[%c0_3, %c0_4] : memref<1x128xf32, #tpu.memory_space<vmem>>, vector<1x128xf32>
    %5 = vector.broadcast %4 : vector<1x128xf32> to vector<128x128xf32>
    %6 = arith.addf %3, %5 : vector<128x128xf32>
    %7 = math.tanh %6 : vector<128x128xf32>
    %8 = arith.truncf %7 : vector<128x128xf32> to vector<128x128xbf16>
    %c0_5 = arith.constant 0 : index
    %c0_6 = arith.constant 0 : index
    %9 = vector.load %arg4[%c0_5, %c0_6] : memref<128x64xbf16, #tpu.memory_space<vmem>>, vector<128x64xbf16>
    %cst_7 = arith.constant dense<0.000000e+00> : vector<128x64xf32>
    %10 = tpu.matmul %8, %9, %cst_7 {dimension_numbers = #tpu.dot_dimension_numbers<[1], [0], [0], [1], [0, 0, 1, 1], [], []>} : vector<128x128xbf16>, vector<128x64xbf16>, vector<128x64xf32> -> vector<128x64xf32>
    %c0_8 = arith.constant 0 : index
    %c0_9 = arith.constant 0 : index
    %11 = vector.load %arg5[%c0_8, %c0_9] : memref<1x64xf32, #tpu.memory_space<vmem>>, vector<1x64xf32>
    %12 = vector.broadcast %11 : vector<1x64xf32> to vector<128x64xf32>
    %13 = arith.addf %10, %12 : vector<128x64xf32>
    %14 = math.tanh %13 : vector<128x64xf32>
    %15 = arith.truncf %14 : vector<128x64xf32> to vector<128x64xbf16>
    %c0_10 = arith.constant 0 : index
    %c0_11 = arith.constant 0 : index
    %16 = vector.load %arg6[%c0_10, %c0_11] : memref<64x128xbf16, #tpu.memory_space<vmem>>, vector<64x128xbf16>
    %cst_12 = arith.constant dense<0.000000e+00> : vector<128x128xf32>
    %17 = tpu.matmul %15, %16, %cst_12 {dimension_numbers = #tpu.dot_dimension_numbers<[1], [0], [0], [1], [0, 0, 1, 1], [], []>} : vector<128x64xbf16>, vector<64x128xbf16>, vector<128x128xf32> -> vector<128x128xf32>
    %c0_13 = arith.constant 0 : index
    %c0_14 = arith.constant 0 : index
    %18 = vector.load %arg7[%c0_13, %c0_14] : memref<1x128xf32, #tpu.memory_space<vmem>>, vector<1x128xf32>
    %19 = vector.broadcast %18 : vector<1x128xf32> to vector<128x128xf32>
    %20 = arith.addf %17, %19 : vector<128x128xf32>
    %21 = vector.extract_strided_slice %20 {offsets = [0, 0], sizes = [128, 25], strides = [1, 1]} : vector<128x128xf32> to vector<128x25xf32>
    %c0_15 = arith.constant 0 : index
    %c0_16 = arith.constant 0 : index
    %22 = vector.load %arg14[%c0_15, %c0_16] : memref<128x25xf32, #tpu.memory_space<vmem>>, vector<128x25xf32>
    tpu.vector_store %arg14[%c0_15, %c0_16], %21 {strides = array<i32>} : memref<128x25xf32, #tpu.memory_space<vmem>>, vector<128x25xf32>,
    %23 = arith.truncf %20 : vector<128x128xf32> to vector<128x128xbf16>
    %c0_17 = arith.constant 0 : index
    %c0_18 = arith.constant 0 : index
    %24 = vector.load %arg8[%c0_17, %c0_18] : memref<128x64xbf16, #tpu.memory_space<vmem>>, vector<128x64xbf16>
    %cst_19 = arith.constant dense<0.000000e+00> : vector<128x64xf32>
    %25 = tpu.matmul %23, %24, %cst_19 {dimension_numbers = #tpu.dot_dimension_numbers<[1], [0], [0], [1], [0, 0, 1, 1], [], []>} : vector<128x128xbf16>, vector<128x64xbf16>, vector<128x64xf32> -> vector<128x64xf32>
    %c0_20 = arith.constant 0 : index
    %c0_21 = arith.constant 0 : index
    %26 = vector.load %arg9[%c0_20, %c0_21] : memref<1x64xf32, #tpu.memory_space<vmem>>, vector<1x64xf32>
    %27 = vector.broadcast %26 : vector<1x64xf32> to vector<128x64xf32>
    %28 = arith.addf %25, %27 : vector<128x64xf32>
    %29 = math.tanh %28 : vector<128x64xf32>
    %30 = arith.truncf %29 : vector<128x64xf32> to vector<128x64xbf16>
    %c0_22 = arith.constant 0 : index
    %c0_23 = arith.constant 0 : index
    %31 = vector.load %arg10[%c0_22, %c0_23] : memref<64x128xbf16, #tpu.memory_space<vmem>>, vector<64x128xbf16>
    %cst_24 = arith.constant dense<0.000000e+00> : vector<128x128xf32>
    %32 = tpu.matmul %30, %31, %cst_24 {dimension_numbers = #tpu.dot_dimension_numbers<[1], [0], [0], [1], [0, 0, 1, 1], [], []>} : vector<128x64xbf16>, vector<64x128xbf16>, vector<128x128xf32> -> vector<128x128xf32>
    %c0_25 = arith.constant 0 : index
    %c0_26 = arith.constant 0 : index
    %33 = vector.load %arg11[%c0_25, %c0_26] : memref<1x128xf32, #tpu.memory_space<vmem>>, vector<1x128xf32>
    %34 = vector.broadcast %33 : vector<1x128xf32> to vector<128x128xf32>
    %35 = arith.addf %32, %34 : vector<128x128xf32>
    %36 = math.tanh %35 : vector<128x128xf32>
    %37 = arith.truncf %36 : vector<128x128xf32> to vector<128x128xbf16>
    %c0_27 = arith.constant 0 : index
    %c0_28 = arith.constant 0 : index
    %38 = vector.load %arg12[%c0_27, %c0_28] : memref<128x784xbf16, #tpu.memory_space<vmem>>, vector<128x784xbf16>
    %cst_29 = arith.constant dense<0.000000e+00> : vector<128x784xf32>
    %39 = tpu.matmul %37, %38, %cst_29 {dimension_numbers = #tpu.dot_dimension_numbers<[1], [0], [0], [1], [0, 0, 1, 1], [], []>} : vector<128x128xbf16>, vector<128x784xbf16>, vector<128x784xf32> -> vector<128x784xf32>
    %c0_30 = arith.constant 0 : index
    %c0_31 = arith.constant 0 : index
    %40 = vector.load %arg13[%c0_30, %c0_31] : memref<1x784xf32, #tpu.memory_space<vmem>>, vector<1x784xf32>
    %41 = vector.broadcast %40 : vector<1x784xf32> to vector<128x784xf32>
    %42 = arith.addf %39, %41 : vector<128x784xf32>
    %cst_32 = arith.constant 0.000000e+00 : f32
    %43 = vector.broadcast %cst_32 : f32 to vector<128x784xf32>
    %44 = arith.subf %43, %42 : vector<128x784xf32>
    %45 = math.exp %44 : vector<128x784xf32>
    %cst_33 = arith.constant 1.000000e+00 : f32
    %46 = vector.broadcast %cst_33 : f32 to vector<128x784xf32>
    %47 = arith.addf %46, %45 : vector<128x784xf32>
    %48 = tpu.reciprocal %47 {approx = true} : vector<128x784xf32> -> vector<128x784xf32>
    %49 = arith.truncf %48 : vector<128x784xf32> to vector<128x784xbf16>
    %c0_34 = arith.constant 0 : index
    %c0_35 = arith.constant 0 : index
    %50 = vector.load %arg15[%c0_34, %c0_35] : memref<128x784xbf16, #tpu.memory_space<vmem>>, vector<128x784xbf16>
    tpu.vector_store %arg15[%c0_34, %c0_35], %49 {strides = array<i32>} : memref<128x784xbf16, #tpu.memory_space<vmem>>, vector<128x784xbf16>,
    return
  }
  func.func @transform_0(%arg0: i32) -> (i32, i32) {
    %c0_i32 = arith.constant 0 : i32
    %c0_i32_0 = arith.constant 0 : i32
    return %arg0, %c0_i32 : i32, i32
  }
  func.func @transform_1(%arg0: i32) -> (i32, i32) {
    %c0_i32 = arith.constant 0 : i32
    %c0_i32_0 = arith.constant 0 : i32
    %c0_i32_1 = arith.constant 0 : i32
    return %c0_i32, %c0_i32_0 : i32, i32
  }
  func.func @transform_2(%arg0: i32) -> (i32, i32) {
    %c0_i32 = arith.constant 0 : i32
    %c0_i32_0 = arith.constant 0 : i32
    %c0_i32_1 = arith.constant 0 : i32
    return %c0_i32, %c0_i32_0 : i32, i32
  }
  func.func @transform_3(%arg0: i32) -> (i32, i32) {
    %c0_i32 = arith.constant 0 : i32
    %c0_i32_0 = arith.constant 0 : i32
    %c0_i32_1 = arith.constant 0 : i32
    return %c0_i32, %c0_i32_0 : i32, i32
  }
  func.func @transform_4(%arg0: i32) -> (i32, i32) {
    %c0_i32 = arith.constant 0 : i32
    %c0_i32_0 = arith.constant 0 : i32
    %c0_i32_1 = arith.constant 0 : i32
    return %c0_i32, %c0_i32_0 : i32, i32
  }
  func.func @transform_5(%arg0: i32) -> (i32, i32) {
    %c0_i32 = arith.constant 0 : i32
    %c0_i32_0 = arith.constant 0 : i32
    %c0_i32_1 = arith.constant 0 : i32
    return %c0_i32, %c0_i32_0 : i32, i32
  }
  func.func @transform_6(%arg0: i32) -> (i32, i32) {
    %c0_i32 = arith.constant 0 : i32
    %c0_i32_0 = arith.constant 0 : i32
    %c0_i32_1 = arith.constant 0 : i32
    return %c0_i32, %c0_i32_0 : i32, i32
  }
  func.func @transform_7(%arg0: i32) -> (i32, i32) {
    %c0_i32 = arith.constant 0 : i32
    %c0_i32_0 = arith.constant 0 : i32
    %c0_i32_1 = arith.constant 0 : i32
    return %c0_i32, %c0_i32_0 : i32, i32
  }
  func.func @transform_8(%arg0: i32) -> (i32, i32) {
    %c0_i32 = arith.constant 0 : i32
    %c0_i32_0 = arith.constant 0 : i32
    %c0_i32_1 = arith.constant 0 : i32
    return %c0_i32, %c0_i32_0 : i32, i32
  }
  func.func @transform_9(%arg0: i32) -> (i32, i32) {
    %c0_i32 = arith.constant 0 : i32
    %c0_i32_0 = arith.constant 0 : i32
    %c0_i32_1 = arith.constant 0 : i32
    return %c0_i32, %c0_i32_0 : i32, i32
  }
  func.func @transform_10(%arg0: i32) -> (i32, i32) {
    %c0_i32 = arith.constant 0 : i32
    %c0_i32_0 = arith.constant 0 : i32
    %c0_i32_1 = arith.constant 0 : i32
    return %c0_i32, %c0_i32_0 : i32, i32
  }
  func.func @transform_11(%arg0: i32) -> (i32, i32) {
    %c0_i32 = arith.constant 0 : i32
    %c0_i32_0 = arith.constant 0 : i32
    %c0_i32_1 = arith.constant 0 : i32
    return %c0_i32, %c0_i32_0 : i32, i32
  }
  func.func @transform_12(%arg0: i32) -> (i32, i32) {
    %c0_i32 = arith.constant 0 : i32
    %c0_i32_0 = arith.constant 0 : i32
    %c0_i32_1 = arith.constant 0 : i32
    return %c0_i32, %c0_i32_0 : i32, i32
  }
  func.func @transform_13(%arg0: i32) -> (i32, i32) {
    %c0_i32 = arith.constant 0 : i32
    %c0_i32_0 = arith.constant 0 : i32
    return %arg0, %c0_i32 : i32, i32
  }
  func.func @transform_14(%arg0: i32) -> (i32, i32) {
    %c0_i32 = arith.constant 0 : i32
    %c0_i32_0 = arith.constant 0 : i32
    return %arg0, %c0_i32 : i32, i32
  }
}

</mosaic_0001>

<llo_original>
// kernel: autoencoder_forward.1
$region0: #{autoencoder_forward.1}
  #allocation0 [shape = 'u32[]', space=smem, size = 0x4, offset = 0x4, fixed_abs, tag = 'smem constant byte address 0x4 - core index']
  #allocation1 [shape = 'u32[144,128]{1,0:T(1,128)}', space=vmem, size = 0x12000, scoped, tag = 'internal scratch']
  %s0 = inlined_call_operand.vmem [shape: f32[256,784], index: 0, kind: input, shape index: {}]
  %s1 = inlined_call_operand.vmem [shape: bf16[784,128], index: 1, kind: input, shape index: {}]
  %s2 = inlined_call_operand.vmem [shape: f32[1,128], index: 2, kind: input, shape index: {}]
  %s3 = inlined_call_operand.vmem [shape: bf16[128,64], index: 3, kind: input, shape index: {}]
  %s4 = inlined_call_operand.vmem [shape: f32[1,64], index: 4, kind: input, shape index: {}]
  %s5 = inlined_call_operand.vmem [shape: bf16[64,128], index: 5, kind: input, shape index: {}]
  %s6 = inlined_call_operand.vmem [shape: f32[1,128], index: 6, kind: input, shape index: {}]
  %s7 = inlined_call_operand.vmem [shape: bf16[128,64], index: 7, kind: input, shape index: {}]
  %s8 = inlined_call_operand.vmem [shape: f32[1,64], index: 8, kind: input, shape index: {}]
  %s9 = inlined_call_operand.vmem [shape: bf16[64,128], index: 9, kind: input, shape index: {}]
  %s10 = inlined_call_operand.vmem [shape: f32[1,128], index: 10, kind: input, shape index: {}]
  %s11 = inlined_call_operand.vmem [shape: bf16[128,784], index: 11, kind: input, shape index: {}]
  %s12 = inlined_call_operand.vmem [shape: f32[1,784], index: 12, kind: input, shape index: {}]
  %s13 = inlined_call_operand.vmem [shape: f32[256,25], index: 13, kind: output, shape index: {0}]
  %s14 = inlined_call_operand.vmem [shape: bf16[256,784], index: 14, kind: output, shape index: {1}]
  %15 = xla_tuple %s13, %s14
  %s16 = sld [smem:[#allocation0]]
  $region93: #{autoencoder_forward.1} parent=0
    _
  %s18 = ssub.s32 1, %s16
  %s19 = scalar_select 0, %s18, %s16
  loop: start=0, step=1, limit=4
  $region2: #{autoencoder_forward.1} parent=0 // loop_pre_header
    _
  $region3: #{autoencoder_forward.1} parent=0 // loop_header
    %s21 = sphi 0, %s25
    %p22 = scmp.ge.s32.totalorder %s21, 4
    %s31 = sphi 0, %s33
    %s34 = sphi 0, %s31
    %s35 = sphi 0, %s34
    %s51 = sphi 0, %s35
    %s55 = sphi 0, %s55
    %s57 = sphi 0, %s55
    %s58 = sphi 0, %s57
    %s72 = sphi 0, %s58
    %s76 = sphi 0, %s76
    %s78 = sphi 0, %s76
    %s79 = sphi 0, %s78
    %s93 = sphi 0, %s79
    %s97 = sphi 0, %s97
    %s99 = sphi 0, %s97
    %s100 = sphi 0, %s99
    %s114 = sphi 0, %s100
    %s118 = sphi 0, %s118
    %s120 = sphi 0, %s118
    %s121 = sphi 0, %s120
    %s135 = sphi 0, %s121
    %s139 = sphi 0, %s139
    %s141 = sphi 0, %s139
    %s142 = sphi 0, %s141
    %s156 = sphi 0, %s142
    %s160 = sphi 0, %s160
    %s162 = sphi 0, %s160
    %s163 = sphi 0, %s162
    %s177 = sphi 0, %s163
    %s181 = sphi 0, %s181
    %s183 = sphi 0, %s181
    %s184 = sphi 0, %s183
    %s198 = sphi 0, %s184
    %s202 = sphi 0, %s202
    %s204 = sphi 0, %s202
    %s205 = sphi 0, %s204
    %s219 = sphi 0, %s205
    %s223 = sphi 0, %s223
    %s225 = sphi 0, %s223
    %s226 = sphi 0, %s225
    %s240 = sphi 0, %s226
    %s244 = sphi 0, %s244
    %s246 = sphi 0, %s244
    %s247 = sphi 0, %s246
    %s261 = sphi 0, %s247
    %s265 = sphi 0, %s265
    %s267 = sphi 0, %s265
    %s268 = sphi 0, %s267
    %s282 = sphi 0, %s268
    %s286 = sphi 0, %s286
    %s288 = sphi 0, %s286
    %s289 = sphi 0, %s288
    %s303 = sphi 0, %s289
    %s309 = sphi 0, %s311
    %s312 = sphi 0, %s309
    %s313 = sphi 0, %s312
    %s329 = sphi 0, %s313
    %s335 = sphi 0, %s337
    %s338 = sphi 0, %s335
    %s339 = sphi 0, %s338
    %s355 = sphi 0, %s339
  $region4: #{autoencoder_forward.1} parent=0 // loop_header_branch
    %24 = sbr.rel (%p22) target = $region8
  $region5: #{autoencoder_forward.1} parent=0 // loop_body
    %s26 = ssub.s32 %s21, 1
    %s27 = ssub.s32 %s21, 2
    %s28 = sadd.s32 %s21, 1
    %s29 = ssub.s32 %s21, %s28
    %p30 = scmp.eq.s32.totalorder %s29, 0
    %s32 = sadd.s32 %s31, 1
    %s33 = scalar_select %p30, %s31, %s32
    %p36 = pneg %p30
    %p37 = scmp.eq.s32.totalorder %s21, 1
    %p38 = por %p36, %p37
    %p39 = scmp.ne.s32.totalorder %s31, %s34
    %p40 = scmp.eq.s32.totalorder %s21, 0
    %p41 = por %p39, %p40
    %p42 = scmp.ne.s32.totalorder %s31, %s34
    %p43 = scmp.eq.s32.totalorder %s26, 1
    %p44 = por %p42, %p43
    %p45 = scmp.ne.s32.totalorder %s34, %s35
    %p46 = scmp.eq.s32.totalorder %s26, 0
    %p47 = por %p45, %p46
    %p48 = scmp.ne.s32.totalorder %s34, %s35
    %p49 = scmp.eq.s32.totalorder %s27, 1
    %p50 = por %p48, %p49
    %p52 = scmp.ne.s32.totalorder %s35, %s51
    %p53 = scmp.eq.s32.totalorder %s27, 0
    %p54 = por %p52, %p53
    %s56 = sadd.s32 %s55, 1
    %p59 = scmp.eq.s32.totalorder %s21, 1
    %p60 = scmp.ne.s32.totalorder %s55, %s57
    %p61 = scmp.eq.s32.totalorder %s21, 0
    %p62 = por %p60, %p61
    %p63 = scmp.ne.s32.totalorder %s55, %s57
    %p64 = scmp.eq.s32.totalorder %s26, 1
    %p65 = por %p63, %p64
    %p66 = scmp.ne.s32.totalorder %s57, %s58
    %p67 = scmp.eq.s32.totalorder %s26, 0
    %p68 = por %p66, %p67
    %p69 = scmp.ne.s32.totalorder %s57, %s58
    %p70 = scmp.eq.s32.totalorder %s27, 1
    %p71 = por %p69, %p70
    %p73 = scmp.ne.s32.totalorder %s58, %s72
    %p74 = scmp.eq.s32.totalorder %s27, 0
    %p75 = por %p73, %p74
    %s77 = sadd.s32 %s76, 1
    %p80 = scmp.eq.s32.totalorder %s21, 1
    %p81 = scmp.ne.s32.totalorder %s76, %s78
    %p82 = scmp.eq.s32.totalorder %s21, 0
    %p83 = por %p81, %p82
    %p84 = scmp.ne.s32.totalorder %s76, %s78
    %p85 = scmp.eq.s32.totalorder %s26, 1
    %p86 = por %p84, %p85
    %p87 = scmp.ne.s32.totalorder %s78, %s79
    %p88 = scmp.eq.s32.totalorder %s26, 0
    %p89 = por %p87, %p88
    %p90 = scmp.ne.s32.totalorder %s78, %s79
    %p91 = scmp.eq.s32.totalorder %s27, 1
    %p92 = por %p90, %p91
    %p94 = scmp.ne.s32.totalorder %s79, %s93
    %p95 = scmp.eq.s32.totalorder %s27, 0
    %p96 = por %p94, %p95
    %s98 = sadd.s32 %s97, 1
    %p101 = scmp.eq.s32.totalorder %s21, 1
    %p102 = scmp.ne.s32.totalorder %s97, %s99
    %p103 = scmp.eq.s32.totalorder %s21, 0
    %p104 = por %p102, %p103
    %p105 = scmp.ne.s32.totalorder %s97, %s99
    %p106 = scmp.eq.s32.totalorder %s26, 1
    %p107 = por %p105, %p106
    %p108 = scmp.ne.s32.totalorder %s99, %s100
    %p109 = scmp.eq.s32.totalorder %s26, 0
    %p110 = por %p108, %p109
    %p111 = scmp.ne.s32.totalorder %s99, %s100
    %p112 = scmp.eq.s32.totalorder %s27, 1
    %p113 = por %p111, %p112
    %p115 = scmp.ne.s32.totalorder %s100, %s114
    %p116 = scmp.eq.s32.totalorder %s27, 0
    %p117 = por %p115, %p116
    %s119 = sadd.s32 %s118, 1
    %p122 = scmp.eq.s32.totalorder %s21, 1
    %p123 = scmp.ne.s32.totalorder %s118, %s120
    %p124 = scmp.eq.s32.totalorder %s21, 0
    %p125 = por %p123, %p124
    %p126 = scmp.ne.s32.totalorder %s118, %s120
    %p127 = scmp.eq.s32.totalorder %s26, 1
    %p128 = por %p126, %p127
    %p129 = scmp.ne.s32.totalorder %s120, %s121
    %p130 = scmp.eq.s32.totalorder %s26, 0
    %p131 = por %p129, %p130
    %p132 = scmp.ne.s32.totalorder %s120, %s121
    %p133 = scmp.eq.s32.totalorder %s27, 1
    %p134 = por %p132, %p133
    %p136 = scmp.ne.s32.totalorder %s121, %s135
    %p137 = scmp.eq.s32.totalorder %s27, 0
    %p138 = por %p136, %p137
    %s140 = sadd.s32 %s139, 1
    %p143 = scmp.eq.s32.totalorder %s21, 1
    %p144 = scmp.ne.s32.totalorder %s139, %s141
    %p145 = scmp.eq.s32.totalorder %s21, 0
    %p146 = por %p144, %p145
    %p147 = scmp.ne.s32.totalorder %s139, %s141
    %p148 = scmp.eq.s32.totalorder %s26, 1
    %p149 = por %p147, %p148
    %p150 = scmp.ne.s32.totalorder %s141, %s142
    %p151 = scmp.eq.s32.totalorder %s26, 0
    %p152 = por %p150, %p151
    %p153 = scmp.ne.s32.totalorder %s141, %s142
    %p154 = scmp.eq.s32.totalorder %s27, 1
    %p155 = por %p153, %p154
    %p157 = scmp.ne.s32.totalorder %s142, %s156
    %p158 = scmp.eq.s32.totalorder %s27, 0
    %p159 = por %p157, %p158
    %s161 = sadd.s32 %s160, 1
    %p164 = scmp.eq.s32.totalorder %s21, 1
    %p165 = scmp.ne.s32.totalorder %s160, %s162
    %p166 = scmp.eq.s32.totalorder %s21, 0
    %p167 = por %p165, %p166
    %p168 = scmp.ne.s32.totalorder %s160, %s162
    %p169 = scmp.eq.s32.totalorder %s26, 1
    %p170 = por %p168, %p169
    %p171 = scmp.ne.s32.totalorder %s162, %s163
    %p172 = scmp.eq.s32.totalorder %s26, 0
    %p173 = por %p171, %p172
    %p174 = scmp.ne.s32.totalorder %s162, %s163
    %p175 = scmp.eq.s32.totalorder %s27, 1
    %p176 = por %p174, %p175
    %p178 = scmp.ne.s32.totalorder %s163, %s177
    %p179 = scmp.eq.s32.totalorder %s27, 0
    %p180 = por %p178, %p179
    %s182 = sadd.s32 %s181, 1
    %p185 = scmp.eq.s32.totalorder %s21, 1
    %p186 = scmp.ne.s32.totalorder %s181, %s183
    %p187 = scmp.eq.s32.totalorder %s21, 0
    %p188 = por %p186, %p187
    %p189 = scmp.ne.s32.totalorder %s181, %s183
    %p190 = scmp.eq.s32.totalorder %s26, 1
    %p191 = por %p189, %p190
    %p192 = scmp.ne.s32.totalorder %s183, %s184
    %p193 = scmp.eq.s32.totalorder %s26, 0
    %p194 = por %p192, %p193
    %p195 = scmp.ne.s32.totalorder %s183, %s184
    %p196 = scmp.eq.s32.totalorder %s27, 1
    %p197 = por %p195, %p196
    %p199 = scmp.ne.s32.totalorder %s184, %s198
    %p200 = scmp.eq.s32.totalorder %s27, 0
    %p201 = por %p199, %p200
    %s203 = sadd.s32 %s202, 1
    %p206 = scmp.eq.s32.totalorder %s21, 1
    %p207 = scmp.ne.s32.totalorder %s202, %s204
    %p208 = scmp.eq.s32.totalorder %s21, 0
    %p209 = por %p207, %p208
    %p210 = scmp.ne.s32.totalorder %s202, %s204
    %p211 = scmp.eq.s32.totalorder %s26, 1
    %p212 = por %p210, %p211
    %p213 = scmp.ne.s32.totalorder %s204, %s205
    %p214 = scmp.eq.s32.totalorder %s26, 0
    %p215 = por %p213, %p214
    %p216 = scmp.ne.s32.totalorder %s204, %s205
    %p217 = scmp.eq.s32.totalorder %s27, 1
    %p218 = por %p216, %p217
    %p220 = scmp.ne.s32.totalorder %s205, %s219
    %p221 = scmp.eq.s32.totalorder %s27, 0
    %p222 = por %p220, %p221
    %s224 = sadd.s32 %s223, 1
    %p227 = scmp.eq.s32.totalorder %s21, 1
    %p228 = scmp.ne.s32.totalorder %s223, %s225
    %p229 = scmp.eq.s32.totalorder %s21, 0
    %p230 = por %p228, %p229
    %p231 = scmp.ne.s32.totalorder %s223, %s225
    %p232 = scmp.eq.s32.totalorder %s26, 1
    %p233 = por %p231, %p232
    %p234 = scmp.ne.s32.totalorder %s225, %s226
    %p235 = scmp.eq.s32.totalorder %s26, 0
    %p236 = por %p234, %p235
    %p237 = scmp.ne.s32.totalorder %s225, %s226
    %p238 = scmp.eq.s32.totalorder %s27, 1
    %p239 = por %p237, %p238
    %p241 = scmp.ne.s32.totalorder %s226, %s240
    %p242 = scmp.eq.s32.totalorder %s27, 0
    %p243 = por %p241, %p242
    %s245 = sadd.s32 %s244, 1
    %p248 = scmp.eq.s32.totalorder %s21, 1
    %p249 = scmp.ne.s32.totalorder %s244, %s246
    %p250 = scmp.eq.s32.totalorder %s21, 0
    %p251 = por %p249, %p250
    %p252 = scmp.ne.s32.totalorder %s244, %s246
    %p253 = scmp.eq.s32.totalorder %s26, 1
    %p254 = por %p252, %p253
    %p255 = scmp.ne.s32.totalorder %s246, %s247
    %p256 = scmp.eq.s32.totalorder %s26, 0
    %p257 = por %p255, %p256
    %p258 = scmp.ne.s32.totalorder %s246, %s247
    %p259 = scmp.eq.s32.totalorder %s27, 1
    %p260 = por %p258, %p259
    %p262 = scmp.ne.s32.totalorder %s247, %s261
    %p263 = scmp.eq.s32.totalorder %s27, 0
    %p264 = por %p262, %p263
    %s266 = sadd.s32 %s265, 1
    %p269 = scmp.eq.s32.totalorder %s21, 1
    %p270 = scmp.ne.s32.totalorder %s265, %s267
    %p271 = scmp.eq.s32.totalorder %s21, 0
    %p272 = por %p270, %p271
    %p273 = scmp.ne.s32.totalorder %s265, %s267
    %p274 = scmp.eq.s32.totalorder %s26, 1
    %p275 = por %p273, %p274
    %p276 = scmp.ne.s32.totalorder %s267, %s268
    %p277 = scmp.eq.s32.totalorder %s26, 0
    %p278 = por %p276, %p277
    %p279 = scmp.ne.s32.totalorder %s267, %s268
    %p280 = scmp.eq.s32.totalorder %s27, 1
    %p281 = por %p279, %p280
    %p283 = scmp.ne.s32.totalorder %s268, %s282
    %p284 = scmp.eq.s32.totalorder %s27, 0
    %p285 = por %p283, %p284
    %s287 = sadd.s32 %s286, 1
    %p290 = scmp.eq.s32.totalorder %s21, 1
    %p291 = scmp.ne.s32.totalorder %s286, %s288
    %p292 = scmp.eq.s32.totalorder %s21, 0
    %p293 = por %p291, %p292
    %p294 = scmp.ne.s32.totalorder %s286, %s288
    %p295 = scmp.eq.s32.totalorder %s26, 1
    %p296 = por %p294, %p295
    %p297 = scmp.ne.s32.totalorder %s288, %s289
    %p298 = scmp.eq.s32.totalorder %s26, 0
    %p299 = por %p297, %p298
    %p300 = scmp.ne.s32.totalorder %s288, %s289
    %p301 = scmp.eq.s32.totalorder %s27, 1
    %p302 = por %p300, %p301
    %p304 = scmp.ne.s32.totalorder %s289, %s303
    %p305 = scmp.eq.s32.totalorder %s27, 0
    %p306 = por %p304, %p305
    %s307 = ssub.s32 %s21, %s28
    %p308 = scmp.eq.s32.totalorder %s307, 0
    %s310 = sadd.s32 %s309, 1
    %s311 = scalar_select %p308, %s309, %s310
    %p314 = pneg %p308
    %p315 = scmp.eq.s32.totalorder %s21, 1
    %p316 = por %p314, %p315
    %p317 = scmp.ne.s32.totalorder %s309, %s312
    %p318 = scmp.eq.s32.totalorder %s21, 0
    %p319 = por %p317, %p318
    %p320 = scmp.ne.s32.totalorder %s309, %s312
    %p321 = scmp.eq.s32.totalorder %s26, 1
    %p322 = por %p320, %p321
    %p323 = scmp.ne.s32.totalorder %s312, %s313
    %p324 = scmp.eq.s32.totalorder %s26, 0
    %p325 = por %p323, %p324
    %p326 = scmp.ne.s32.totalorder %s312, %s313
    %p327 = scmp.eq.s32.totalorder %s27, 1
    %p328 = por %p326, %p327
    %p330 = scmp.ne.s32.totalorder %s313, %s329
    %p331 = scmp.eq.s32.totalorder %s27, 0
    %p332 = por %p330, %p331
    %s333 = ssub.s32 %s21, %s28
    %p334 = scmp.eq.s32.totalorder %s333, 0
    %s336 = sadd.s32 %s335, 1
    %s337 = scalar_select %p334, %s335, %s336
    %p340 = pneg %p334
    %p341 = scmp.eq.s32.totalorder %s21, 1
    %p342 = por %p340, %p341
    %p343 = scmp.ne.s32.totalorder %s335, %s338
    %p344 = scmp.eq.s32.totalorder %s21, 0
    %p345 = por %p343, %p344
    %p346 = scmp.ne.s32.totalorder %s335, %s338
    %p347 = scmp.eq.s32.totalorder %s26, 1
    %p348 = por %p346, %p347
    %p349 = scmp.ne.s32.totalorder %s338, %s339
    %p350 = scmp.eq.s32.totalorder %s26, 0
    %p351 = por %p349, %p350
    %p352 = scmp.ne.s32.totalorder %s338, %s339
    %p353 = scmp.eq.s32.totalorder %s27, 1
    %p354 = por %p352, %p353
    %p356 = scmp.ne.s32.totalorder %s339, %s355
    %p357 = scmp.eq.s32.totalorder %s27, 0
    %p358 = por %p356, %p357
    %p359 = scmp.le.s32.totalorder 1, %s21
    %p360 = scmp.lt.s32.totalorder %s21, 3
    %p361 = pnand %p359, %p360
    %p362 = pneg %p361
    // Predicated region
    $region9: #{autoencoder_forward.1} parent=5 // pred_check
      _
    $region10: #{autoencoder_forward.1} parent=5 // pred_check_branch
      %364 = sbr.rel (%p361) target = $region12
    $region11: #{autoencoder_forward.1} parent=5 // pred_region
      %s365 = ssub.s32 %s21, 1
      // Predicated region
      $region13: #{autoencoder_forward.1} parent=11 // pred_check
        %p366 = pneg %p68
      $region14: #{autoencoder_forward.1} parent=11 // pred_check_branch
        %368 = sbr.rel (%p366) target = $region16
      $region15: #{autoencoder_forward.1} parent=11 // pred_region
        _
      $region16: #{autoencoder_forward.1} parent=11 // pred_fallthru
        _
      // Predicated region
      $region17: #{autoencoder_forward.1} parent=11 // pred_check
        %p369 = pneg %p89
      $region18: #{autoencoder_forward.1} parent=11 // pred_check_branch
        %371 = sbr.rel (%p369) target = $region20
      $region19: #{autoencoder_forward.1} parent=11 // pred_region
        _
      $region20: #{autoencoder_forward.1} parent=11 // pred_fallthru
        _
      // Predicated region
      $region21: #{autoencoder_forward.1} parent=11 // pred_check
        %p372 = pneg %p110
      $region22: #{autoencoder_forward.1} parent=11 // pred_check_branch
        %374 = sbr.rel (%p372) target = $region24
      $region23: #{autoencoder_forward.1} parent=11 // pred_region
        _
      $region24: #{autoencoder_forward.1} parent=11 // pred_fallthru
        _
      // Predicated region
      $region25: #{autoencoder_forward.1} parent=11 // pred_check
        %p375 = pneg %p131
      $region26: #{autoencoder_forward.1} parent=11 // pred_check_branch
        %377 = sbr.rel (%p375) target = $region28
      $region27: #{autoencoder_forward.1} parent=11 // pred_region
        _
      $region28: #{autoencoder_forward.1} parent=11 // pred_fallthru
        _
      // Predicated region
      $region29: #{autoencoder_forward.1} parent=11 // pred_check
        %p378 = pneg %p152
      $region30: #{autoencoder_forward.1} parent=11 // pred_check_branch
        %380 = sbr.rel (%p378) target = $region32
      $region31: #{autoencoder_forward.1} parent=11 // pred_region
        _
      $region32: #{autoencoder_forward.1} parent=11 // pred_fallthru
        _
      // Predicated region
      $region33: #{autoencoder_forward.1} parent=11 // pred_check
        %p381 = pneg %p173
      $region34: #{autoencoder_forward.1} parent=11 // pred_check_branch
        %383 = sbr.rel (%p381) target = $region36
      $region35: #{autoencoder_forward.1} parent=11 // pred_region
        _
      $region36: #{autoencoder_forward.1} parent=11 // pred_fallthru
        _
      // Predicated region
      $region37: #{autoencoder_forward.1} parent=11 // pred_check
        %p384 = pneg %p194
      $region38: #{autoencoder_forward.1} parent=11 // pred_check_branch
        %386 = sbr.rel (%p384) target = $region40
      $region39: #{autoencoder_forward.1} parent=11 // pred_region
        _
      $region40: #{autoencoder_forward.1} parent=11 // pred_fallthru
        _
      // Predicated region
      $region41: #{autoencoder_forward.1} parent=11 // pred_check
        %p387 = pneg %p215
      $region42: #{autoencoder_forward.1} parent=11 // pred_check_branch
        %389 = sbr.rel (%p387) target = $region44
      $region43: #{autoencoder_forward.1} parent=11 // pred_region
        _
      $region44: #{autoencoder_forward.1} parent=11 // pred_fallthru
        _
      // Predicated region
      $region45: #{autoencoder_forward.1} parent=11 // pred_check
        %p390 = pneg %p236
      $region46: #{autoencoder_forward.1} parent=11 // pred_check_branch
        %392 = sbr.rel (%p390) target = $region48
      $region47: #{autoencoder_forward.1} parent=11 // pred_region
        _
      $region48: #{autoencoder_forward.1} parent=11 // pred_fallthru
        _
      // Predicated region
      $region49: #{autoencoder_forward.1} parent=11 // pred_check
        %p393 = pneg %p257
      $region50: #{autoencoder_forward.1} parent=11 // pred_check_branch
        %395 = sbr.rel (%p393) target = $region52
      $region51: #{autoencoder_forward.1} parent=11 // pred_region
        _
      $region52: #{autoencoder_forward.1} parent=11 // pred_fallthru
        _
      // Predicated region
      $region53: #{autoencoder_forward.1} parent=11 // pred_check
        %p396 = pneg %p278
      $region54: #{autoencoder_forward.1} parent=11 // pred_check_branch
        %398 = sbr.rel (%p396) target = $region56
      $region55: #{autoencoder_forward.1} parent=11 // pred_region
        _
      $region56: #{autoencoder_forward.1} parent=11 // pred_fallthru
        _
      // Predicated region
      $region57: #{autoencoder_forward.1} parent=11 // pred_check
        %p399 = pneg %p299
      $region58: #{autoencoder_forward.1} parent=11 // pred_check_branch
        %401 = sbr.rel (%p399) target = $region60
      $region59: #{autoencoder_forward.1} parent=11 // pred_region
        _
      $region60: #{autoencoder_forward.1} parent=11 // pred_fallthru
        _
    $region12: #{autoencoder_forward.1} parent=5 // pred_fallthru
      _
    %p402 = scmp.lt.s32.totalorder %s21, 2
    // Predicated region
    $region61: #{autoencoder_forward.1} parent=5 // pred_check
      %p403 = pneg %p402
    $region62: #{autoencoder_forward.1} parent=5 // pred_check_branch
      %405 = sbr.rel (%p403) target = $region64
    $region63: #{autoencoder_forward.1} parent=5 // pred_region
      // Predicated region
      $region65: #{autoencoder_forward.1} parent=63 // pred_check
        %p406 = pneg %p41
      $region66: #{autoencoder_forward.1} parent=63 // pred_check_branch
        %408 = sbr.rel (%p406) target = $region68
      $region67: #{autoencoder_forward.1} parent=63 // pred_region
        %s409 = smul.u32 16, %s21
        %p410 = scmp.lt.s32.totalorder %s409, 31
        %s411 = scalar_select %p410, %s409, 31
        %s412 = smul.addr %s411, 7
        %s413 = smul.addr %s412, 8
        %s414 = scalar_lea.vmem %s0, %s413
        %s415 = smul.u32 16, %s21
      $region68: #{autoencoder_forward.1} parent=63 // pred_fallthru
        _
    $region64: #{autoencoder_forward.1} parent=5 // pred_fallthru
      _
    %p416 = scmp.le.s32.totalorder 1, %s21
    %p417 = scmp.lt.s32.totalorder %s21, 3
    %p418 = pnand %p416, %p417
    %p419 = pneg %p418
    // Predicated region
    $region69: #{autoencoder_forward.1} parent=5 // pred_check
      _
    $region70: #{autoencoder_forward.1} parent=5 // pred_check_branch
      %421 = sbr.rel (%p418) target = $region72
    $region71: #{autoencoder_forward.1} parent=5 // pred_region
      %s422 = ssub.s32 %s21, 1
      %s423 = smul.u32 16, %s26
      %p424 = scmp.lt.s32.totalorder %s423, 31
      %s425 = scalar_select %p424, %s423, 31
      %s426 = smul.addr %s425, 7
      %s427 = smul.addr %s426, 8
      %s428 = scalar_lea.vmem %s0, %s427
      %p429 = pneg %p47
      %p430 = pneg %p44
      %p431 = pneg %p68
      %p432 = pneg %p65
      %p433 = pneg %p89
      %p434 = pneg %p86
      %p435 = pneg %p110
      %p436 = pneg %p107
      %p437 = pneg %p131
      %p438 = pneg %p128
      %p439 = pneg %p152
      %p440 = pneg %p149
      %p441 = pneg %p173
      %p442 = pneg %p170
      %p443 = pneg %p194
      %p444 = pneg %p191
      %p445 = pneg %p215
      %p446 = pneg %p212
      %p447 = pneg %p236
      %p448 = pneg %p233
      %p449 = pneg %p257
      %p450 = pneg %p254
      %p451 = pneg %p278
      %p452 = pneg %p275
      %p453 = pneg %p299
      %p454 = pneg %p296
      %p455 = pneg %p325
      %p456 = pneg %p322
      %s457 = smul.u32 16, %s26
      %p458 = scmp.lt.s32.totalorder %s457, 31
      %s459 = scalar_select %p458, %s457, 31
      %s460 = smul.addr %s459, 8
      %s461 = scalar_lea.vmem %s13, %s460
      %p462 = pneg %p351
      %p463 = pneg %p348
      %s464 = smul.u32 16, %s26
      %p465 = scmp.lt.s32.totalorder %s464, 31
      %s466 = scalar_select %p465, %s464, 31
      %s467 = smul.addr %s466, 7
      %s468 = smul.addr %s467, 4
      %s469 = scalar_lea.vmem %s14, %s468
      %s470 = smul.u32 16, %s26
      %p471 = scmp.lt.s32.totalorder %s470, 31
      %s472 = scalar_select %p471, %s470, 31
      %s473 = smul.addr %s472, 7
      %s474 = smul.addr %s473, 8
      %s475 = scalar_lea.vmem %s0, %s474
      %s476 = smul.u32 16, %s26
      %s477 = smul.u32 16, %s26
      %p478 = scmp.lt.s32.totalorder %s477, 31
      %s479 = scalar_select %p478, %s477, 31
      %s480 = smul.addr %s479, 8
      %s481 = scalar_lea.vmem %s13, %s480
      %s482 = smul.u32 16, %s26
      %s483 = smul.u32 16, %s26
      %p484 = scmp.lt.s32.totalorder %s483, 31
      %s485 = scalar_select %p484, %s483, 31
      %s486 = smul.addr %s485, 7
      %s487 = smul.addr %s486, 4
      %s488 = scalar_lea.vmem %s14, %s487
      %s489 = smul.u32 16, %s26
      %v491 = vld [vmem:[%s475] sm:$0xff]
      %v492 = vld [vmem:[%s475 + $0x8] sm:$0xff]
      %v493 = vld [vmem:[%s475 + $0x10] sm:$0xff]
      %v494 = vld [vmem:[%s475 + $0x18] sm:$0xff]
      %v495 = vld [vmem:[%s475 + $0x20] sm:$0xff]
      %v496 = vld [vmem:[%s475 + $0x28] sm:$0xff]
      %v497 = vld [vmem:[%s475 + $0x30] sm:$0xff]
      %v498 = vld [vmem:[%s475 + $0x38] sm:$0xff]
      %v499 = vld [vmem:[%s475 + $0x40] sm:$0xff]
      %v500 = vld [vmem:[%s475 + $0x48] sm:$0xff]
      %v501 = vld [vmem:[%s475 + $0x50] sm:$0xff]
      %v502 = vld [vmem:[%s475 + $0x58] sm:$0xff]
      %v503 = vld [vmem:[%s475 + $0x60] sm:$0xff]
      %v504 = vld [vmem:[%s475 + $0x68] sm:$0xff]
      %v505 = vld [vmem:[%s475 + $0x70] sm:$0xff]
      %v506 = vld [vmem:[%s475 + $0x78] sm:$0xff]
      %v507 = vld [vmem:[%s475 + $0x80] sm:$0xff]
      %v508 = vld [vmem:[%s475 + $0x88] sm:$0xff]
      %v509 = vld [vmem:[%s475 + $0x90] sm:$0xff]
      %v510 = vld [vmem:[%s475 + $0x98] sm:$0xff]
      %v511 = vld [vmem:[%s475 + $0xa0] sm:$0xff]
      %v512 = vld [vmem:[%s475 + $0xa8] sm:$0xff]
      %v513 = vld [vmem:[%s475 + $0xb0] sm:$0xff]
      %v514 = vld [vmem:[%s475 + $0xb8] sm:$0xff]
      %v515 = vld [vmem:[%s475 + $0xc0] sm:$0xff]
      %v516 = vld [vmem:[%s475 + $0xc8] sm:$0xff]
      %v517 = vld [vmem:[%s475 + $0xd0] sm:$0xff]
      %v518 = vld [vmem:[%s475 + $0xd8] sm:$0xff]
      %v519 = vld [vmem:[%s475 + $0xe0] sm:$0xff]
      %v520 = vld [vmem:[%s475 + $0xe8] sm:$0xff]
      %v521 = vld [vmem:[%s475 + $0xf0] sm:$0xff]
      %v522 = vld [vmem:[%s475 + $0xf8] sm:$0xff]
      %v523 = vld [vmem:[%s475 + $0x100] sm:$0xff]
      %v524 = vld [vmem:[%s475 + $0x108] sm:$0xff]
      %v525 = vld [vmem:[%s475 + $0x110] sm:$0xff]
      %v526 = vld [vmem:[%s475 + $0x118] sm:$0xff]
      %v527 = vld [vmem:[%s475 + $0x120] sm:$0xff]
      %v528 = vld [vmem:[%s475 + $0x128] sm:$0xff]
      %v529 = vld [vmem:[%s475 + $0x130] sm:$0xff]
      %v530 = vld [vmem:[%s475 + $0x138] sm:$0xff]
      %v531 = vld [vmem:[%s475 + $0x140] sm:$0xff]
      %v532 = vld [vmem:[%s475 + $0x148] sm:$0xff]
      %v533 = vld [vmem:[%s475 + $0x150] sm:$0xff]
      %v534 = vld [vmem:[%s475 + $0x158] sm:$0xff]
      %v535 = vld [vmem:[%s475 + $0x160] sm:$0xff]
      %v536 = vld [vmem:[%s475 + $0x168] sm:$0xff]
      %v537 = vld [vmem:[%s475 + $0x170] sm:$0xff]
      %v538 = vld [vmem:[%s475 + $0x178] sm:$0xff]
      %v539 = vld [vmem:[%s475 + $0x180] sm:$0xff]
      %v540 = vld [vmem:[%s475 + $0x188] sm:$0xff]
      %v541 = vld [vmem:[%s475 + $0x190] sm:$0xff]
      %v542 = vld [vmem:[%s475 + $0x198] sm:$0xff]
      %v543 = vld [vmem:[%s475 + $0x1a0] sm:$0xff]
      %v544 = vld [vmem:[%s475 + $0x1a8] sm:$0xff]
      %v545 = vld [vmem:[%s475 + $0x1b0] sm:$0xff]
      %v546 = vld [vmem:[%s475 + $0x1b8] sm:$0xff]
      %v547 = vld [vmem:[%s475 + $0x1c0] sm:$0xff]
      %v548 = vld [vmem:[%s475 + $0x1c8] sm:$0xff]
      %v549 = vld [vmem:[%s475 + $0x1d0] sm:$0xff]
      %v550 = vld [vmem:[%s475 + $0x1d8] sm:$0xff]
      %v551 = vld [vmem:[%s475 + $0x1e0] sm:$0xff]
      %v552 = vld [vmem:[%s475 + $0x1e8] sm:$0xff]
      %v553 = vld [vmem:[%s475 + $0x1f0] sm:$0xff]
      %v554 = vld [vmem:[%s475 + $0x1f8] sm:$0xff]
      %v555 = vld [vmem:[%s475 + $0x200] sm:$0xff]
      %v556 = vld [vmem:[%s475 + $0x208] sm:$0xff]
      %v557 = vld [vmem:[%s475 + $0x210] sm:$0xff]
      %v558 = vld [vmem:[%s475 + $0x218] sm:$0xff]
      %v559 = vld [vmem:[%s475 + $0x220] sm:$0xff]
      %v560 = vld [vmem:[%s475 + $0x228] sm:$0xff]
      %v561 = vld [vmem:[%s475 + $0x230] sm:$0xff]
      %v562 = vld [vmem:[%s475 + $0x238] sm:$0xff]
      %v563 = vld [vmem:[%s475 + $0x240] sm:$0xff]
      %v564 = vld [vmem:[%s475 + $0x248] sm:$0xff]
      %v565 = vld [vmem:[%s475 + $0x250] sm:$0xff]
      %v566 = vld [vmem:[%s475 + $0x258] sm:$0xff]
      %v567 = vld [vmem:[%s475 + $0x260] sm:$0xff]
      %v568 = vld [vmem:[%s475 + $0x268] sm:$0xff]
      %v569 = vld [vmem:[%s475 + $0x270] sm:$0xff]
      %v570 = vld [vmem:[%s475 + $0x278] sm:$0xff]
      %v571 = vld [vmem:[%s475 + $0x280] sm:$0xff]
      %v572 = vld [vmem:[%s475 + $0x288] sm:$0xff]
      %v573 = vld [vmem:[%s475 + $0x290] sm:$0xff]
      %v574 = vld [vmem:[%s475 + $0x298] sm:$0xff]
      %v575 = vld [vmem:[%s475 + $0x2a0] sm:$0xff]
      %v576 = vld [vmem:[%s475 + $0x2a8] sm:$0xff]
      %v577 = vld [vmem:[%s475 + $0x2b0] sm:$0xff]
      %v578 = vld [vmem:[%s475 + $0x2b8] sm:$0xff]
      %v579 = vld [vmem:[%s475 + $0x2c0] sm:$0xff]
      %v580 = vld [vmem:[%s475 + $0x2c8] sm:$0xff]
      %v581 = vld [vmem:[%s475 + $0x2d0] sm:$0xff]
      %v582 = vld [vmem:[%s475 + $0x2d8] sm:$0xff]
      %v583 = vld [vmem:[%s475 + $0x2e0] sm:$0xff]
      %v584 = vld [vmem:[%s475 + $0x2e8] sm:$0xff]
      %v585 = vld [vmem:[%s475 + $0x2f0] sm:$0xff]
      %v586 = vld [vmem:[%s475 + $0x2f8] sm:$0xff]
      %v587 = vld [vmem:[%s475 + $0x300] sm:$0xff]
      %v588 = vld [vmem:[%s475 + $0x308] sm:$0xff]
      %v589 = vld [vmem:[%s475 + $0x310] sm:$0xff]
      %v590 = vld [vmem:[%s475 + $0x318] sm:$0xff]
      %v591 = vld [vmem:[%s475 + $0x320] sm:$0xff]
      %v592 = vld [vmem:[%s475 + $0x328] sm:$0xff]
      %v593 = vld [vmem:[%s475 + $0x330] sm:$0xff]
      %v594 = vld [vmem:[%s475 + $0x338] sm:$0xff]
      %v595 = vld [vmem:[%s475 + $0x340] sm:$0xff]
      %v596 = vld [vmem:[%s475 + $0x348] sm:$0xff]
      %v597 = vld [vmem:[%s475 + $0x350] sm:$0xff]
      %v598 = vld [vmem:[%s475 + $0x358] sm:$0xff]
      %v599 = vld [vmem:[%s475 + $0x360] sm:$0xff]
      %v600 = vld [vmem:[%s475 + $0x368] sm:$0xff]
      %v601 = vld [vmem:[%s475 + $0x370] sm:$0xff]
      %v602 = vld [vmem:[%s475 + $0x378] sm:$0xff]
      %v603 = vpack.c.bf16 %v498, %v491
      %v604 = vpack.c.bf16 %v499, %v492
      %v605 = vpack.c.bf16 %v500, %v493
      %v606 = vpack.c.bf16 %v501, %v494
      %v607 = vpack.c.bf16 %v502, %v495
      %v608 = vpack.c.bf16 %v503, %v496
      %v609 = vpack.c.bf16 %v504, %v497
      %v610 = vpack.c.bf16 %v512, %v505
      %v611 = vpack.c.bf16 %v513, %v506
      %v612 = vpack.c.bf16 %v514, %v507
      %v613 = vpack.c.bf16 %v515, %v508
      %v614 = vpack.c.bf16 %v516, %v509
      %v615 = vpack.c.bf16 %v517, %v510
      %v616 = vpack.c.bf16 %v518, %v511
      %v617 = vpack.c.bf16 %v526, %v519
      %v618 = vpack.c.bf16 %v527, %v520
      %v619 = vpack.c.bf16 %v528, %v521
      %v620 = vpack.c.bf16 %v529, %v522
      %v621 = vpack.c.bf16 %v530, %v523
      %v622 = vpack.c.bf16 %v531, %v524
      %v623 = vpack.c.bf16 %v532, %v525
      %v624 = vpack.c.bf16 %v540, %v533
      %v625 = vpack.c.bf16 %v541, %v534
      %v626 = vpack.c.bf16 %v542, %v535
      %v627 = vpack.c.bf16 %v543, %v536
      %v628 = vpack.c.bf16 %v544, %v537
      %v629 = vpack.c.bf16 %v545, %v538
      %v630 = vpack.c.bf16 %v546, %v539
      %v631 = vpack.c.bf16 %v554, %v547
      %v632 = vpack.c.bf16 %v555, %v548
      %v633 = vpack.c.bf16 %v556, %v549
      %v634 = vpack.c.bf16 %v557, %v550
      %v635 = vpack.c.bf16 %v558, %v551
      %v636 = vpack.c.bf16 %v559, %v552
      %v637 = vpack.c.bf16 %v560, %v553
      %v638 = vpack.c.bf16 %v568, %v561
      %v639 = vpack.c.bf16 %v569, %v562
      %v640 = vpack.c.bf16 %v570, %v563
      %v641 = vpack.c.bf16 %v571, %v564
      %v642 = vpack.c.bf16 %v572, %v565
      %v643 = vpack.c.bf16 %v573, %v566
      %v644 = vpack.c.bf16 %v574, %v567
      %v645 = vpack.c.bf16 %v582, %v575
      %v646 = vpack.c.bf16 %v583, %v576
      %v647 = vpack.c.bf16 %v584, %v577
      %v648 = vpack.c.bf16 %v585, %v578
      %v649 = vpack.c.bf16 %v586, %v579
      %v650 = vpack.c.bf16 %v587, %v580
      %v651 = vpack.c.bf16 %v588, %v581
      %v652 = vpack.c.bf16 %v596, %v589
      %v653 = vpack.c.bf16 %v597, %v590
      %v654 = vpack.c.bf16 %v598, %v591
      %v655 = vpack.c.bf16 %v599, %v592
      %v656 = vpack.c.bf16 %v600, %v593
      %v657 = vpack.c.bf16 %v601, %v594
      %v658 = vpack.c.bf16 %v602, %v595
      %v659 = vld [vmem:[%s1] sm:$0xf]
      %v660 = vld [vmem:[%s1 + $0x4] sm:$0xf]
      %v661 = vld [vmem:[%s1 + $0x8] sm:$0xf]
      %v662 = vld [vmem:[%s1 + $0xc] sm:$0xf]
      %v663 = vld [vmem:[%s1 + $0x10] sm:$0xf]
      %v664 = vld [vmem:[%s1 + $0x14] sm:$0xf]
      %v665 = vld [vmem:[%s1 + $0x18] sm:$0xf]
      %v666 = vld [vmem:[%s1 + $0x1c] sm:$0xf]
      %v667 = vld [vmem:[%s1 + $0x20] sm:$0xf]
      %v668 = vld [vmem:[%s1 + $0x24] sm:$0xf]
      %v669 = vld [vmem:[%s1 + $0x28] sm:$0xf]
      %v670 = vld [vmem:[%s1 + $0x2c] sm:$0xf]
      %v671 = vld [vmem:[%s1 + $0x30] sm:$0xf]
      %v672 = vld [vmem:[%s1 + $0x34] sm:$0xf]
      %v673 = vld [vmem:[%s1 + $0x38] sm:$0xf]
      %v674 = vld [vmem:[%s1 + $0x3c] sm:$0xf]
      %v675 = vld [vmem:[%s1 + $0x40] sm:$0xf]
      %v676 = vld [vmem:[%s1 + $0x44] sm:$0xf]
      %v677 = vld [vmem:[%s1 + $0x48] sm:$0xf]
      %v678 = vld [vmem:[%s1 + $0x4c] sm:$0xf]
      %v679 = vld [vmem:[%s1 + $0x50] sm:$0xf]
      %v680 = vld [vmem:[%s1 + $0x54] sm:$0xf]
      %v681 = vld [vmem:[%s1 + $0x58] sm:$0xf]
      %v682 = vld [vmem:[%s1 + $0x5c] sm:$0xf]
      %v683 = vld [vmem:[%s1 + $0x60] sm:$0xf]
      %v684 = vld [vmem:[%s1 + $0x64] sm:$0xf]
      %v685 = vld [vmem:[%s1 + $0x68] sm:$0xf]
      %v686 = vld [vmem:[%s1 + $0x6c] sm:$0xf]
      %v687 = vld [vmem:[%s1 + $0x70] sm:$0xf]
      %v688 = vld [vmem:[%s1 + $0x74] sm:$0xf]
      %v689 = vld [vmem:[%s1 + $0x78] sm:$0xf]
      %v690 = vld [vmem:[%s1 + $0x7c] sm:$0xf]
      %v691 = vld [vmem:[%s1 + $0x80] sm:$0xf]
      %v692 = vld [vmem:[%s1 + $0x84] sm:$0xf]
      %v693 = vld [vmem:[%s1 + $0x88] sm:$0xf]
      %v694 = vld [vmem:[%s1 + $0x8c] sm:$0xf]
      %v695 = vld [vmem:[%s1 + $0x90] sm:$0xf]
      %v696 = vld [vmem:[%s1 + $0x94] sm:$0xf]
      %v697 = vld [vmem:[%s1 + $0x98] sm:$0xf]
      %v698 = vld [vmem:[%s1 + $0x9c] sm:$0xf]
      %v699 = vld [vmem:[%s1 + $0xa0] sm:$0xf]
      %v700 = vld [vmem:[%s1 + $0xa4] sm:$0xf]
      %v701 = vld [vmem:[%s1 + $0xa8] sm:$0xf]
      %v702 = vld [vmem:[%s1 + $0xac] sm:$0xf]
      %v703 = vld [vmem:[%s1 + $0xb0] sm:$0xf]
      %v704 = vld [vmem:[%s1 + $0xb4] sm:$0xf]
      %v705 = vld [vmem:[%s1 + $0xb8] sm:$0xf]
      %v706 = vld [vmem:[%s1 + $0xbc] sm:$0xf]
      %v707 = vld [vmem:[%s1 + $0xc0] sm:$0xf]
      %v708 = vld [vmem:[%s1 + $0xc4] sm:$0xf]
      %v709 = vld [vmem:[%s1 + $0xc8] sm:$0xf]
      %v710 = vld [vmem:[%s1 + $0xcc] sm:$0xf]
      %v711 = vld [vmem:[%s1 + $0xd0] sm:$0xf]
      %v712 = vld [vmem:[%s1 + $0xd4] sm:$0xf]
      %v713 = vld [vmem:[%s1 + $0xd8] sm:$0xf]
      %v714 = vld [vmem:[%s1 + $0xdc] sm:$0xf]
      %v715 = vld [vmem:[%s1 + $0xe0] sm:$0xf]
      %v716 = vld [vmem:[%s1 + $0xe4] sm:$0xf]
      %v717 = vld [vmem:[%s1 + $0xe8] sm:$0xf]
      %v718 = vld [vmem:[%s1 + $0xec] sm:$0xf]
      %v719 = vld [vmem:[%s1 + $0xf0] sm:$0xf]
      %v720 = vld [vmem:[%s1 + $0xf4] sm:$0xf]
      %v721 = vld [vmem:[%s1 + $0xf8] sm:$0xf]
      %v722 = vld [vmem:[%s1 + $0xfc] sm:$0xf]
      %v723 = vld [vmem:[%s1 + $0x100] sm:$0xf]
      %v724 = vld [vmem:[%s1 + $0x104] sm:$0xf]
      %v725 = vld [vmem:[%s1 + $0x108] sm:$0xf]
      %v726 = vld [vmem:[%s1 + $0x10c] sm:$0xf]
      %v727 = vld [vmem:[%s1 + $0x110] sm:$0xf]
      %v728 = vld [vmem:[%s1 + $0x114] sm:$0xf]
      %v729 = vld [vmem:[%s1 + $0x118] sm:$0xf]
      %v730 = vld [vmem:[%s1 + $0x11c] sm:$0xf]
      %v731 = vld [vmem:[%s1 + $0x120] sm:$0xf]
      %v732 = vld [vmem:[%s1 + $0x124] sm:$0xf]
      %v733 = vld [vmem:[%s1 + $0x128] sm:$0xf]
      %v734 = vld [vmem:[%s1 + $0x12c] sm:$0xf]
      %v735 = vld [vmem:[%s1 + $0x130] sm:$0xf]
      %v736 = vld [vmem:[%s1 + $0x134] sm:$0xf]
      %v737 = vld [vmem:[%s1 + $0x138] sm:$0xf]
      %v738 = vld [vmem:[%s1 + $0x13c] sm:$0xf]
      %v739 = vld [vmem:[%s1 + $0x140] sm:$0xf]
      %v740 = vld [vmem:[%s1 + $0x144] sm:$0xf]
      %v741 = vld [vmem:[%s1 + $0x148] sm:$0xf]
      %v742 = vld [vmem:[%s1 + $0x14c] sm:$0xf]
      %v743 = vld [vmem:[%s1 + $0x150] sm:$0xf]
      %v744 = vld [vmem:[%s1 + $0x154] sm:$0xf]
      %v745 = vld [vmem:[%s1 + $0x158] sm:$0xf]
      %v746 = vld [vmem:[%s1 + $0x15c] sm:$0xf]
      %v747 = vld [vmem:[%s1 + $0x160] sm:$0xf]
      %v748 = vld [vmem:[%s1 + $0x164] sm:$0xf]
      %v749 = vld [vmem:[%s1 + $0x168] sm:$0xf]
      %v750 = vld [vmem:[%s1 + $0x16c] sm:$0xf]
      %v751 = vld [vmem:[%s1 + $0x170] sm:$0xf]
      %v752 = vld [vmem:[%s1 + $0x174] sm:$0xf]
      %v753 = vld [vmem:[%s1 + $0x178] sm:$0xf]
      %v754 = vld [vmem:[%s1 + $0x17c] sm:$0xf]
      %v755 = vld [vmem:[%s1 + $0x180] sm:$0xf]
      %v756 = vld [vmem:[%s1 + $0x184] sm:$0xf]
      %v757 = vld [vmem:[%s2] sm:$0x1]
      %v759 = vlaneseq
      %v760 = vshrl.u32 %v759, 7
      %v761 = vsub.s32 0, %v760
      %v762 = vrot.slane %v757, %v761
      %v862 = vunpack.c.l.b16 %v659
      %v863 = vunpack.c.l.b16 %v660
      %v864 = vunpack.c.l.b16 %v661
      %v865 = vunpack.c.l.b16 %v662
      %v866 = vunpack.c.l.b16 %v663
      %v867 = vunpack.c.l.b16 %v664
      %v868 = vunpack.c.l.b16 %v665
      %v869 = vunpack.c.l.b16 %v666
      %v870 = vunpack.c.l.b16 %v667
      %v871 = vunpack.c.l.b16 %v668
      %v872 = vunpack.c.l.b16 %v669
      %v873 = vunpack.c.l.b16 %v670
      %v874 = vunpack.c.l.b16 %v671
      %v875 = vunpack.c.l.b16 %v672
      %v876 = vunpack.c.l.b16 %v673
      %v877 = vunpack.c.l.b16 %v674
      %v878 = vunpack.c.l.b16 %v675
      %v879 = vunpack.c.l.b16 %v676
      %v880 = vunpack.c.l.b16 %v677
      %v881 = vunpack.c.l.b16 %v678
      %v882 = vunpack.c.l.b16 %v679
      %v883 = vunpack.c.l.b16 %v680
      %v884 = vunpack.c.l.b16 %v681
      %v885 = vunpack.c.l.b16 %v682
      %v886 = vunpack.c.l.b16 %v683
      %v887 = vunpack.c.l.b16 %v684
      %v888 = vunpack.c.l.b16 %v685
      %v889 = vunpack.c.l.b16 %v686
      %v890 = vunpack.c.l.b16 %v687
      %v891 = vunpack.c.l.b16 %v688
      %v892 = vunpack.c.l.b16 %v689
      %v893 = vunpack.c.l.b16 %v690
      %v894 = vunpack.c.l.b16 %v691
      %v895 = vunpack.c.l.b16 %v692
      %v896 = vunpack.c.l.b16 %v693
      %v897 = vunpack.c.l.b16 %v694
      %v898 = vunpack.c.l.b16 %v695
      %v899 = vunpack.c.l.b16 %v696
      %v900 = vunpack.c.l.b16 %v697
      %v901 = vunpack.c.l.b16 %v698
      %v902 = vunpack.c.l.b16 %v699
      %v903 = vunpack.c.l.b16 %v700
      %v904 = vunpack.c.l.b16 %v701
      %v905 = vunpack.c.l.b16 %v702
      %v906 = vunpack.c.l.b16 %v703
      %v907 = vunpack.c.l.b16 %v704
      %v908 = vunpack.c.l.b16 %v705
      %v909 = vunpack.c.l.b16 %v706
      %v910 = vunpack.c.l.b16 %v707
      %v911 = vunpack.c.l.b16 %v708
      %v912 = vunpack.c.l.b16 %v709
      %v913 = vunpack.c.l.b16 %v710
      %v914 = vunpack.c.l.b16 %v711
      %v915 = vunpack.c.l.b16 %v712
      %v916 = vunpack.c.l.b16 %v713
      %v917 = vunpack.c.l.b16 %v714
      %v918 = vunpack.c.l.b16 %v715
      %v919 = vunpack.c.l.b16 %v716
      %v920 = vunpack.c.l.b16 %v717
      %v921 = vunpack.c.l.b16 %v718
      %v922 = vunpack.c.l.b16 %v719
      %v923 = vunpack.c.l.b16 %v720
      %v924 = vunpack.c.l.b16 %v721
      %v925 = vunpack.c.l.b16 %v722
      %v926 = vunpack.c.l.b16 %v723
      %v927 = vunpack.c.l.b16 %v724
      %v928 = vunpack.c.l.b16 %v725
      %v929 = vunpack.c.l.b16 %v726
      %v930 = vunpack.c.l.b16 %v727
      %v931 = vunpack.c.l.b16 %v728
      %v932 = vunpack.c.l.b16 %v729
      %v933 = vunpack.c.l.b16 %v730
      %v934 = vunpack.c.l.b16 %v731
      %v935 = vunpack.c.l.b16 %v732
      %v936 = vunpack.c.l.b16 %v733
      %v937 = vunpack.c.l.b16 %v734
      %v938 = vunpack.c.l.b16 %v735
      %v939 = vunpack.c.l.b16 %v736
      %v940 = vunpack.c.l.b16 %v737
      %v941 = vunpack.c.l.b16 %v738
      %v942 = vunpack.c.l.b16 %v739
      %v943 = vunpack.c.l.b16 %v740
      %v944 = vunpack.c.l.b16 %v741
      %v945 = vunpack.c.l.b16 %v742
      %v946 = vunpack.c.l.b16 %v743
      %v947 = vunpack.c.l.b16 %v744
      %v948 = vunpack.c.l.b16 %v745
      %v949 = vunpack.c.l.b16 %v746
      %v950 = vunpack.c.l.b16 %v747
      %v951 = vunpack.c.l.b16 %v748
      %v952 = vunpack.c.l.b16 %v749
      %v953 = vunpack.c.l.b16 %v750
      %v954 = vunpack.c.l.b16 %v751
      %v955 = vunpack.c.l.b16 %v752
      %v956 = vunpack.c.l.b16 %v753
      %v957 = vunpack.c.l.b16 %v754
      %v958 = vunpack.c.l.b16 %v755
      %v959 = vunpack.c.l.b16 %v756
      %v960 = vpack.c.b16 %v863, %v862
      %v961 = vpack.c.b16 %v865, %v864
      %v962 = vpack.c.b16 %v867, %v866
      %v963 = vpack.c.b16 %v869, %v868
      %v964 = vpack.c.b16 %v871, %v870
      %v965 = vpack.c.b16 %v873, %v872
      %v966 = vpack.c.b16 %v875, %v874
      %v967 = vpack.c.b16 %v877, %v876
      %v968 = vpack.c.b16 %v879, %v878
      %v969 = vpack.c.b16 %v881, %v880
      %v970 = vpack.c.b16 %v883, %v882
      %v971 = vpack.c.b16 %v885, %v884
      %v972 = vpack.c.b16 %v887, %v886
      %v973 = vpack.c.b16 %v889, %v888
      %v974 = vpack.c.b16 %v891, %v890
      %v975 = vpack.c.b16 %v893, %v892
      %v976 = vpack.c.b16 %v895, %v894
      %v977 = vpack.c.b16 %v897, %v896
      %v978 = vpack.c.b16 %v899, %v898
      %v979 = vpack.c.b16 %v901, %v900
      %v980 = vpack.c.b16 %v903, %v902
      %v981 = vpack.c.b16 %v905, %v904
      %v982 = vpack.c.b16 %v907, %v906
      %v983 = vpack.c.b16 %v909, %v908
      %v984 = vpack.c.b16 %v911, %v910
      %v985 = vpack.c.b16 %v913, %v912
      %v986 = vpack.c.b16 %v915, %v914
      %v987 = vpack.c.b16 %v917, %v916
      %v988 = vpack.c.b16 %v919, %v918
      %v989 = vpack.c.b16 %v921, %v920
      %v990 = vpack.c.b16 %v923, %v922
      %v991 = vpack.c.b16 %v925, %v924
      %v992 = vpack.c.b16 %v927, %v926
      %v993 = vpack.c.b16 %v929, %v928
      %v994 = vpack.c.b16 %v931, %v930
      %v995 = vpack.c.b16 %v933, %v932
      %v996 = vpack.c.b16 %v935, %v934
      %v997 = vpack.c.b16 %v937, %v936
      %v998 = vpack.c.b16 %v939, %v938
      %v999 = vpack.c.b16 %v941, %v940
      %v1000 = vpack.c.b16 %v943, %v942
      %v1001 = vpack.c.b16 %v945, %v944
      %v1002 = vpack.c.b16 %v947, %v946
      %v1003 = vpack.c.b16 %v949, %v948
      %v1004 = vpack.c.b16 %v951, %v950
      %v1005 = vpack.c.b16 %v953, %v952
      %v1006 = vpack.c.b16 %v955, %v954
      %v1007 = vpack.c.b16 %v957, %v956
      %v1008 = vpack.c.b16 %v959, %v958
      %vm1058 = vcmask 130048
      %v1060 = vsel %vm1058, %v609, 0
      %v1063 = vsel %vm1058, %v616, 0
      %v1066 = vsel %vm1058, %v623, 0
      %v1069 = vsel %vm1058, %v630, 0
      %v1072 = vsel %vm1058, %v637, 0
      %v1075 = vsel %vm1058, %v644, 0
      %v1078 = vsel %vm1058, %v651, 0
      %v1081 = vsel %vm1058, %v658, 0
      %1083 = vmatprep.subr.bf16.mxu0 0
      %1084 = vmatpush1.bf16.msra.mxu0 %v967
      %1085 = vmatprep.subr.bf16.mxu0 0
      %1086 = vmatpush1.bf16.msra.mxu0 %v966
      %1087 = vmatprep.subr.bf16.mxu0 0
      %1088 = vmatpush1.bf16.msra.mxu0 %v965
      %1089 = vmatprep.subr.bf16.mxu0 0
      %1090 = vmatpush1.bf16.msra.mxu0 %v964
      %1091 = vmatprep.subr.bf16.mxu0 0
      %1092 = vmatpush1.bf16.msra.mxu0 %v963
      %1093 = vmatprep.subr.bf16.mxu0 0
      %1094 = vmatpush1.bf16.msra.mxu0 %v962
      %1095 = vmatprep.subr.bf16.mxu0 0
      %1096 = vmatpush1.bf16.msra.mxu0 %v961
      %1097 = vmatprep.subr.bf16.mxu0 0
      %1098 = vmatpush1.bf16.msra.mxu0 %v960
      %1099 = vmatprep.subr.bf16.mxu0 0
      %1100 = vmatpush2.bf16.msra.mxu0 %v975
      %1101 = vmatprep.subr.bf16.mxu0 0
      %1102 = vmatpush2.bf16.msra.mxu0 %v974
      %1103 = vmatprep.subr.bf16.mxu0 0
      %1104 = vmatpush2.bf16.msra.mxu0 %v973
      %1105 = vmatprep.subr.bf16.mxu0 0
      %1106 = vmatpush2.bf16.msra.mxu0 %v972
      %1107 = vmatprep.subr.bf16.mxu0 0
      %1108 = vmatpush2.bf16.msra.mxu0 %v971
      %1109 = vmatprep.subr.bf16.mxu0 0
      %1110 = vmatpush2.bf16.msra.mxu0 %v970
      %1111 = vmatprep.subr.bf16.mxu0 0
      %1112 = vmatpush2.bf16.msra.mxu0 %v969
      %1113 = vmatprep.subr.bf16.mxu0 0
      %1114 = vmatpush2.bf16.msra.mxu0 %v968
      %1115 = vmatprep.mubr.bf16.mxu0 %v604
      %1116 = vmatmul.mubr.bf16.gmra.mxu0 %v603
      %v1117 = vpop.f32.mrf.mxu0
      %v1118 = vadd.f32 %v762, %v1117
      %v1119 = vpop.f32.mrf.mxu0
      %v1120 = vpop.f32.mrf.mxu0
      %v1121 = vadd.f32 %v762, %v1120
      %v1122 = vpop.f32.mrf.mxu0
      %1123 = vmatprep.mubr.bf16.mxu0 %v611
      %1124 = vmatmul.mubr.bf16.gmra.mxu0 %v610
      %v1125 = vpop.f32.mrf.mxu0
      %v1126 = vadd.f32 %v762, %v1125
      %v1127 = vpop.f32.mrf.mxu0
      %v1128 = vpop.f32.mrf.mxu0
      %v1129 = vadd.f32 %v762, %v1128
      %v1130 = vpop.f32.mrf.mxu0
      %1131 = vmatprep.mubr.bf16.mxu0 %v618
      %1132 = vmatmul.mubr.bf16.gmra.mxu0 %v617
      %v1133 = vpop.f32.mrf.mxu0
      %v1134 = vadd.f32 %v762, %v1133
      %v1135 = vpop.f32.mrf.mxu0
      %v1136 = vpop.f32.mrf.mxu0
      %v1137 = vadd.f32 %v762, %v1136
      %v1138 = vpop.f32.mrf.mxu0
      %1139 = vmatprep.mubr.bf16.mxu0 %v625
      %1140 = vmatmul.mubr.bf16.gmra.mxu0 %v624
      %v1141 = vpop.f32.mrf.mxu0
      %v1142 = vadd.f32 %v762, %v1141
      %v1143 = vpop.f32.mrf.mxu0
      %v1144 = vpop.f32.mrf.mxu0
      %v1145 = vadd.f32 %v762, %v1144
      %v1146 = vpop.f32.mrf.mxu0
      %1147 = vmatprep.mubr.bf16.mxu0 %v632
      %1148 = vmatmul.mubr.bf16.gmra.mxu0 %v631
      %v1149 = vpop.f32.mrf.mxu0
      %v1150 = vadd.f32 %v762, %v1149
      %v1151 = vpop.f32.mrf.mxu0
      %v1152 = vpop.f32.mrf.mxu0
      %v1153 = vadd.f32 %v762, %v1152
      %v1154 = vpop.f32.mrf.mxu0
      %1155 = vmatprep.mubr.bf16.mxu0 %v639
      %1156 = vmatmul.mubr.bf16.gmra.mxu0 %v638
      %v1157 = vpop.f32.mrf.mxu0
      %v1158 = vadd.f32 %v762, %v1157
      %v1159 = vpop.f32.mrf.mxu0
      %v1160 = vpop.f32.mrf.mxu0
      %v1161 = vadd.f32 %v762, %v1160
      %v1162 = vpop.f32.mrf.mxu0
      %1163 = vmatprep.mubr.bf16.mxu0 %v646
      %1164 = vmatmul.mubr.bf16.gmra.mxu0 %v645
      %v1165 = vpop.f32.mrf.mxu0
      %v1166 = vadd.f32 %v762, %v1165
      %v1167 = vpop.f32.mrf.mxu0
      %v1168 = vpop.f32.mrf.mxu0
      %v1169 = vadd.f32 %v762, %v1168
      %v1170 = vpop.f32.mrf.mxu0
      %1171 = vmatprep.mubr.bf16.mxu0 %v653
      %1172 = vmatmul.mubr.bf16.gmra.mxu0 %v652
      %v1173 = vpop.f32.mrf.mxu0
      %v1174 = vadd.f32 %v762, %v1173
      %v1175 = vpop.f32.mrf.mxu0
      %v1176 = vpop.f32.mrf.mxu0
      %v1177 = vadd.f32 %v762, %v1176
      %v1178 = vpop.f32.mrf.mxu0
      %1179 = vdwg.mxu0
      %1180 = vmatprep.subr.bf16.mxu0 0
      %1181 = vmatpush1.bf16.msra.mxu0 %v983
      %1182 = vmatprep.subr.bf16.mxu0 0
      %1183 = vmatpush1.bf16.msra.mxu0 %v982
      %1184 = vmatprep.subr.bf16.mxu0 0
      %1185 = vmatpush1.bf16.msra.mxu0 %v981
      %1186 = vmatprep.subr.bf16.mxu0 0
      %1187 = vmatpush1.bf16.msra.mxu0 %v980
      %1188 = vmatprep.subr.bf16.mxu0 0
      %1189 = vmatpush1.bf16.msra.mxu0 %v979
      %1190 = vmatprep.subr.bf16.mxu0 0
      %1191 = vmatpush1.bf16.msra.mxu0 %v978
      %1192 = vmatprep.subr.bf16.mxu0 0
      %1193 = vmatpush1.bf16.msra.mxu0 %v977
      %1194 = vmatprep.subr.bf16.mxu0 0
      %1195 = vmatpush1.bf16.msra.mxu0 %v976
      %1196 = vmatprep.subr.bf16.mxu0 0
      %1197 = vmatpush2.bf16.msra.mxu0 %v991
      %1198 = vmatprep.subr.bf16.mxu0 0
      %1199 = vmatpush2.bf16.msra.mxu0 %v990
      %1200 = vmatprep.subr.bf16.mxu0 0
      %1201 = vmatpush2.bf16.msra.mxu0 %v989
      %1202 = vmatprep.subr.bf16.mxu0 0
      %1203 = vmatpush2.bf16.msra.mxu0 %v988
      %1204 = vmatprep.subr.bf16.mxu0 0
      %1205 = vmatpush2.bf16.msra.mxu0 %v987
      %1206 = vmatprep.subr.bf16.mxu0 0
      %1207 = vmatpush2.bf16.msra.mxu0 %v986
      %1208 = vmatprep.subr.bf16.mxu0 0
      %1209 = vmatpush2.bf16.msra.mxu0 %v985
      %1210 = vmatprep.subr.bf16.mxu0 0
      %1211 = vmatpush2.bf16.msra.mxu0 %v984
      %1212 = vmatprep.mubr.bf16.mxu0 %v606
      %1213 = vmatmul.mubr.bf16.gmra.mxu0 %v605
      %v1214 = vpop.f32.mrf.mxu0
      %v1215 = vadd.f32 %v1118, %v1214
      %v1216 = vpop.f32.mrf.mxu0
      %v1217 = vpop.f32.mrf.mxu0
      %v1218 = vadd.f32 %v1121, %v1217
      %v1219 = vpop.f32.mrf.mxu0
      %1220 = vmatprep.mubr.bf16.mxu0 %v613
      %1221 = vmatmul.mubr.bf16.gmra.mxu0 %v612
      %v1222 = vpop.f32.mrf.mxu0
      %v1223 = vadd.f32 %v1126, %v1222
      %v1224 = vpop.f32.mrf.mxu0
      %v1225 = vpop.f32.mrf.mxu0
      %v1226 = vadd.f32 %v1129, %v1225
      %v1227 = vpop.f32.mrf.mxu0
      %1228 = vmatprep.mubr.bf16.mxu0 %v620
      %1229 = vmatmul.mubr.bf16.gmra.mxu0 %v619
      %v1230 = vpop.f32.mrf.mxu0
      %v1231 = vadd.f32 %v1134, %v1230
      %v1232 = vpop.f32.mrf.mxu0
      %v1233 = vpop.f32.mrf.mxu0
      %v1234 = vadd.f32 %v1137, %v1233
      %v1235 = vpop.f32.mrf.mxu0
      %1236 = vmatprep.mubr.bf16.mxu0 %v627
      %1237 = vmatmul.mubr.bf16.gmra.mxu0 %v626
      %v1238 = vpop.f32.mrf.mxu0
      %v1239 = vadd.f32 %v1142, %v1238
      %v1240 = vpop.f32.mrf.mxu0
      %v1241 = vpop.f32.mrf.mxu0
      %v1242 = vadd.f32 %v1145, %v1241
      %v1243 = vpop.f32.mrf.mxu0
      %1244 = vmatprep.mubr.bf16.mxu0 %v634
      %1245 = vmatmul.mubr.bf16.gmra.mxu0 %v633
      %v1246 = vpop.f32.mrf.mxu0
      %v1247 = vadd.f32 %v1150, %v1246
      %v1248 = vpop.f32.mrf.mxu0
      %v1249 = vpop.f32.mrf.mxu0
      %v1250 = vadd.f32 %v1153, %v1249
      %v1251 = vpop.f32.mrf.mxu0
      %1252 = vmatprep.mubr.bf16.mxu0 %v641
      %1253 = vmatmul.mubr.bf16.gmra.mxu0 %v640
      %v1254 = vpop.f32.mrf.mxu0
      %v1255 = vadd.f32 %v1158, %v1254
      %v1256 = vpop.f32.mrf.mxu0
      %v1257 = vpop.f32.mrf.mxu0
      %v1258 = vadd.f32 %v1161, %v1257
      %v1259 = vpop.f32.mrf.mxu0
      %1260 = vmatprep.mubr.bf16.mxu0 %v648
      %1261 = vmatmul.mubr.bf16.gmra.mxu0 %v647
      %v1262 = vpop.f32.mrf.mxu0
      %v1263 = vadd.f32 %v1166, %v1262
      %v1264 = vpop.f32.mrf.mxu0
      %v1265 = vpop.f32.mrf.mxu0
      %v1266 = vadd.f32 %v1169, %v1265
      %v1267 = vpop.f32.mrf.mxu0
      %1268 = vmatprep.mubr.bf16.mxu0 %v655
      %1269 = vmatmul.mubr.bf16.gmra.mxu0 %v654
      %v1270 = vpop.f32.mrf.mxu0
      %v1271 = vadd.f32 %v1174, %v1270
      %v1272 = vpop.f32.mrf.mxu0
      %v1273 = vpop.f32.mrf.mxu0
      %v1274 = vadd.f32 %v1177, %v1273
      %v1275 = vpop.f32.mrf.mxu0
      %1276 = vdwg.mxu0
      %1277 = vmatprep.subr.bf16.mxu0 0
      %1278 = vmatpush1.bf16.msra.mxu0 %v999
      %1279 = vmatprep.subr.bf16.mxu0 0
      %1280 = vmatpush1.bf16.msra.mxu0 %v998
      %1281 = vmatprep.subr.bf16.mxu0 0
      %1282 = vmatpush1.bf16.msra.mxu0 %v997
      %1283 = vmatprep.subr.bf16.mxu0 0
      %1284 = vmatpush1.bf16.msra.mxu0 %v996
      %1285 = vmatprep.subr.bf16.mxu0 0
      %1286 = vmatpush1.bf16.msra.mxu0 %v995
      %1287 = vmatprep.subr.bf16.mxu0 0
      %1288 = vmatpush1.bf16.msra.mxu0 %v994
      %1289 = vmatprep.subr.bf16.mxu0 0
      %1290 = vmatpush1.bf16.msra.mxu0 %v993
      %1291 = vmatprep.subr.bf16.mxu0 0
      %1292 = vmatpush1.bf16.msra.mxu0 %v992
      %1293 = vmatprep.subr.bf16.mxu0 0
      %1294 = vmatpush2.bf16.msra.mxu0 %v1007
      %1295 = vmatprep.subr.bf16.mxu0 0
      %1296 = vmatpush2.bf16.msra.mxu0 %v1006
      %1297 = vmatprep.subr.bf16.mxu0 0
      %1298 = vmatpush2.bf16.msra.mxu0 %v1005
      %1299 = vmatprep.subr.bf16.mxu0 0
      %1300 = vmatpush2.bf16.msra.mxu0 %v1004
      %1301 = vmatprep.subr.bf16.mxu0 0
      %1302 = vmatpush2.bf16.msra.mxu0 %v1003
      %1303 = vmatprep.subr.bf16.mxu0 0
      %1304 = vmatpush2.bf16.msra.mxu0 %v1002
      %1305 = vmatprep.subr.bf16.mxu0 0
      %1306 = vmatpush2.bf16.msra.mxu0 %v1001
      %1307 = vmatprep.subr.bf16.mxu0 0
      %1308 = vmatpush2.bf16.msra.mxu0 %v1000
      %1309 = vmatprep.mubr.bf16.mxu0 %v608
      %1310 = vmatmul.mubr.bf16.gmra.mxu0 %v607
      %v1311 = vpop.f32.mrf.mxu0
      %v1312 = vadd.f32 %v1215, %v1311
      %v1313 = vpop.f32.mrf.mxu0
      %v1314 = vpop.f32.mrf.mxu0
      %v1315 = vadd.f32 %v1218, %v1314
      %v1316 = vpop.f32.mrf.mxu0
      %1317 = vmatprep.mubr.bf16.mxu0 %v615
      %1318 = vmatmul.mubr.bf16.gmra.mxu0 %v614
      %v1319 = vpop.f32.mrf.mxu0
      %v1320 = vadd.f32 %v1223, %v1319
      %v1321 = vpop.f32.mrf.mxu0
      %v1322 = vpop.f32.mrf.mxu0
      %v1323 = vadd.f32 %v1226, %v1322
      %v1324 = vpop.f32.mrf.mxu0
      %1325 = vmatprep.mubr.bf16.mxu0 %v622
      %1326 = vmatmul.mubr.bf16.gmra.mxu0 %v621
      %v1327 = vpop.f32.mrf.mxu0
      %v1328 = vadd.f32 %v1231, %v1327
      %v1329 = vpop.f32.mrf.mxu0
      %v1330 = vpop.f32.mrf.mxu0
      %v1331 = vadd.f32 %v1234, %v1330
      %v1332 = vpop.f32.mrf.mxu0
      %1333 = vmatprep.mubr.bf16.mxu0 %v629
      %1334 = vmatmul.mubr.bf16.gmra.mxu0 %v628
      %v1335 = vpop.f32.mrf.mxu0
      %v1336 = vadd.f32 %v1239, %v1335
      %v1337 = vpop.f32.mrf.mxu0
      %v1338 = vpop.f32.mrf.mxu0
      %v1339 = vadd.f32 %v1242, %v1338
      %v1340 = vpop.f32.mrf.mxu0
      %1341 = vmatprep.mubr.bf16.mxu0 %v636
      %1342 = vmatmul.mubr.bf16.gmra.mxu0 %v635
      %v1343 = vpop.f32.mrf.mxu0
      %v1344 = vadd.f32 %v1247, %v1343
      %v1345 = vpop.f32.mrf.mxu0
      %v1346 = vpop.f32.mrf.mxu0
      %v1347 = vadd.f32 %v1250, %v1346
      %v1348 = vpop.f32.mrf.mxu0
      %1349 = vmatprep.mubr.bf16.mxu0 %v643
      %1350 = vmatmul.mubr.bf16.gmra.mxu0 %v642
      %v1351 = vpop.f32.mrf.mxu0
      %v1352 = vadd.f32 %v1255, %v1351
      %v1353 = vpop.f32.mrf.mxu0
      %v1354 = vpop.f32.mrf.mxu0
      %v1355 = vadd.f32 %v1258, %v1354
      %v1356 = vpop.f32.mrf.mxu0
      %1357 = vmatprep.mubr.bf16.mxu0 %v650
      %1358 = vmatmul.mubr.bf16.gmra.mxu0 %v649
      %v1359 = vpop.f32.mrf.mxu0
      %v1360 = vadd.f32 %v1263, %v1359
      %v1361 = vpop.f32.mrf.mxu0
      %v1362 = vpop.f32.mrf.mxu0
      %v1363 = vadd.f32 %v1266, %v1362
      %v1364 = vpop.f32.mrf.mxu0
      %1365 = vmatprep.mubr.bf16.mxu0 %v657
      %1366 = vmatmul.mubr.bf16.gmra.mxu0 %v656
      %v1367 = vpop.f32.mrf.mxu0
      %v1368 = vadd.f32 %v1271, %v1367
      %v1369 = vpop.f32.mrf.mxu0
      %v1370 = vpop.f32.mrf.mxu0
      %v1371 = vadd.f32 %v1274, %v1370
      %v1372 = vpop.f32.mrf.mxu0
      %1373 = vdwg.mxu0
      %1374 = vmatprep.subr.bf16.mxu0 0
      %1375 = vmatpush1.bf16.msra.mxu0 0
      %1376 = vmatprep.subr.bf16.mxu0 0
      %1377 = vmatpush1.bf16.msra.mxu0 0
      %1378 = vmatprep.subr.bf16.mxu0 0
      %1379 = vmatpush1.bf16.msra.mxu0 0
      %1380 = vmatprep.subr.bf16.mxu0 0
      %1381 = vmatpush1.bf16.msra.mxu0 0
      %1382 = vmatprep.subr.bf16.mxu0 0
      %1383 = vmatpush1.bf16.msra.mxu0 0
      %1384 = vmatprep.subr.bf16.mxu0 0
      %1385 = vmatpush1.bf16.msra.mxu0 0
      %1386 = vmatprep.subr.bf16.mxu0 0
      %1387 = vmatpush1.bf16.msra.mxu0 0
      %1388 = vmatprep.subr.bf16.mxu0 0
      %1389 = vmatpush1.bf16.msra.mxu0 %v1008
      %1390 = vmatprep.subr.bf16.mxu0 0
      %1391 = vmatpush2.bf16.msra.mxu0 0
      %1392 = vmatprep.subr.bf16.mxu0 0
      %1393 = vmatpush2.bf16.msra.mxu0 0
      %1394 = vmatprep.subr.bf16.mxu0 0
      %1395 = vmatpush2.bf16.msra.mxu0 0
      %1396 = vmatprep.subr.bf16.mxu0 0
      %1397 = vmatpush2.bf16.msra.mxu0 0
      %1398 = vmatprep.subr.bf16.mxu0 0
      %1399 = vmatpush2.bf16.msra.mxu0 0
      %1400 = vmatprep.subr.bf16.mxu0 0
      %1401 = vmatpush2.bf16.msra.mxu0 0
      %1402 = vmatprep.subr.bf16.mxu0 0
      %1403 = vmatpush2.bf16.msra.mxu0 0
      %1404 = vmatprep.subr.bf16.mxu0 0
      %1405 = vmatpush2.bf16.msra.mxu0 0
      %1406 = vmatprep.mubr.bf16.mxu0 0
      %1407 = vmatmul.mubr.bf16.gmra.mxu0 %v1060
      %v1408 = vpop.f32.mrf.mxu0
      %v1409 = vadd.f32 %v1312, %v1408
      %v1410 = vpop.f32.mrf.mxu0
      %v1411 = vpop.f32.mrf.mxu0
      %v1412 = vadd.f32 %v1315, %v1411
      %v1413 = vpop.f32.mrf.mxu0
      %1414 = vmatprep.mubr.bf16.mxu0 0
      %1415 = vmatmul.mubr.bf16.gmra.mxu0 %v1063
      %v1416 = vpop.f32.mrf.mxu0
      %v1417 = vadd.f32 %v1320, %v1416
      %v1418 = vpop.f32.mrf.mxu0
      %v1419 = vpop.f32.mrf.mxu0
      %v1420 = vadd.f32 %v1323, %v1419
      %v1421 = vpop.f32.mrf.mxu0
      %1422 = vmatprep.mubr.bf16.mxu0 0
      %1423 = vmatmul.mubr.bf16.gmra.mxu0 %v1066
      %v1424 = vpop.f32.mrf.mxu0
      %v1425 = vadd.f32 %v1328, %v1424
      %v1426 = vpop.f32.mrf.mxu0
      %v1427 = vpop.f32.mrf.mxu0
      %v1428 = vadd.f32 %v1331, %v1427
      %v1429 = vpop.f32.mrf.mxu0
      %1430 = vmatprep.mubr.bf16.mxu0 0
      %1431 = vmatmul.mubr.bf16.gmra.mxu0 %v1069
      %v1432 = vpop.f32.mrf.mxu0
      %v1433 = vadd.f32 %v1336, %v1432
      %v1434 = vpop.f32.mrf.mxu0
      %v1435 = vpop.f32.mrf.mxu0
      %v1436 = vadd.f32 %v1339, %v1435
      %v1437 = vpop.f32.mrf.mxu0
      %1438 = vmatprep.mubr.bf16.mxu0 0
      %1439 = vmatmul.mubr.bf16.gmra.mxu0 %v1072
      %v1440 = vpop.f32.mrf.mxu0
      %v1441 = vadd.f32 %v1344, %v1440
      %v1442 = vpop.f32.mrf.mxu0
      %v1443 = vpop.f32.mrf.mxu0
      %v1444 = vadd.f32 %v1347, %v1443
      %v1445 = vpop.f32.mrf.mxu0
      %1446 = vmatprep.mubr.bf16.mxu0 0
      %1447 = vmatmul.mubr.bf16.gmra.mxu0 %v1075
      %v1448 = vpop.f32.mrf.mxu0
      %v1449 = vadd.f32 %v1352, %v1448
      %v1450 = vpop.f32.mrf.mxu0
      %v1451 = vpop.f32.mrf.mxu0
      %v1452 = vadd.f32 %v1355, %v1451
      %v1453 = vpop.f32.mrf.mxu0
      %1454 = vmatprep.mubr.bf16.mxu0 0
      %1455 = vmatmul.mubr.bf16.gmra.mxu0 %v1078
      %v1456 = vpop.f32.mrf.mxu0
      %v1457 = vadd.f32 %v1360, %v1456
      %v1458 = vpop.f32.mrf.mxu0
      %v1459 = vpop.f32.mrf.mxu0
      %v1460 = vadd.f32 %v1363, %v1459
      %v1461 = vpop.f32.mrf.mxu0
      %1462 = vmatprep.mubr.bf16.mxu0 0
      %1463 = vmatmul.mubr.bf16.gmra.mxu0 %v1081
      %v1464 = vpop.f32.mrf.mxu0
      %v1465 = vadd.f32 %v1368, %v1464
      %v1466 = vpop.f32.mrf.mxu0
      %v1467 = vpop.f32.mrf.mxu0
      %v1468 = vadd.f32 %v1371, %v1467
      %v1469 = vpop.f32.mrf.mxu0
      %1470 = vdwg.mxu0
      %v1471 = vtanh.pop %v1409
      %v1472 = vtanh.pop %v1412
      %v1473 = vtanh.pop %v1417
      %v1474 = vtanh.pop %v1420
      %v1475 = vtanh.pop %v1425
      %v1476 = vtanh.pop %v1428
      %v1477 = vtanh.pop %v1433
      %v1478 = vtanh.pop %v1436
      %v1479 = vtanh.pop %v1441
      %v1480 = vtanh.pop %v1444
      %v1481 = vtanh.pop %v1449
      %v1482 = vtanh.pop %v1452
      %v1483 = vtanh.pop %v1457
      %v1484 = vtanh.pop %v1460
      %v1485 = vtanh.pop %v1465
      %v1486 = vtanh.pop %v1468
      %v1487 = vpack.c.bf16 %v1472, %v1471
      %v1488 = vpack.c.bf16 %v1474, %v1473
      %v1489 = vpack.c.bf16 %v1476, %v1475
      %v1490 = vpack.c.bf16 %v1478, %v1477
      %v1491 = vpack.c.bf16 %v1480, %v1479
      %v1492 = vpack.c.bf16 %v1482, %v1481
      %v1493 = vpack.c.bf16 %v1484, %v1483
      %v1494 = vpack.c.bf16 %v1486, %v1485
      %v1495 = vld [vmem:[%s3] sm:$0xf]
      %v1496 = vld [vmem:[%s3 + $0x4] sm:$0xf]
      %v1497 = vld [vmem:[%s3 + $0x8] sm:$0xf]
      %v1498 = vld [vmem:[%s3 + $0xc] sm:$0xf]
      %v1499 = vld [vmem:[%s3 + $0x10] sm:$0xf]
      %v1500 = vld [vmem:[%s3 + $0x14] sm:$0xf]
      %v1501 = vld [vmem:[%s3 + $0x18] sm:$0xf]
      %v1502 = vld [vmem:[%s3 + $0x1c] sm:$0xf]
      %v1503 = vld [vmem:[%s3 + $0x20] sm:$0xf]
      %v1504 = vld [vmem:[%s3 + $0x24] sm:$0xf]
      %v1505 = vld [vmem:[%s3 + $0x28] sm:$0xf]
      %v1506 = vld [vmem:[%s3 + $0x2c] sm:$0xf]
      %v1507 = vld [vmem:[%s3 + $0x30] sm:$0xf]
      %v1508 = vld [vmem:[%s3 + $0x34] sm:$0xf]
      %v1509 = vld [vmem:[%s3 + $0x38] sm:$0xf]
      %v1510 = vld [vmem:[%s3 + $0x3c] sm:$0xf]
      %v1511 = vld [vmem:[%s4] sm:$0x1]
      %v1513 = vlaneseq
      %v1514 = vshrl.u32 %v1513, 7
      %v1515 = vsub.s32 0, %v1514
      %v1516 = vrot.slane %v1511, %v1515
      %v1534 = vunpack.c.l.b16 %v1495
      %v1535 = vunpack.c.l.b16 %v1496
      %v1536 = vunpack.c.l.b16 %v1497
      %v1537 = vunpack.c.l.b16 %v1498
      %v1538 = vunpack.c.l.b16 %v1499
      %v1539 = vunpack.c.l.b16 %v1500
      %v1540 = vunpack.c.l.b16 %v1501
      %v1541 = vunpack.c.l.b16 %v1502
      %v1542 = vunpack.c.l.b16 %v1503
      %v1543 = vunpack.c.l.b16 %v1504
      %v1544 = vunpack.c.l.b16 %v1505
      %v1545 = vunpack.c.l.b16 %v1506
      %v1546 = vunpack.c.l.b16 %v1507
      %v1547 = vunpack.c.l.b16 %v1508
      %v1548 = vunpack.c.l.b16 %v1509
      %v1549 = vunpack.c.l.b16 %v1510
      %v1550 = vpack.c.b16 %v1535, %v1534
      %v1551 = vpack.c.b16 %v1537, %v1536
      %v1552 = vpack.c.b16 %v1539, %v1538
      %v1553 = vpack.c.b16 %v1541, %v1540
      %v1554 = vpack.c.b16 %v1543, %v1542
      %v1555 = vpack.c.b16 %v1545, %v1544
      %v1556 = vpack.c.b16 %v1547, %v1546
      %v1557 = vpack.c.b16 %v1549, %v1548
      %1566 = vmatprep.subr.bf16.mxu0 0
      %1567 = vmatpush1.bf16.msra.mxu0 %v1557
      %1568 = vmatprep.subr.bf16.mxu0 0
      %1569 = vmatpush1.bf16.msra.mxu0 %v1556
      %1570 = vmatprep.subr.bf16.mxu0 0
      %1571 = vmatpush1.bf16.msra.mxu0 %v1555
      %1572 = vmatprep.subr.bf16.mxu0 0
      %1573 = vmatpush1.bf16.msra.mxu0 %v1554
      %1574 = vmatprep.subr.bf16.mxu0 0
      %1575 = vmatpush1.bf16.msra.mxu0 %v1553
      %1576 = vmatprep.subr.bf16.mxu0 0
      %1577 = vmatpush1.bf16.msra.mxu0 %v1552
      %1578 = vmatprep.subr.bf16.mxu0 0
      %1579 = vmatpush1.bf16.msra.mxu0 %v1551
      %1580 = vmatprep.subr.bf16.mxu0 0
      %1581 = vmatpush1.bf16.msra.mxu0 %v1550
      %1582 = vmatprep.subr.bf16.mxu0 0
      %1583 = vmatpush2.bf16.msra.mxu0 0
      %1584 = vmatprep.subr.bf16.mxu0 0
      %1585 = vmatpush2.bf16.msra.mxu0 0
      %1586 = vmatprep.subr.bf16.mxu0 0
      %1587 = vmatpush2.bf16.msra.mxu0 0
      %1588 = vmatprep.subr.bf16.mxu0 0
      %1589 = vmatpush2.bf16.msra.mxu0 0
      %1590 = vmatprep.subr.bf16.mxu0 0
      %1591 = vmatpush2.bf16.msra.mxu0 0
      %1592 = vmatprep.subr.bf16.mxu0 0
      %1593 = vmatpush2.bf16.msra.mxu0 0
      %1594 = vmatprep.subr.bf16.mxu0 0
      %1595 = vmatpush2.bf16.msra.mxu0 0
      %1596 = vmatprep.subr.bf16.mxu0 0
      %1597 = vmatpush2.bf16.msra.mxu0 0
      %1598 = vmatprep.mubr.bf16.mxu0 0
      %1599 = vmatmul.mubr.bf16.gmra.mxu0 %v1487
      %v1600 = vpop.f32.mrf.mxu0
      %v1601 = vadd.f32 %v1516, %v1600
      %v1602 = vpop.f32.mrf.mxu0
      %v1603 = vpop.f32.mrf.mxu0
      %v1604 = vadd.f32 %v1516, %v1603
      %v1605 = vpop.f32.mrf.mxu0
      %1606 = vmatprep.mubr.bf16.mxu0 0
      %1607 = vmatmul.mubr.bf16.gmra.mxu0 %v1488
      %v1608 = vpop.f32.mrf.mxu0
      %v1609 = vadd.f32 %v1516, %v1608
      %v1610 = vpop.f32.mrf.mxu0
      %v1611 = vpop.f32.mrf.mxu0
      %v1612 = vadd.f32 %v1516, %v1611
      %v1613 = vpop.f32.mrf.mxu0
      %1614 = vmatprep.mubr.bf16.mxu0 0
      %1615 = vmatmul.mubr.bf16.gmra.mxu0 %v1489
      %v1616 = vpop.f32.mrf.mxu0
      %v1617 = vadd.f32 %v1516, %v1616
      %v1618 = vpop.f32.mrf.mxu0
      %v1619 = vpop.f32.mrf.mxu0
      %v1620 = vadd.f32 %v1516, %v1619
      %v1621 = vpop.f32.mrf.mxu0
      %1622 = vmatprep.mubr.bf16.mxu0 0
      %1623 = vmatmul.mubr.bf16.gmra.mxu0 %v1490
      %v1624 = vpop.f32.mrf.mxu0
      %v1625 = vadd.f32 %v1516, %v1624
      %v1626 = vpop.f32.mrf.mxu0
      %v1627 = vpop.f32.mrf.mxu0
      %v1628 = vadd.f32 %v1516, %v1627
      %v1629 = vpop.f32.mrf.mxu0
      %1630 = vmatprep.mubr.bf16.mxu0 0
      %1631 = vmatmul.mubr.bf16.gmra.mxu0 %v1491
      %v1632 = vpop.f32.mrf.mxu0
      %v1633 = vadd.f32 %v1516, %v1632
      %v1634 = vpop.f32.mrf.mxu0
      %v1635 = vpop.f32.mrf.mxu0
      %v1636 = vadd.f32 %v1516, %v1635
      %v1637 = vpop.f32.mrf.mxu0
      %1638 = vmatprep.mubr.bf16.mxu0 0
      %1639 = vmatmul.mubr.bf16.gmra.mxu0 %v1492
      %v1640 = vpop.f32.mrf.mxu0
      %v1641 = vadd.f32 %v1516, %v1640
      %v1642 = vpop.f32.mrf.mxu0
      %v1643 = vpop.f32.mrf.mxu0
      %v1644 = vadd.f32 %v1516, %v1643
      %v1645 = vpop.f32.mrf.mxu0
      %1646 = vmatprep.mubr.bf16.mxu0 0
      %1647 = vmatmul.mubr.bf16.gmra.mxu0 %v1493
      %v1648 = vpop.f32.mrf.mxu0
      %v1649 = vadd.f32 %v1516, %v1648
      %v1650 = vpop.f32.mrf.mxu0
      %v1651 = vpop.f32.mrf.mxu0
      %v1652 = vadd.f32 %v1516, %v1651
      %v1653 = vpop.f32.mrf.mxu0
      %1654 = vmatprep.mubr.bf16.mxu0 0
      %1655 = vmatmul.mubr.bf16.gmra.mxu0 %v1494
      %v1656 = vpop.f32.mrf.mxu0
      %v1657 = vadd.f32 %v1516, %v1656
      %v1658 = vpop.f32.mrf.mxu0
      %v1659 = vpop.f32.mrf.mxu0
      %v1660 = vadd.f32 %v1516, %v1659
      %v1661 = vpop.f32.mrf.mxu0
      %1662 = vdwg.mxu0
      %v1663 = vtanh.pop %v1601
      %v1664 = vtanh.pop %v1604
      %v1665 = vtanh.pop %v1609
      %v1666 = vtanh.pop %v1612
      %v1667 = vtanh.pop %v1617
      %v1668 = vtanh.pop %v1620
      %v1669 = vtanh.pop %v1625
      %v1670 = vtanh.pop %v1628
      %v1671 = vtanh.pop %v1633
      %v1672 = vtanh.pop %v1636
      %v1673 = vtanh.pop %v1641
      %v1674 = vtanh.pop %v1644
      %v1675 = vtanh.pop %v1649
      %v1676 = vtanh.pop %v1652
      %v1677 = vtanh.pop %v1657
      %v1678 = vtanh.pop %v1660
      %v1679 = vpack.c.bf16 %v1664, %v1663
      %v1680 = vpack.c.bf16 %v1666, %v1665
      %v1681 = vpack.c.bf16 %v1668, %v1667
      %v1682 = vpack.c.bf16 %v1670, %v1669
      %v1683 = vpack.c.bf16 %v1672, %v1671
      %v1684 = vpack.c.bf16 %v1674, %v1673
      %v1685 = vpack.c.bf16 %v1676, %v1675
      %v1686 = vpack.c.bf16 %v1678, %v1677
      %v1687 = vld [vmem:[%s5] sm:$0xf]
      %v1688 = vld [vmem:[%s5 + $0x4] sm:$0xf]
      %v1689 = vld [vmem:[%s5 + $0x8] sm:$0xf]
      %v1690 = vld [vmem:[%s5 + $0xc] sm:$0xf]
      %v1691 = vld [vmem:[%s5 + $0x10] sm:$0xf]
      %v1692 = vld [vmem:[%s5 + $0x14] sm:$0xf]
      %v1693 = vld [vmem:[%s5 + $0x18] sm:$0xf]
      %v1694 = vld [vmem:[%s5 + $0x1c] sm:$0xf]
      %v1695 = vld [vmem:[%s6] sm:$0x1]
      %v1697 = vlaneseq
      %v1698 = vshrl.u32 %v1697, 7
      %v1699 = vsub.s32 0, %v1698
      %v1700 = vrot.slane %v1695, %v1699
      %v1710 = vunpack.c.l.b16 %v1687
      %v1711 = vunpack.c.l.b16 %v1688
      %v1712 = vunpack.c.l.b16 %v1689
      %v1713 = vunpack.c.l.b16 %v1690
      %v1714 = vunpack.c.l.b16 %v1691
      %v1715 = vunpack.c.l.b16 %v1692
      %v1716 = vunpack.c.l.b16 %v1693
      %v1717 = vunpack.c.l.b16 %v1694
      %v1718 = vpack.c.b16 %v1711, %v1710
      %v1719 = vpack.c.b16 %v1713, %v1712
      %v1720 = vpack.c.b16 %v1715, %v1714
      %v1721 = vpack.c.b16 %v1717, %v1716
      %vm1726 = vcmask 523264
      %v1728 = vsel %vm1726, %v1679, 0
      %v1731 = vsel %vm1726, %v1680, 0
      %v1734 = vsel %vm1726, %v1681, 0
      %v1737 = vsel %vm1726, %v1682, 0
      %v1740 = vsel %vm1726, %v1683, 0
      %v1743 = vsel %vm1726, %v1684, 0
      %v1746 = vsel %vm1726, %v1685, 0
      %v1749 = vsel %vm1726, %v1686, 0
      %1751 = vmatprep.subr.bf16.mxu0 0
      %1752 = vmatpush1.bf16.msra.mxu0 0
      %1753 = vmatprep.subr.bf16.mxu0 0
      %1754 = vmatpush1.bf16.msra.mxu0 0
      %1755 = vmatprep.subr.bf16.mxu0 0
      %1756 = vmatpush1.bf16.msra.mxu0 0
      %1757 = vmatprep.subr.bf16.mxu0 0
      %1758 = vmatpush1.bf16.msra.mxu0 0
      %1759 = vmatprep.subr.bf16.mxu0 0
      %1760 = vmatpush1.bf16.msra.mxu0 %v1721
      %1761 = vmatprep.subr.bf16.mxu0 0
      %1762 = vmatpush1.bf16.msra.mxu0 %v1720
      %1763 = vmatprep.subr.bf16.mxu0 0
      %1764 = vmatpush1.bf16.msra.mxu0 %v1719
      %1765 = vmatprep.subr.bf16.mxu0 0
      %1766 = vmatpush1.bf16.msra.mxu0 %v1718
      %1767 = vmatprep.subr.bf16.mxu0 0
      %1768 = vmatpush2.bf16.msra.mxu0 0
      %1769 = vmatprep.subr.bf16.mxu0 0
      %1770 = vmatpush2.bf16.msra.mxu0 0
      %1771 = vmatprep.subr.bf16.mxu0 0
      %1772 = vmatpush2.bf16.msra.mxu0 0
      %1773 = vmatprep.subr.bf16.mxu0 0
      %1774 = vmatpush2.bf16.msra.mxu0 0
      %1775 = vmatprep.subr.bf16.mxu0 0
      %1776 = vmatpush2.bf16.msra.mxu0 0
      %1777 = vmatprep.subr.bf16.mxu0 0
      %1778 = vmatpush2.bf16.msra.mxu0 0
      %1779 = vmatprep.subr.bf16.mxu0 0
      %1780 = vmatpush2.bf16.msra.mxu0 0
      %1781 = vmatprep.subr.bf16.mxu0 0
      %1782 = vmatpush2.bf16.msra.mxu0 0
      %1783 = vmatprep.mubr.bf16.mxu0 0
      %1784 = vmatmul.mubr.bf16.gmra.mxu0 %v1728
      %v1785 = vpop.f32.mrf.mxu0
      %v1786 = vadd.f32 %v1700, %v1785
      %v1787 = vpop.f32.mrf.mxu0
      %v1788 = vpop.f32.mrf.mxu0
      %v1789 = vadd.f32 %v1700, %v1788
      %v1790 = vpop.f32.mrf.mxu0
      %1791 = vmatprep.mubr.bf16.mxu0 0
      %1792 = vmatmul.mubr.bf16.gmra.mxu0 %v1731
      %v1793 = vpop.f32.mrf.mxu0
      %v1794 = vadd.f32 %v1700, %v1793
      %v1795 = vpop.f32.mrf.mxu0
      %v1796 = vpop.f32.mrf.mxu0
      %v1797 = vadd.f32 %v1700, %v1796
      %v1798 = vpop.f32.mrf.mxu0
      %1799 = vmatprep.mubr.bf16.mxu0 0
      %1800 = vmatmul.mubr.bf16.gmra.mxu0 %v1734
      %v1801 = vpop.f32.mrf.mxu0
      %v1802 = vadd.f32 %v1700, %v1801
      %v1803 = vpop.f32.mrf.mxu0
      %v1804 = vpop.f32.mrf.mxu0
      %v1805 = vadd.f32 %v1700, %v1804
      %v1806 = vpop.f32.mrf.mxu0
      %1807 = vmatprep.mubr.bf16.mxu0 0
      %1808 = vmatmul.mubr.bf16.gmra.mxu0 %v1737
      %v1809 = vpop.f32.mrf.mxu0
      %v1810 = vadd.f32 %v1700, %v1809
      %v1811 = vpop.f32.mrf.mxu0
      %v1812 = vpop.f32.mrf.mxu0
      %v1813 = vadd.f32 %v1700, %v1812
      %v1814 = vpop.f32.mrf.mxu0
      %1815 = vmatprep.mubr.bf16.mxu0 0
      %1816 = vmatmul.mubr.bf16.gmra.mxu0 %v1740
      %v1817 = vpop.f32.mrf.mxu0
      %v1818 = vadd.f32 %v1700, %v1817
      %v1819 = vpop.f32.mrf.mxu0
      %v1820 = vpop.f32.mrf.mxu0
      %v1821 = vadd.f32 %v1700, %v1820
      %v1822 = vpop.f32.mrf.mxu0
      %1823 = vmatprep.mubr.bf16.mxu0 0
      %1824 = vmatmul.mubr.bf16.gmra.mxu0 %v1743
      %v1825 = vpop.f32.mrf.mxu0
      %v1826 = vadd.f32 %v1700, %v1825
      %v1827 = vpop.f32.mrf.mxu0
      %v1828 = vpop.f32.mrf.mxu0
      %v1829 = vadd.f32 %v1700, %v1828
      %v1830 = vpop.f32.mrf.mxu0
      %1831 = vmatprep.mubr.bf16.mxu0 0
      %1832 = vmatmul.mubr.bf16.gmra.mxu0 %v1746
      %v1833 = vpop.f32.mrf.mxu0
      %v1834 = vadd.f32 %v1700, %v1833
      %v1835 = vpop.f32.mrf.mxu0
      %v1836 = vpop.f32.mrf.mxu0
      %v1837 = vadd.f32 %v1700, %v1836
      %v1838 = vpop.f32.mrf.mxu0
      %1839 = vmatprep.mubr.bf16.mxu0 0
      %1840 = vmatmul.mubr.bf16.gmra.mxu0 %v1749
      %v1841 = vpop.f32.mrf.mxu0
      %v1842 = vadd.f32 %v1700, %v1841
      %v1843 = vpop.f32.mrf.mxu0
      %v1844 = vpop.f32.mrf.mxu0
      %v1845 = vadd.f32 %v1700, %v1844
      %v1846 = vpop.f32.mrf.mxu0
      %1847 = vdwg.mxu0
      %vm1848 = vcmask 203776
      %1849 = vst.msk [vmem:[%s481] sm:$0xff] %vm1848, %v1786
      %1850 = vst.msk [vmem:[%s481 + $0x8] sm:$0xff] %vm1848, %v1789
      %1851 = vst.msk [vmem:[%s481 + $0x10] sm:$0xff] %vm1848, %v1794
      %1852 = vst.msk [vmem:[%s481 + $0x18] sm:$0xff] %vm1848, %v1797
      %1853 = vst.msk [vmem:[%s481 + $0x20] sm:$0xff] %vm1848, %v1802
      %1854 = vst.msk [vmem:[%s481 + $0x28] sm:$0xff] %vm1848, %v1805
      %1855 = vst.msk [vmem:[%s481 + $0x30] sm:$0xff] %vm1848, %v1810
      %1856 = vst.msk [vmem:[%s481 + $0x38] sm:$0xff] %vm1848, %v1813
      %1857 = vst.msk [vmem:[%s481 + $0x40] sm:$0xff] %vm1848, %v1818
      %1858 = vst.msk [vmem:[%s481 + $0x48] sm:$0xff] %vm1848, %v1821
      %1859 = vst.msk [vmem:[%s481 + $0x50] sm:$0xff] %vm1848, %v1826
      %1860 = vst.msk [vmem:[%s481 + $0x58] sm:$0xff] %vm1848, %v1829
      %1861 = vst.msk [vmem:[%s481 + $0x60] sm:$0xff] %vm1848, %v1834
      %1862 = vst.msk [vmem:[%s481 + $0x68] sm:$0xff] %vm1848, %v1837
      %1863 = vst.msk [vmem:[%s481 + $0x70] sm:$0xff] %vm1848, %v1842
      %1864 = vst.msk [vmem:[%s481 + $0x78] sm:$0xff] %vm1848, %v1845
      %v1865 = vpack.c.bf16 %v1789, %v1786
      %v1866 = vpack.c.bf16 %v1797, %v1794
      %v1867 = vpack.c.bf16 %v1805, %v1802
      %v1868 = vpack.c.bf16 %v1813, %v1810
      %v1869 = vpack.c.bf16 %v1821, %v1818
      %v1870 = vpack.c.bf16 %v1829, %v1826
      %v1871 = vpack.c.bf16 %v1837, %v1834
      %v1872 = vpack.c.bf16 %v1845, %v1842
      %v1873 = vld [vmem:[%s7] sm:$0xf]
      %v1874 = vld [vmem:[%s7 + $0x4] sm:$0xf]
      %v1875 = vld [vmem:[%s7 + $0x8] sm:$0xf]
      %v1876 = vld [vmem:[%s7 + $0xc] sm:$0xf]
      %v1877 = vld [vmem:[%s7 + $0x10] sm:$0xf]
      %v1878 = vld [vmem:[%s7 + $0x14] sm:$0xf]
      %v1879 = vld [vmem:[%s7 + $0x18] sm:$0xf]
      %v1880 = vld [vmem:[%s7 + $0x1c] sm:$0xf]
      %v1881 = vld [vmem:[%s7 + $0x20] sm:$0xf]
      %v1882 = vld [vmem:[%s7 + $0x24] sm:$0xf]
      %v1883 = vld [vmem:[%s7 + $0x28] sm:$0xf]
      %v1884 = vld [vmem:[%s7 + $0x2c] sm:$0xf]
      %v1885 = vld [vmem:[%s7 + $0x30] sm:$0xf]
      %v1886 = vld [vmem:[%s7 + $0x34] sm:$0xf]
      %v1887 = vld [vmem:[%s7 + $0x38] sm:$0xf]
      %v1888 = vld [vmem:[%s7 + $0x3c] sm:$0xf]
      %v1889 = vld [vmem:[%s8] sm:$0x1]
      %v1891 = vlaneseq
      %v1892 = vshrl.u32 %v1891, 7
      %v1893 = vsub.s32 0, %v1892
      %v1894 = vrot.slane %v1889, %v1893
      %v1912 = vunpack.c.l.b16 %v1873
      %v1913 = vunpack.c.l.b16 %v1874
      %v1914 = vunpack.c.l.b16 %v1875
      %v1915 = vunpack.c.l.b16 %v1876
      %v1916 = vunpack.c.l.b16 %v1877
      %v1917 = vunpack.c.l.b16 %v1878
      %v1918 = vunpack.c.l.b16 %v1879
      %v1919 = vunpack.c.l.b16 %v1880
      %v1920 = vunpack.c.l.b16 %v1881
      %v1921 = vunpack.c.l.b16 %v1882
      %v1922 = vunpack.c.l.b16 %v1883
      %v1923 = vunpack.c.l.b16 %v1884
      %v1924 = vunpack.c.l.b16 %v1885
      %v1925 = vunpack.c.l.b16 %v1886
      %v1926 = vunpack.c.l.b16 %v1887
      %v1927 = vunpack.c.l.b16 %v1888
      %v1928 = vpack.c.b16 %v1913, %v1912
      %v1929 = vpack.c.b16 %v1915, %v1914
      %v1930 = vpack.c.b16 %v1917, %v1916
      %v1931 = vpack.c.b16 %v1919, %v1918
      %v1932 = vpack.c.b16 %v1921, %v1920
      %v1933 = vpack.c.b16 %v1923, %v1922
      %v1934 = vpack.c.b16 %v1925, %v1924
      %v1935 = vpack.c.b16 %v1927, %v1926
      %1944 = vmatprep.subr.bf16.mxu0 0
      %1945 = vmatpush1.bf16.msra.mxu0 %v1935
      %1946 = vmatprep.subr.bf16.mxu0 0
      %1947 = vmatpush1.bf16.msra.mxu0 %v1934
      %1948 = vmatprep.subr.bf16.mxu0 0
      %1949 = vmatpush1.bf16.msra.mxu0 %v1933
      %1950 = vmatprep.subr.bf16.mxu0 0
      %1951 = vmatpush1.bf16.msra.mxu0 %v1932
      %1952 = vmatprep.subr.bf16.mxu0 0
      %1953 = vmatpush1.bf16.msra.mxu0 %v1931
      %1954 = vmatprep.subr.bf16.mxu0 0
      %1955 = vmatpush1.bf16.msra.mxu0 %v1930
      %1956 = vmatprep.subr.bf16.mxu0 0
      %1957 = vmatpush1.bf16.msra.mxu0 %v1929
      %1958 = vmatprep.subr.bf16.mxu0 0
      %1959 = vmatpush1.bf16.msra.mxu0 %v1928
      %1960 = vmatprep.subr.bf16.mxu0 0
      %1961 = vmatpush2.bf16.msra.mxu0 0
      %1962 = vmatprep.subr.bf16.mxu0 0
      %1963 = vmatpush2.bf16.msra.mxu0 0
      %1964 = vmatprep.subr.bf16.mxu0 0
      %1965 = vmatpush2.bf16.msra.mxu0 0
      %1966 = vmatprep.subr.bf16.mxu0 0
      %1967 = vmatpush2.bf16.msra.mxu0 0
      %1968 = vmatprep.subr.bf16.mxu0 0
      %1969 = vmatpush2.bf16.msra.mxu0 0
      %1970 = vmatprep.subr.bf16.mxu0 0
      %1971 = vmatpush2.bf16.msra.mxu0 0
      %1972 = vmatprep.subr.bf16.mxu0 0
      %1973 = vmatpush2.bf16.msra.mxu0 0
      %1974 = vmatprep.subr.bf16.mxu0 0
      %1975 = vmatpush2.bf16.msra.mxu0 0
      %1976 = vmatprep.mubr.bf16.mxu0 0
      %1977 = vmatmul.mubr.bf16.gmra.mxu0 %v1865
      %v1978 = vpop.f32.mrf.mxu0
      %v1979 = vadd.f32 %v1894, %v1978
      %v1980 = vpop.f32.mrf.mxu0
      %v1981 = vpop.f32.mrf.mxu0
      %v1982 = vadd.f32 %v1894, %v1981
      %v1983 = vpop.f32.mrf.mxu0
      %1984 = vmatprep.mubr.bf16.mxu0 0
      %1985 = vmatmul.mubr.bf16.gmra.mxu0 %v1866
      %v1986 = vpop.f32.mrf.mxu0
      %v1987 = vadd.f32 %v1894, %v1986
      %v1988 = vpop.f32.mrf.mxu0
      %v1989 = vpop.f32.mrf.mxu0
      %v1990 = vadd.f32 %v1894, %v1989
      %v1991 = vpop.f32.mrf.mxu0
      %1992 = vmatprep.mubr.bf16.mxu0 0
      %1993 = vmatmul.mubr.bf16.gmra.mxu0 %v1867
      %v1994 = vpop.f32.mrf.mxu0
      %v1995 = vadd.f32 %v1894, %v1994
      %v1996 = vpop.f32.mrf.mxu0
      %v1997 = vpop.f32.mrf.mxu0
      %v1998 = vadd.f32 %v1894, %v1997
      %v1999 = vpop.f32.mrf.mxu0
      %2000 = vmatprep.mubr.bf16.mxu0 0
      %2001 = vmatmul.mubr.bf16.gmra.mxu0 %v1868
      %v2002 = vpop.f32.mrf.mxu0
      %v2003 = vadd.f32 %v1894, %v2002
      %v2004 = vpop.f32.mrf.mxu0
      %v2005 = vpop.f32.mrf.mxu0
      %v2006 = vadd.f32 %v1894, %v2005
      %v2007 = vpop.f32.mrf.mxu0
      %2008 = vmatprep.mubr.bf16.mxu0 0
      %2009 = vmatmul.mubr.bf16.gmra.mxu0 %v1869
      %v2010 = vpop.f32.mrf.mxu0
      %v2011 = vadd.f32 %v1894, %v2010
      %v2012 = vpop.f32.mrf.mxu0
      %v2013 = vpop.f32.mrf.mxu0
      %v2014 = vadd.f32 %v1894, %v2013
      %v2015 = vpop.f32.mrf.mxu0
      %2016 = vmatprep.mubr.bf16.mxu0 0
      %2017 = vmatmul.mubr.bf16.gmra.mxu0 %v1870
      %v2018 = vpop.f32.mrf.mxu0
      %v2019 = vadd.f32 %v1894, %v2018
      %v2020 = vpop.f32.mrf.mxu0
      %v2021 = vpop.f32.mrf.mxu0
      %v2022 = vadd.f32 %v1894, %v2021
      %v2023 = vpop.f32.mrf.mxu0
      %2024 = vmatprep.mubr.bf16.mxu0 0
      %2025 = vmatmul.mubr.bf16.gmra.mxu0 %v1871
      %v2026 = vpop.f32.mrf.mxu0
      %v2027 = vadd.f32 %v1894, %v2026
      %v2028 = vpop.f32.mrf.mxu0
      %v2029 = vpop.f32.mrf.mxu0
      %v2030 = vadd.f32 %v1894, %v2029
      %v2031 = vpop.f32.mrf.mxu0
      %2032 = vmatprep.mubr.bf16.mxu0 0
      %2033 = vmatmul.mubr.bf16.gmra.mxu0 %v1872
      %v2034 = vpop.f32.mrf.mxu0
      %v2035 = vadd.f32 %v1894, %v2034
      %v2036 = vpop.f32.mrf.mxu0
      %v2037 = vpop.f32.mrf.mxu0
      %v2038 = vadd.f32 %v1894, %v2037
      %v2039 = vpop.f32.mrf.mxu0
      %2040 = vdwg.mxu0
      %v2041 = vtanh.pop %v1979
      %v2042 = vtanh.pop %v1982
      %v2043 = vtanh.pop %v1987
      %v2044 = vtanh.pop %v1990
      %v2045 = vtanh.pop %v1995
      %v2046 = vtanh.pop %v1998
      %v2047 = vtanh.pop %v2003
      %v2048 = vtanh.pop %v2006
      %v2049 = vtanh.pop %v2011
      %v2050 = vtanh.pop %v2014
      %v2051 = vtanh.pop %v2019
      %v2052 = vtanh.pop %v2022
      %v2053 = vtanh.pop %v2027
      %v2054 = vtanh.pop %v2030
      %v2055 = vtanh.pop %v2035
      %v2056 = vtanh.pop %v2038
      %v2057 = vpack.c.bf16 %v2042, %v2041
      %v2058 = vpack.c.bf16 %v2044, %v2043
      %v2059 = vpack.c.bf16 %v2046, %v2045
      %v2060 = vpack.c.bf16 %v2048, %v2047
      %v2061 = vpack.c.bf16 %v2050, %v2049
      %v2062 = vpack.c.bf16 %v2052, %v2051
      %v2063 = vpack.c.bf16 %v2054, %v2053
      %v2064 = vpack.c.bf16 %v2056, %v2055
      %v2065 = vld [vmem:[%s9] sm:$0xf]
      %v2066 = vld [vmem:[%s9 + $0x4] sm:$0xf]
      %v2067 = vld [vmem:[%s9 + $0x8] sm:$0xf]
      %v2068 = vld [vmem:[%s9 + $0xc] sm:$0xf]
      %v2069 = vld [vmem:[%s9 + $0x10] sm:$0xf]
      %v2070 = vld [vmem:[%s9 + $0x14] sm:$0xf]
      %v2071 = vld [vmem:[%s9 + $0x18] sm:$0xf]
      %v2072 = vld [vmem:[%s9 + $0x1c] sm:$0xf]
      %v2073 = vld [vmem:[%s10] sm:$0x1]
      %v2075 = vlaneseq
      %v2076 = vshrl.u32 %v2075, 7
      %v2077 = vsub.s32 0, %v2076
      %v2078 = vrot.slane %v2073, %v2077
      %v2088 = vunpack.c.l.b16 %v2065
      %v2089 = vunpack.c.l.b16 %v2066
      %v2090 = vunpack.c.l.b16 %v2067
      %v2091 = vunpack.c.l.b16 %v2068
      %v2092 = vunpack.c.l.b16 %v2069
      %v2093 = vunpack.c.l.b16 %v2070
      %v2094 = vunpack.c.l.b16 %v2071
      %v2095 = vunpack.c.l.b16 %v2072
      %v2096 = vpack.c.b16 %v2089, %v2088
      %v2097 = vpack.c.b16 %v2091, %v2090
      %v2098 = vpack.c.b16 %v2093, %v2092
      %v2099 = vpack.c.b16 %v2095, %v2094
      %v2105 = vsel %vm1726, %v2057, 0
      %v2108 = vsel %vm1726, %v2058, 0
      %v2111 = vsel %vm1726, %v2059, 0
      %v2114 = vsel %vm1726, %v2060, 0
      %v2117 = vsel %vm1726, %v2061, 0
      %v2120 = vsel %vm1726, %v2062, 0
      %v2123 = vsel %vm1726, %v2063, 0
      %v2126 = vsel %vm1726, %v2064, 0
      %2128 = vmatprep.subr.bf16.mxu0 0
      %2129 = vmatpush1.bf16.msra.mxu0 0
      %2130 = vmatprep.subr.bf16.mxu0 0
      %2131 = vmatpush1.bf16.msra.mxu0 0
      %2132 = vmatprep.subr.bf16.mxu0 0
      %2133 = vmatpush1.bf16.msra.mxu0 0
      %2134 = vmatprep.subr.bf16.mxu0 0
      %2135 = vmatpush1.bf16.msra.mxu0 0
      %2136 = vmatprep.subr.bf16.mxu0 0
      %2137 = vmatpush1.bf16.msra.mxu0 %v2099
      %2138 = vmatprep.subr.bf16.mxu0 0
      %2139 = vmatpush1.bf16.msra.mxu0 %v2098
      %2140 = vmatprep.subr.bf16.mxu0 0
      %2141 = vmatpush1.bf16.msra.mxu0 %v2097
      %2142 = vmatprep.subr.bf16.mxu0 0
      %2143 = vmatpush1.bf16.msra.mxu0 %v2096
      %2144 = vmatprep.subr.bf16.mxu0 0
      %2145 = vmatpush2.bf16.msra.mxu0 0
      %2146 = vmatprep.subr.bf16.mxu0 0
      %2147 = vmatpush2.bf16.msra.mxu0 0
      %2148 = vmatprep.subr.bf16.mxu0 0
      %2149 = vmatpush2.bf16.msra.mxu0 0
      %2150 = vmatprep.subr.bf16.mxu0 0
      %2151 = vmatpush2.bf16.msra.mxu0 0
      %2152 = vmatprep.subr.bf16.mxu0 0
      %2153 = vmatpush2.bf16.msra.mxu0 0
      %2154 = vmatprep.subr.bf16.mxu0 0
      %2155 = vmatpush2.bf16.msra.mxu0 0
      %2156 = vmatprep.subr.bf16.mxu0 0
      %2157 = vmatpush2.bf16.msra.mxu0 0
      %2158 = vmatprep.subr.bf16.mxu0 0
      %2159 = vmatpush2.bf16.msra.mxu0 0
      %2160 = vmatprep.mubr.bf16.mxu0 0
      %2161 = vmatmul.mubr.bf16.gmra.mxu0 %v2105
      %v2162 = vpop.f32.mrf.mxu0
      %v2163 = vadd.f32 %v2078, %v2162
      %v2164 = vpop.f32.mrf.mxu0
      %v2165 = vpop.f32.mrf.mxu0
      %v2166 = vadd.f32 %v2078, %v2165
      %v2167 = vpop.f32.mrf.mxu0
      %2168 = vmatprep.mubr.bf16.mxu0 0
      %2169 = vmatmul.mubr.bf16.gmra.mxu0 %v2108
      %v2170 = vpop.f32.mrf.mxu0
      %v2171 = vadd.f32 %v2078, %v2170
      %v2172 = vpop.f32.mrf.mxu0
      %v2173 = vpop.f32.mrf.mxu0
      %v2174 = vadd.f32 %v2078, %v2173
      %v2175 = vpop.f32.mrf.mxu0
      %2176 = vmatprep.mubr.bf16.mxu0 0
      %2177 = vmatmul.mubr.bf16.gmra.mxu0 %v2111
      %v2178 = vpop.f32.mrf.mxu0
      %v2179 = vadd.f32 %v2078, %v2178
      %v2180 = vpop.f32.mrf.mxu0
      %v2181 = vpop.f32.mrf.mxu0
      %v2182 = vadd.f32 %v2078, %v2181
      %v2183 = vpop.f32.mrf.mxu0
      %2184 = vmatprep.mubr.bf16.mxu0 0
      %2185 = vmatmul.mubr.bf16.gmra.mxu0 %v2114
      %v2186 = vpop.f32.mrf.mxu0
      %v2187 = vadd.f32 %v2078, %v2186
      %v2188 = vpop.f32.mrf.mxu0
      %v2189 = vpop.f32.mrf.mxu0
      %v2190 = vadd.f32 %v2078, %v2189
      %v2191 = vpop.f32.mrf.mxu0
      %2192 = vmatprep.mubr.bf16.mxu0 0
      %2193 = vmatmul.mubr.bf16.gmra.mxu0 %v2117
      %v2194 = vpop.f32.mrf.mxu0
      %v2195 = vadd.f32 %v2078, %v2194
      %v2196 = vpop.f32.mrf.mxu0
      %v2197 = vpop.f32.mrf.mxu0
      %v2198 = vadd.f32 %v2078, %v2197
      %v2199 = vpop.f32.mrf.mxu0
      %2200 = vmatprep.mubr.bf16.mxu0 0
      %2201 = vmatmul.mubr.bf16.gmra.mxu0 %v2120
      %v2202 = vpop.f32.mrf.mxu0
      %v2203 = vadd.f32 %v2078, %v2202
      %v2204 = vpop.f32.mrf.mxu0
      %v2205 = vpop.f32.mrf.mxu0
      %v2206 = vadd.f32 %v2078, %v2205
      %v2207 = vpop.f32.mrf.mxu0
      %2208 = vmatprep.mubr.bf16.mxu0 0
      %2209 = vmatmul.mubr.bf16.gmra.mxu0 %v2123
      %v2210 = vpop.f32.mrf.mxu0
      %v2211 = vadd.f32 %v2078, %v2210
      %v2212 = vpop.f32.mrf.mxu0
      %v2213 = vpop.f32.mrf.mxu0
      %v2214 = vadd.f32 %v2078, %v2213
      %v2215 = vpop.f32.mrf.mxu0
      %2216 = vmatprep.mubr.bf16.mxu0 0
      %2217 = vmatmul.mubr.bf16.gmra.mxu0 %v2126
      %v2218 = vpop.f32.mrf.mxu0
      %v2219 = vadd.f32 %v2078, %v2218
      %v2220 = vpop.f32.mrf.mxu0
      %v2221 = vpop.f32.mrf.mxu0
      %v2222 = vadd.f32 %v2078, %v2221
      %v2223 = vpop.f32.mrf.mxu0
      %2224 = vdwg.mxu0
      %v2225 = vtanh.pop %v2163
      %v2226 = vtanh.pop %v2166
      %v2227 = vtanh.pop %v2171
      %v2228 = vtanh.pop %v2174
      %v2229 = vtanh.pop %v2179
      %v2230 = vtanh.pop %v2182
      %v2231 = vtanh.pop %v2187
      %v2232 = vtanh.pop %v2190
      %v2233 = vtanh.pop %v2195
      %v2234 = vtanh.pop %v2198
      %v2235 = vtanh.pop %v2203
      %v2236 = vtanh.pop %v2206
      %v2237 = vtanh.pop %v2211
      %v2238 = vtanh.pop %v2214
      %v2239 = vtanh.pop %v2219
      %v2240 = vtanh.pop %v2222
      %v2241 = vpack.c.bf16 %v2226, %v2225
      %v2242 = vpack.c.bf16 %v2228, %v2227
      %v2243 = vpack.c.bf16 %v2230, %v2229
      %v2244 = vpack.c.bf16 %v2232, %v2231
      %v2245 = vpack.c.bf16 %v2234, %v2233
      %v2246 = vpack.c.bf16 %v2236, %v2235
      %v2247 = vpack.c.bf16 %v2238, %v2237
      %v2248 = vpack.c.bf16 %v2240, %v2239
      %v2249 = vld [vmem:[%s11] sm:$0xff]
      %v2250 = vld [vmem:[%s11 + $0x8] sm:$0xff]
      %v2251 = vld [vmem:[%s11 + $0x10] sm:$0xff]
      %v2252 = vld [vmem:[%s11 + $0x18] sm:$0xf]
      %v2253 = vld [vmem:[%s11 + $0x1c] sm:$0xff]
      %v2254 = vld [vmem:[%s11 + $0x24] sm:$0xff]
      %v2255 = vld [vmem:[%s11 + $0x2c] sm:$0xff]
      %v2256 = vld [vmem:[%s11 + $0x34] sm:$0xf]
      %v2257 = vld [vmem:[%s11 + $0x38] sm:$0xff]
      %v2258 = vld [vmem:[%s11 + $0x40] sm:$0xff]
      %v2259 = vld [vmem:[%s11 + $0x48] sm:$0xff]
      %v2260 = vld [vmem:[%s11 + $0x50] sm:$0xf]
      %v2261 = vld [vmem:[%s11 + $0x54] sm:$0xff]
      %v2262 = vld [vmem:[%s11 + $0x5c] sm:$0xff]
      %v2263 = vld [vmem:[%s11 + $0x64] sm:$0xff]
      %v2264 = vld [vmem:[%s11 + $0x6c] sm:$0xf]
      %v2265 = vld [vmem:[%s11 + $0x70] sm:$0xff]
      %v2266 = vld [vmem:[%s11 + $0x78] sm:$0xff]
      %v2267 = vld [vmem:[%s11 + $0x80] sm:$0xff]
      %v2268 = vld [vmem:[%s11 + $0x88] sm:$0xf]
      %v2269 = vld [vmem:[%s11 + $0x8c] sm:$0xff]
      %v2270 = vld [vmem:[%s11 + $0x94] sm:$0xff]
      %v2271 = vld [vmem:[%s11 + $0x9c] sm:$0xff]
      %v2272 = vld [vmem:[%s11 + $0xa4] sm:$0xf]
      %v2273 = vld [vmem:[%s11 + $0xa8] sm:$0xff]
      %v2274 = vld [vmem:[%s11 + $0xb0] sm:$0xff]
      %v2275 = vld [vmem:[%s11 + $0xb8] sm:$0xff]
      %v2276 = vld [vmem:[%s11 + $0xc0] sm:$0xf]
      %v2277 = vld [vmem:[%s11 + $0xc4] sm:$0xff]
      %v2278 = vld [vmem:[%s11 + $0xcc] sm:$0xff]
      %v2279 = vld [vmem:[%s11 + $0xd4] sm:$0xff]
      %v2280 = vld [vmem:[%s11 + $0xdc] sm:$0xf]
      %v2281 = vld [vmem:[%s11 + $0xe0] sm:$0xff]
      %v2282 = vld [vmem:[%s11 + $0xe8] sm:$0xff]
      %v2283 = vld [vmem:[%s11 + $0xf0] sm:$0xff]
      %v2284 = vld [vmem:[%s11 + $0xf8] sm:$0xf]
      %v2285 = vld [vmem:[%s11 + $0xfc] sm:$0xff]
      %v2286 = vld [vmem:[%s11 + $0x104] sm:$0xff]
      %v2287 = vld [vmem:[%s11 + $0x10c] sm:$0xff]
      %v2288 = vld [vmem:[%s11 + $0x114] sm:$0xf]
      %v2289 = vld [vmem:[%s11 + $0x118] sm:$0xff]
      %v2290 = vld [vmem:[%s11 + $0x120] sm:$0xff]
      %v2291 = vld [vmem:[%s11 + $0x128] sm:$0xff]
      %v2292 = vld [vmem:[%s11 + $0x130] sm:$0xf]
      %v2293 = vld [vmem:[%s11 + $0x134] sm:$0xff]
      %v2294 = vld [vmem:[%s11 + $0x13c] sm:$0xff]
      %v2295 = vld [vmem:[%s11 + $0x144] sm:$0xff]
      %v2296 = vld [vmem:[%s11 + $0x14c] sm:$0xf]
      %v2297 = vld [vmem:[%s11 + $0x150] sm:$0xff]
      %v2298 = vld [vmem:[%s11 + $0x158] sm:$0xff]
      %v2299 = vld [vmem:[%s11 + $0x160] sm:$0xff]
      %v2300 = vld [vmem:[%s11 + $0x168] sm:$0xf]
      %v2301 = vld [vmem:[%s11 + $0x16c] sm:$0xff]
      %v2302 = vld [vmem:[%s11 + $0x174] sm:$0xff]
      %v2303 = vld [vmem:[%s11 + $0x17c] sm:$0xff]
      %v2304 = vld [vmem:[%s11 + $0x184] sm:$0xf]
      %v2305 = vld [vmem:[%s11 + $0x188] sm:$0xff]
      %v2306 = vld [vmem:[%s11 + $0x190] sm:$0xff]
      %v2307 = vld [vmem:[%s11 + $0x198] sm:$0xff]
      %v2308 = vld [vmem:[%s11 + $0x1a0] sm:$0xf]
      %v2309 = vld [vmem:[%s11 + $0x1a4] sm:$0xff]
      %v2310 = vld [vmem:[%s11 + $0x1ac] sm:$0xff]
      %v2311 = vld [vmem:[%s11 + $0x1b4] sm:$0xff]
      %v2312 = vld [vmem:[%s11 + $0x1bc] sm:$0xf]
      %v2313 = vld [vmem:[%s12] sm:$0x7f]
      %v2315 = vlaneseq
      %v2316 = vshrl.u32 %v2315, 7
      %v2317 = vsub.s32 0, %v2316
      %v2318 = vrot.slane %v2313, %v2317
      %v2319 = vlaneseq
      %v2320 = vshrl.u32 %v2319, 7
      %v2321 = vsub.s32 1, %v2320
      %v2322 = vrot.slane %v2313, %v2321
      %v2323 = vlaneseq
      %v2324 = vshrl.u32 %v2323, 7
      %v2325 = vsub.s32 2, %v2324
      %v2326 = vrot.slane %v2313, %v2325
      %v2327 = vlaneseq
      %v2328 = vshrl.u32 %v2327, 7
      %v2329 = vsub.s32 3, %v2328
      %v2330 = vrot.slane %v2313, %v2329
      %v2331 = vlaneseq
      %v2332 = vshrl.u32 %v2331, 7
      %v2333 = vsub.s32 4, %v2332
      %v2334 = vrot.slane %v2313, %v2333
      %v2335 = vlaneseq
      %v2336 = vshrl.u32 %v2335, 7
      %v2337 = vsub.s32 5, %v2336
      %v2338 = vrot.slane %v2313, %v2337
      %v2339 = vlaneseq
      %v2340 = vshrl.u32 %v2339, 7
      %v2341 = vsub.s32 6, %v2340
      %v2342 = vrot.slane %v2313, %v2341
      %v2414 = vunpack.c.l.b16 %v2249
      %v2415 = vunpack.c.h.b16 %v2249
      %v2416 = vunpack.c.l.b16 %v2250
      %v2417 = vunpack.c.h.b16 %v2250
      %v2418 = vunpack.c.l.b16 %v2251
      %v2419 = vunpack.c.h.b16 %v2251
      %v2420 = vunpack.c.l.b16 %v2252
      %v2421 = vunpack.c.l.b16 %v2253
      %v2422 = vunpack.c.h.b16 %v2253
      %v2423 = vunpack.c.l.b16 %v2254
      %v2424 = vunpack.c.h.b16 %v2254
      %v2425 = vunpack.c.l.b16 %v2255
      %v2426 = vunpack.c.h.b16 %v2255
      %v2427 = vunpack.c.l.b16 %v2256
      %v2428 = vunpack.c.l.b16 %v2257
      %v2429 = vunpack.c.h.b16 %v2257
      %v2430 = vunpack.c.l.b16 %v2258
      %v2431 = vunpack.c.h.b16 %v2258
      %v2432 = vunpack.c.l.b16 %v2259
      %v2433 = vunpack.c.h.b16 %v2259
      %v2434 = vunpack.c.l.b16 %v2260
      %v2435 = vunpack.c.l.b16 %v2261
      %v2436 = vunpack.c.h.b16 %v2261
      %v2437 = vunpack.c.l.b16 %v2262
      %v2438 = vunpack.c.h.b16 %v2262
      %v2439 = vunpack.c.l.b16 %v2263
      %v2440 = vunpack.c.h.b16 %v2263
      %v2441 = vunpack.c.l.b16 %v2264
      %v2442 = vunpack.c.l.b16 %v2265
      %v2443 = vunpack.c.h.b16 %v2265
      %v2444 = vunpack.c.l.b16 %v2266
      %v2445 = vunpack.c.h.b16 %v2266
      %v2446 = vunpack.c.l.b16 %v2267
      %v2447 = vunpack.c.h.b16 %v2267
      %v2448 = vunpack.c.l.b16 %v2268
      %v2449 = vunpack.c.l.b16 %v2269
      %v2450 = vunpack.c.h.b16 %v2269
      %v2451 = vunpack.c.l.b16 %v2270
      %v2452 = vunpack.c.h.b16 %v2270
      %v2453 = vunpack.c.l.b16 %v2271
      %v2454 = vunpack.c.h.b16 %v2271
      %v2455 = vunpack.c.l.b16 %v2272
      %v2456 = vunpack.c.l.b16 %v2273
      %v2457 = vunpack.c.h.b16 %v2273
      %v2458 = vunpack.c.l.b16 %v2274
      %v2459 = vunpack.c.h.b16 %v2274
      %v2460 = vunpack.c.l.b16 %v2275
      %v2461 = vunpack.c.h.b16 %v2275
      %v2462 = vunpack.c.l.b16 %v2276
      %v2463 = vunpack.c.l.b16 %v2277
      %v2464 = vunpack.c.h.b16 %v2277
      %v2465 = vunpack.c.l.b16 %v2278
      %v2466 = vunpack.c.h.b16 %v2278
      %v2467 = vunpack.c.l.b16 %v2279
      %v2468 = vunpack.c.h.b16 %v2279
      %v2469 = vunpack.c.l.b16 %v2280
      %v2470 = vunpack.c.l.b16 %v2281
      %v2471 = vunpack.c.h.b16 %v2281
      %v2472 = vunpack.c.l.b16 %v2282
      %v2473 = vunpack.c.h.b16 %v2282
      %v2474 = vunpack.c.l.b16 %v2283
      %v2475 = vunpack.c.h.b16 %v2283
      %v2476 = vunpack.c.l.b16 %v2284
      %v2477 = vunpack.c.l.b16 %v2285
      %v2478 = vunpack.c.h.b16 %v2285
      %v2479 = vunpack.c.l.b16 %v2286
      %v2480 = vunpack.c.h.b16 %v2286
      %v2481 = vunpack.c.l.b16 %v2287
      %v2482 = vunpack.c.h.b16 %v2287
      %v2483 = vunpack.c.l.b16 %v2288
      %v2484 = vunpack.c.l.b16 %v2289
      %v2485 = vunpack.c.h.b16 %v2289
      %v2486 = vunpack.c.l.b16 %v2290
      %v2487 = vunpack.c.h.b16 %v2290
      %v2488 = vunpack.c.l.b16 %v2291
      %v2489 = vunpack.c.h.b16 %v2291
      %v2490 = vunpack.c.l.b16 %v2292
      %v2491 = vunpack.c.l.b16 %v2293
      %v2492 = vunpack.c.h.b16 %v2293
      %v2493 = vunpack.c.l.b16 %v2294
      %v2494 = vunpack.c.h.b16 %v2294
      %v2495 = vunpack.c.l.b16 %v2295
      %v2496 = vunpack.c.h.b16 %v2295
      %v2497 = vunpack.c.l.b16 %v2296
      %v2498 = vunpack.c.l.b16 %v2297
      %v2499 = vunpack.c.h.b16 %v2297
      %v2500 = vunpack.c.l.b16 %v2298
      %v2501 = vunpack.c.h.b16 %v2298
      %v2502 = vunpack.c.l.b16 %v2299
      %v2503 = vunpack.c.h.b16 %v2299
      %v2504 = vunpack.c.l.b16 %v2300
      %v2505 = vunpack.c.l.b16 %v2301
      %v2506 = vunpack.c.h.b16 %v2301
      %v2507 = vunpack.c.l.b16 %v2302
      %v2508 = vunpack.c.h.b16 %v2302
      %v2509 = vunpack.c.l.b16 %v2303
      %v2510 = vunpack.c.h.b16 %v2303
      %v2511 = vunpack.c.l.b16 %v2304
      %v2512 = vunpack.c.l.b16 %v2305
      %v2513 = vunpack.c.h.b16 %v2305
      %v2514 = vunpack.c.l.b16 %v2306
      %v2515 = vunpack.c.h.b16 %v2306
      %v2516 = vunpack.c.l.b16 %v2307
      %v2517 = vunpack.c.h.b16 %v2307
      %v2518 = vunpack.c.l.b16 %v2308
      %v2519 = vunpack.c.l.b16 %v2309
      %v2520 = vunpack.c.h.b16 %v2309
      %v2521 = vunpack.c.l.b16 %v2310
      %v2522 = vunpack.c.h.b16 %v2310
      %v2523 = vunpack.c.l.b16 %v2311
      %v2524 = vunpack.c.h.b16 %v2311
      %v2525 = vunpack.c.l.b16 %v2312
      %v2526 = vpack.c.b16 %v2421, %v2414
      %v2527 = vpack.c.b16 %v2422, %v2415
      %v2528 = vpack.c.b16 %v2423, %v2416
      %v2529 = vpack.c.b16 %v2424, %v2417
      %v2530 = vpack.c.b16 %v2425, %v2418
      %v2531 = vpack.c.b16 %v2426, %v2419
      %v2532 = vpack.c.b16 %v2427, %v2420
      %v2533 = vpack.c.b16 %v2435, %v2428
      %v2534 = vpack.c.b16 %v2436, %v2429
      %v2535 = vpack.c.b16 %v2437, %v2430
      %v2536 = vpack.c.b16 %v2438, %v2431
      %v2537 = vpack.c.b16 %v2439, %v2432
      %v2538 = vpack.c.b16 %v2440, %v2433
      %v2539 = vpack.c.b16 %v2441, %v2434
      %v2540 = vpack.c.b16 %v2449, %v2442
      %v2541 = vpack.c.b16 %v2450, %v2443
      %v2542 = vpack.c.b16 %v2451, %v2444
      %v2543 = vpack.c.b16 %v2452, %v2445
      %v2544 = vpack.c.b16 %v2453, %v2446
      %v2545 = vpack.c.b16 %v2454, %v2447
      %v2546 = vpack.c.b16 %v2455, %v2448
      %v2547 = vpack.c.b16 %v2463, %v2456
      %v2548 = vpack.c.b16 %v2464, %v2457
      %v2549 = vpack.c.b16 %v2465, %v2458
      %v2550 = vpack.c.b16 %v2466, %v2459
      %v2551 = vpack.c.b16 %v2467, %v2460
      %v2552 = vpack.c.b16 %v2468, %v2461
      %v2553 = vpack.c.b16 %v2469, %v2462
      %v2554 = vpack.c.b16 %v2477, %v2470
      %v2555 = vpack.c.b16 %v2478, %v2471
      %v2556 = vpack.c.b16 %v2479, %v2472
      %v2557 = vpack.c.b16 %v2480, %v2473
      %v2558 = vpack.c.b16 %v2481, %v2474
      %v2559 = vpack.c.b16 %v2482, %v2475
      %v2560 = vpack.c.b16 %v2483, %v2476
      %v2561 = vpack.c.b16 %v2491, %v2484
      %v2562 = vpack.c.b16 %v2492, %v2485
      %v2563 = vpack.c.b16 %v2493, %v2486
      %v2564 = vpack.c.b16 %v2494, %v2487
      %v2565 = vpack.c.b16 %v2495, %v2488
      %v2566 = vpack.c.b16 %v2496, %v2489
      %v2567 = vpack.c.b16 %v2497, %v2490
      %v2568 = vpack.c.b16 %v2505, %v2498
      %v2569 = vpack.c.b16 %v2506, %v2499
      %v2570 = vpack.c.b16 %v2507, %v2500
      %v2571 = vpack.c.b16 %v2508, %v2501
      %v2572 = vpack.c.b16 %v2509, %v2502
      %v2573 = vpack.c.b16 %v2510, %v2503
      %v2574 = vpack.c.b16 %v2511, %v2504
      %v2575 = vpack.c.b16 %v2519, %v2512
      %v2576 = vpack.c.b16 %v2520, %v2513
      %v2577 = vpack.c.b16 %v2521, %v2514
      %v2578 = vpack.c.b16 %v2522, %v2515
      %v2579 = vpack.c.b16 %v2523, %v2516
      %v2580 = vpack.c.b16 %v2524, %v2517
      %v2581 = vpack.c.b16 %v2525, %v2518
      %2638 = vmatprep.subr.bf16.mxu0 %v2576
      %2639 = vmatpush1.bf16.msra.mxu0 %v2575
      %2640 = vmatprep.subr.bf16.mxu0 %v2569
      %2641 = vmatpush1.bf16.msra.mxu0 %v2568
      %2642 = vmatprep.subr.bf16.mxu0 %v2562
      %2643 = vmatpush1.bf16.msra.mxu0 %v2561
      %2644 = vmatprep.subr.bf16.mxu0 %v2555
      %2645 = vmatpush1.bf16.msra.mxu0 %v2554
      %2646 = vmatprep.subr.bf16.mxu0 %v2548
      %2647 = vmatpush1.bf16.msra.mxu0 %v2547
      %2648 = vmatprep.subr.bf16.mxu0 %v2541
      %2649 = vmatpush1.bf16.msra.mxu0 %v2540
      %2650 = vmatprep.subr.bf16.mxu0 %v2534
      %2651 = vmatpush1.bf16.msra.mxu0 %v2533
      %2652 = vmatprep.subr.bf16.mxu0 %v2527
      %2653 = vmatpush1.bf16.msra.mxu0 %v2526
      %2654 = vmatprep.subr.bf16.mxu0 0
      %2655 = vmatpush2.bf16.msra.mxu0 0
      %2656 = vmatprep.subr.bf16.mxu0 0
      %2657 = vmatpush2.bf16.msra.mxu0 0
      %2658 = vmatprep.subr.bf16.mxu0 0
      %2659 = vmatpush2.bf16.msra.mxu0 0
      %2660 = vmatprep.subr.bf16.mxu0 0
      %2661 = vmatpush2.bf16.msra.mxu0 0
      %2662 = vmatprep.subr.bf16.mxu0 0
      %2663 = vmatpush2.bf16.msra.mxu0 0
      %2664 = vmatprep.subr.bf16.mxu0 0
      %2665 = vmatpush2.bf16.msra.mxu0 0
      %2666 = vmatprep.subr.bf16.mxu0 0
      %2667 = vmatpush2.bf16.msra.mxu0 0
      %2668 = vmatprep.subr.bf16.mxu0 0
      %2669 = vmatpush2.bf16.msra.mxu0 0
      %2670 = vmatprep.mubr.bf16.mxu0 0
      %2671 = vmatmul.mubr.bf16.gmra.mxu0 %v2241
      %v2672 = vpop.f32.mrf.mxu0
      %v2673 = vadd.f32 %v2318, %v2672
      %v2674 = vpop.f32.mrf.mxu0
      %v2675 = vadd.f32 %v2322, %v2674
      %v2676 = vpop.f32.mrf.mxu0
      %v2677 = vadd.f32 %v2318, %v2676
      %v2678 = vpop.f32.mrf.mxu0
      %v2679 = vadd.f32 %v2322, %v2678
      %2680 = vmatprep.mubr.bf16.mxu0 0
      %2681 = vmatmul.mubr.bf16.gmra.mxu0 %v2242
      %v2682 = vpop.f32.mrf.mxu0
      %v2683 = vadd.f32 %v2318, %v2682
      %v2684 = vpop.f32.mrf.mxu0
      %v2685 = vadd.f32 %v2322, %v2684
      %v2686 = vpop.f32.mrf.mxu0
      %v2687 = vadd.f32 %v2318, %v2686
      %v2688 = vpop.f32.mrf.mxu0
      %v2689 = vadd.f32 %v2322, %v2688
      %2690 = vmatprep.mubr.bf16.mxu0 0
      %2691 = vmatmul.mubr.bf16.gmra.mxu0 %v2243
      %v2692 = vpop.f32.mrf.mxu0
      %v2693 = vadd.f32 %v2318, %v2692
      %v2694 = vpop.f32.mrf.mxu0
      %v2695 = vadd.f32 %v2322, %v2694
      %v2696 = vpop.f32.mrf.mxu0
      %v2697 = vadd.f32 %v2318, %v2696
      %v2698 = vpop.f32.mrf.mxu0
      %v2699 = vadd.f32 %v2322, %v2698
      %2700 = vmatprep.mubr.bf16.mxu0 0
      %2701 = vmatmul.mubr.bf16.gmra.mxu0 %v2244
      %v2702 = vpop.f32.mrf.mxu0
      %v2703 = vadd.f32 %v2318, %v2702
      %v2704 = vpop.f32.mrf.mxu0
      %v2705 = vadd.f32 %v2322, %v2704
      %v2706 = vpop.f32.mrf.mxu0
      %v2707 = vadd.f32 %v2318, %v2706
      %v2708 = vpop.f32.mrf.mxu0
      %v2709 = vadd.f32 %v2322, %v2708
      %2710 = vmatprep.mubr.bf16.mxu0 0
      %2711 = vmatmul.mubr.bf16.gmra.mxu0 %v2245
      %v2712 = vpop.f32.mrf.mxu0
      %v2713 = vadd.f32 %v2318, %v2712
      %v2714 = vpop.f32.mrf.mxu0
      %v2715 = vadd.f32 %v2322, %v2714
      %v2716 = vpop.f32.mrf.mxu0
      %v2717 = vadd.f32 %v2318, %v2716
      %v2718 = vpop.f32.mrf.mxu0
      %v2719 = vadd.f32 %v2322, %v2718
      %2720 = vmatprep.mubr.bf16.mxu0 0
      %2721 = vmatmul.mubr.bf16.gmra.mxu0 %v2246
      %v2722 = vpop.f32.mrf.mxu0
      %v2723 = vadd.f32 %v2318, %v2722
      %v2724 = vpop.f32.mrf.mxu0
      %v2725 = vadd.f32 %v2322, %v2724
      %v2726 = vpop.f32.mrf.mxu0
      %v2727 = vadd.f32 %v2318, %v2726
      %v2728 = vpop.f32.mrf.mxu0
      %v2729 = vadd.f32 %v2322, %v2728
      %2730 = vmatprep.mubr.bf16.mxu0 0
      %2731 = vmatmul.mubr.bf16.gmra.mxu0 %v2247
      %v2732 = vpop.f32.mrf.mxu0
      %v2733 = vadd.f32 %v2318, %v2732
      %v2734 = vpop.f32.mrf.mxu0
      %v2735 = vadd.f32 %v2322, %v2734
      %v2736 = vpop.f32.mrf.mxu0
      %v2737 = vadd.f32 %v2318, %v2736
      %v2738 = vpop.f32.mrf.mxu0
      %v2739 = vadd.f32 %v2322, %v2738
      %2740 = vmatprep.mubr.bf16.mxu0 0
      %2741 = vmatmul.mubr.bf16.gmra.mxu0 %v2248
      %v2742 = vpop.f32.mrf.mxu0
      %v2743 = vadd.f32 %v2318, %v2742
      %v2744 = vpop.f32.mrf.mxu0
      %v2745 = vadd.f32 %v2322, %v2744
      %v2746 = vpop.f32.mrf.mxu0
      %v2747 = vadd.f32 %v2318, %v2746
      %v2748 = vpop.f32.mrf.mxu0
      %v2749 = vadd.f32 %v2322, %v2748
      %2750 = vdwg.mxu0
      %2751 = vmatprep.subr.bf16.mxu0 %v2578
      %2752 = vmatpush1.bf16.msra.mxu0 %v2577
      %2753 = vmatprep.subr.bf16.mxu0 %v2571
      %2754 = vmatpush1.bf16.msra.mxu0 %v2570
      %2755 = vmatprep.subr.bf16.mxu0 %v2564
      %2756 = vmatpush1.bf16.msra.mxu0 %v2563
      %2757 = vmatprep.subr.bf16.mxu0 %v2557
      %2758 = vmatpush1.bf16.msra.mxu0 %v2556
      %2759 = vmatprep.subr.bf16.mxu0 %v2550
      %2760 = vmatpush1.bf16.msra.mxu0 %v2549
      %2761 = vmatprep.subr.bf16.mxu0 %v2543
      %2762 = vmatpush1.bf16.msra.mxu0 %v2542
      %2763 = vmatprep.subr.bf16.mxu0 %v2536
      %2764 = vmatpush1.bf16.msra.mxu0 %v2535
      %2765 = vmatprep.subr.bf16.mxu0 %v2529
      %2766 = vmatpush1.bf16.msra.mxu0 %v2528
      %2767 = vmatprep.subr.bf16.mxu0 0
      %2768 = vmatpush2.bf16.msra.mxu0 0
      %2769 = vmatprep.subr.bf16.mxu0 0
      %2770 = vmatpush2.bf16.msra.mxu0 0
      %2771 = vmatprep.subr.bf16.mxu0 0
      %2772 = vmatpush2.bf16.msra.mxu0 0
      %2773 = vmatprep.subr.bf16.mxu0 0
      %2774 = vmatpush2.bf16.msra.mxu0 0
      %2775 = vmatprep.subr.bf16.mxu0 0
      %2776 = vmatpush2.bf16.msra.mxu0 0
      %2777 = vmatprep.subr.bf16.mxu0 0
      %2778 = vmatpush2.bf16.msra.mxu0 0
      %2779 = vmatprep.subr.bf16.mxu0 0
      %2780 = vmatpush2.bf16.msra.mxu0 0
      %2781 = vmatprep.subr.bf16.mxu0 0
      %2782 = vmatpush2.bf16.msra.mxu0 0
      %2783 = vmatprep.mubr.bf16.mxu0 0
      %2784 = vmatmul.mubr.bf16.gmra.mxu0 %v2241
      %v2785 = vpop.f32.mrf.mxu0
      %v2786 = vadd.f32 %v2326, %v2785
      %v2787 = vpop.f32.mrf.mxu0
      %v2788 = vadd.f32 %v2330, %v2787
      %v2789 = vpop.f32.mrf.mxu0
      %v2790 = vadd.f32 %v2326, %v2789
      %v2791 = vpop.f32.mrf.mxu0
      %v2792 = vadd.f32 %v2330, %v2791
      %2793 = vmatprep.mubr.bf16.mxu0 0
      %2794 = vmatmul.mubr.bf16.gmra.mxu0 %v2242
      %v2795 = vpop.f32.mrf.mxu0
      %v2796 = vadd.f32 %v2326, %v2795
      %v2797 = vpop.f32.mrf.mxu0
      %v2798 = vadd.f32 %v2330, %v2797
      %v2799 = vpop.f32.mrf.mxu0
      %v2800 = vadd.f32 %v2326, %v2799
      %v2801 = vpop.f32.mrf.mxu0
      %v2802 = vadd.f32 %v2330, %v2801
      %2803 = vmatprep.mubr.bf16.mxu0 0
      %2804 = vmatmul.mubr.bf16.gmra.mxu0 %v2243
      %v2805 = vpop.f32.mrf.mxu0
      %v2806 = vadd.f32 %v2326, %v2805
      %v2807 = vpop.f32.mrf.mxu0
      %v2808 = vadd.f32 %v2330, %v2807
      %v2809 = vpop.f32.mrf.mxu0
      %v2810 = vadd.f32 %v2326, %v2809
      %v2811 = vpop.f32.mrf.mxu0
      %v2812 = vadd.f32 %v2330, %v2811
      %2813 = vmatprep.mubr.bf16.mxu0 0
      %2814 = vmatmul.mubr.bf16.gmra.mxu0 %v2244
      %v2815 = vpop.f32.mrf.mxu0
      %v2816 = vadd.f32 %v2326, %v2815
      %v2817 = vpop.f32.mrf.mxu0
      %v2818 = vadd.f32 %v2330, %v2817
      %v2819 = vpop.f32.mrf.mxu0
      %v2820 = vadd.f32 %v2326, %v2819
      %v2821 = vpop.f32.mrf.mxu0
      %v2822 = vadd.f32 %v2330, %v2821
      %2823 = vmatprep.mubr.bf16.mxu0 0
      %2824 = vmatmul.mubr.bf16.gmra.mxu0 %v2245
      %v2825 = vpop.f32.mrf.mxu0
      %v2826 = vadd.f32 %v2326, %v2825
      %v2827 = vpop.f32.mrf.mxu0
      %v2828 = vadd.f32 %v2330, %v2827
      %v2829 = vpop.f32.mrf.mxu0
      %v2830 = vadd.f32 %v2326, %v2829
      %v2831 = vpop.f32.mrf.mxu0
      %v2832 = vadd.f32 %v2330, %v2831
      %2833 = vmatprep.mubr.bf16.mxu0 0
      %2834 = vmatmul.mubr.bf16.gmra.mxu0 %v2246
      %v2835 = vpop.f32.mrf.mxu0
      %v2836 = vadd.f32 %v2326, %v2835
      %v2837 = vpop.f32.mrf.mxu0
      %v2838 = vadd.f32 %v2330, %v2837
      %v2839 = vpop.f32.mrf.mxu0
      %v2840 = vadd.f32 %v2326, %v2839
      %v2841 = vpop.f32.mrf.mxu0
      %v2842 = vadd.f32 %v2330, %v2841
      %2843 = vmatprep.mubr.bf16.mxu0 0
      %2844 = vmatmul.mubr.bf16.gmra.mxu0 %v2247
      %v2845 = vpop.f32.mrf.mxu0
      %v2846 = vadd.f32 %v2326, %v2845
      %v2847 = vpop.f32.mrf.mxu0
      %v2848 = vadd.f32 %v2330, %v2847
      %v2849 = vpop.f32.mrf.mxu0
      %v2850 = vadd.f32 %v2326, %v2849
      %v2851 = vpop.f32.mrf.mxu0
      %v2852 = vadd.f32 %v2330, %v2851
      %2853 = vmatprep.mubr.bf16.mxu0 0
      %2854 = vmatmul.mubr.bf16.gmra.mxu0 %v2248
      %v2855 = vpop.f32.mrf.mxu0
      %v2856 = vadd.f32 %v2326, %v2855
      %v2857 = vpop.f32.mrf.mxu0
      %v2858 = vadd.f32 %v2330, %v2857
      %v2859 = vpop.f32.mrf.mxu0
      %v2860 = vadd.f32 %v2326, %v2859
      %v2861 = vpop.f32.mrf.mxu0
      %v2862 = vadd.f32 %v2330, %v2861
      %2863 = vdwg.mxu0
      %2864 = vmatprep.subr.bf16.mxu0 %v2580
      %2865 = vmatpush1.bf16.msra.mxu0 %v2579
      %2866 = vmatprep.subr.bf16.mxu0 %v2573
      %2867 = vmatpush1.bf16.msra.mxu0 %v2572
      %2868 = vmatprep.subr.bf16.mxu0 %v2566
      %2869 = vmatpush1.bf16.msra.mxu0 %v2565
      %2870 = vmatprep.subr.bf16.mxu0 %v2559
      %2871 = vmatpush1.bf16.msra.mxu0 %v2558
      %2872 = vmatprep.subr.bf16.mxu0 %v2552
      %2873 = vmatpush1.bf16.msra.mxu0 %v2551
      %2874 = vmatprep.subr.bf16.mxu0 %v2545
      %2875 = vmatpush1.bf16.msra.mxu0 %v2544
      %2876 = vmatprep.subr.bf16.mxu0 %v2538
      %2877 = vmatpush1.bf16.msra.mxu0 %v2537
      %2878 = vmatprep.subr.bf16.mxu0 %v2531
      %2879 = vmatpush1.bf16.msra.mxu0 %v2530
      %2880 = vmatprep.subr.bf16.mxu0 0
      %2881 = vmatpush2.bf16.msra.mxu0 0
      %2882 = vmatprep.subr.bf16.mxu0 0
      %2883 = vmatpush2.bf16.msra.mxu0 0
      %2884 = vmatprep.subr.bf16.mxu0 0
      %2885 = vmatpush2.bf16.msra.mxu0 0
      %2886 = vmatprep.subr.bf16.mxu0 0
      %2887 = vmatpush2.bf16.msra.mxu0 0
      %2888 = vmatprep.subr.bf16.mxu0 0
      %2889 = vmatpush2.bf16.msra.mxu0 0
      %2890 = vmatprep.subr.bf16.mxu0 0
      %2891 = vmatpush2.bf16.msra.mxu0 0
      %2892 = vmatprep.subr.bf16.mxu0 0
      %2893 = vmatpush2.bf16.msra.mxu0 0
      %2894 = vmatprep.subr.bf16.mxu0 0
      %2895 = vmatpush2.bf16.msra.mxu0 0
      %2896 = vmatprep.mubr.bf16.mxu0 0
      %2897 = vmatmul.mubr.bf16.gmra.mxu0 %v2241
      %v2898 = vpop.f32.mrf.mxu0
      %v2899 = vadd.f32 %v2334, %v2898
      %v2900 = vpop.f32.mrf.mxu0
      %v2901 = vadd.f32 %v2338, %v2900
      %v2902 = vpop.f32.mrf.mxu0
      %v2903 = vadd.f32 %v2334, %v2902
      %v2904 = vpop.f32.mrf.mxu0
      %v2905 = vadd.f32 %v2338, %v2904
      %2906 = vmatprep.mubr.bf16.mxu0 0
      %2907 = vmatmul.mubr.bf16.gmra.mxu0 %v2242
      %v2908 = vpop.f32.mrf.mxu0
      %v2909 = vadd.f32 %v2334, %v2908
      %v2910 = vpop.f32.mrf.mxu0
      %v2911 = vadd.f32 %v2338, %v2910
      %v2912 = vpop.f32.mrf.mxu0
      %v2913 = vadd.f32 %v2334, %v2912
      %v2914 = vpop.f32.mrf.mxu0
      %v2915 = vadd.f32 %v2338, %v2914
      %2916 = vmatprep.mubr.bf16.mxu0 0
      %2917 = vmatmul.mubr.bf16.gmra.mxu0 %v2243
      %v2918 = vpop.f32.mrf.mxu0
      %v2919 = vadd.f32 %v2334, %v2918
      %v2920 = vpop.f32.mrf.mxu0
      %v2921 = vadd.f32 %v2338, %v2920
      %v2922 = vpop.f32.mrf.mxu0
      %v2923 = vadd.f32 %v2334, %v2922
      %v2924 = vpop.f32.mrf.mxu0
      %v2925 = vadd.f32 %v2338, %v2924
      %2926 = vmatprep.mubr.bf16.mxu0 0
      %2927 = vmatmul.mubr.bf16.gmra.mxu0 %v2244
      %v2928 = vpop.f32.mrf.mxu0
      %v2929 = vadd.f32 %v2334, %v2928
      %v2930 = vpop.f32.mrf.mxu0
      %v2931 = vadd.f32 %v2338, %v2930
      %v2932 = vpop.f32.mrf.mxu0
      %v2933 = vadd.f32 %v2334, %v2932
      %v2934 = vpop.f32.mrf.mxu0
      %v2935 = vadd.f32 %v2338, %v2934
      %2936 = vmatprep.mubr.bf16.mxu0 0
      %2937 = vmatmul.mubr.bf16.gmra.mxu0 %v2245
      %v2938 = vpop.f32.mrf.mxu0
      %v2939 = vadd.f32 %v2334, %v2938
      %v2940 = vpop.f32.mrf.mxu0
      %v2941 = vadd.f32 %v2338, %v2940
      %v2942 = vpop.f32.mrf.mxu0
      %v2943 = vadd.f32 %v2334, %v2942
      %v2944 = vpop.f32.mrf.mxu0
      %v2945 = vadd.f32 %v2338, %v2944
      %2946 = vmatprep.mubr.bf16.mxu0 0
      %2947 = vmatmul.mubr.bf16.gmra.mxu0 %v2246
      %v2948 = vpop.f32.mrf.mxu0
      %v2949 = vadd.f32 %v2334, %v2948
      %v2950 = vpop.f32.mrf.mxu0
      %v2951 = vadd.f32 %v2338, %v2950
      %v2952 = vpop.f32.mrf.mxu0
      %v2953 = vadd.f32 %v2334, %v2952
      %v2954 = vpop.f32.mrf.mxu0
      %v2955 = vadd.f32 %v2338, %v2954
      %2956 = vmatprep.mubr.bf16.mxu0 0
      %2957 = vmatmul.mubr.bf16.gmra.mxu0 %v2247
      %v2958 = vpop.f32.mrf.mxu0
      %v2959 = vadd.f32 %v2334, %v2958
      %v2960 = vpop.f32.mrf.mxu0
      %v2961 = vadd.f32 %v2338, %v2960
      %v2962 = vpop.f32.mrf.mxu0
      %v2963 = vadd.f32 %v2334, %v2962
      %v2964 = vpop.f32.mrf.mxu0
      %v2965 = vadd.f32 %v2338, %v2964
      %2966 = vmatprep.mubr.bf16.mxu0 0
      %2967 = vmatmul.mubr.bf16.gmra.mxu0 %v2248
      %v2968 = vpop.f32.mrf.mxu0
      %v2969 = vadd.f32 %v2334, %v2968
      %v2970 = vpop.f32.mrf.mxu0
      %v2971 = vadd.f32 %v2338, %v2970
      %v2972 = vpop.f32.mrf.mxu0
      %v2973 = vadd.f32 %v2334, %v2972
      %v2974 = vpop.f32.mrf.mxu0
      %v2975 = vadd.f32 %v2338, %v2974
      %2976 = vdwg.mxu0
      %2977 = vmatprep.subr.bf16.mxu0 0
      %2978 = vmatpush1.bf16.msra.mxu0 %v2581
      %2979 = vmatprep.subr.bf16.mxu0 0
      %2980 = vmatpush1.bf16.msra.mxu0 %v2574
      %2981 = vmatprep.subr.bf16.mxu0 0
      %2982 = vmatpush1.bf16.msra.mxu0 %v2567
      %2983 = vmatprep.subr.bf16.mxu0 0
      %2984 = vmatpush1.bf16.msra.mxu0 %v2560
      %2985 = vmatprep.subr.bf16.mxu0 0
      %2986 = vmatpush1.bf16.msra.mxu0 %v2553
      %2987 = vmatprep.subr.bf16.mxu0 0
      %2988 = vmatpush1.bf16.msra.mxu0 %v2546
      %2989 = vmatprep.subr.bf16.mxu0 0
      %2990 = vmatpush1.bf16.msra.mxu0 %v2539
      %2991 = vmatprep.subr.bf16.mxu0 0
      %2992 = vmatpush1.bf16.msra.mxu0 %v2532
      %2993 = vmatprep.subr.bf16.mxu0 0
      %2994 = vmatpush2.bf16.msra.mxu0 0
      %2995 = vmatprep.subr.bf16.mxu0 0
      %2996 = vmatpush2.bf16.msra.mxu0 0
      %2997 = vmatprep.subr.bf16.mxu0 0
      %2998 = vmatpush2.bf16.msra.mxu0 0
      %2999 = vmatprep.subr.bf16.mxu0 0
      %3000 = vmatpush2.bf16.msra.mxu0 0
      %3001 = vmatprep.subr.bf16.mxu0 0
      %3002 = vmatpush2.bf16.msra.mxu0 0
      %3003 = vmatprep.subr.bf16.mxu0 0
      %3004 = vmatpush2.bf16.msra.mxu0 0
      %3005 = vmatprep.subr.bf16.mxu0 0
      %3006 = vmatpush2.bf16.msra.mxu0 0
      %3007 = vmatprep.subr.bf16.mxu0 0
      %3008 = vmatpush2.bf16.msra.mxu0 0
      %3009 = vmatprep.mubr.bf16.mxu0 0
      %3010 = vmatmul.mubr.bf16.gmra.mxu0 %v2241
      %v3011 = vpop.f32.mrf.mxu0
      %v3012 = vadd.f32 %v2342, %v3011
      %v3013 = vpop.f32.mrf.mxu0
      %v3014 = vpop.f32.mrf.mxu0
      %v3015 = vadd.f32 %v2342, %v3014
      %v3016 = vpop.f32.mrf.mxu0
      %3017 = vmatprep.mubr.bf16.mxu0 0
      %3018 = vmatmul.mubr.bf16.gmra.mxu0 %v2242
      %v3019 = vpop.f32.mrf.mxu0
      %v3020 = vadd.f32 %v2342, %v3019
      %v3021 = vpop.f32.mrf.mxu0
      %v3022 = vpop.f32.mrf.mxu0
      %v3023 = vadd.f32 %v2342, %v3022
      %v3024 = vpop.f32.mrf.mxu0
      %3025 = vmatprep.mubr.bf16.mxu0 0
      %3026 = vmatmul.mubr.bf16.gmra.mxu0 %v2243
      %v3027 = vpop.f32.mrf.mxu0
      %v3028 = vadd.f32 %v2342, %v3027
      %v3029 = vpop.f32.mrf.mxu0
      %v3030 = vpop.f32.mrf.mxu0
      %v3031 = vadd.f32 %v2342, %v3030
      %v3032 = vpop.f32.mrf.mxu0
      %3033 = vmatprep.mubr.bf16.mxu0 0
      %3034 = vmatmul.mubr.bf16.gmra.mxu0 %v2244
      %v3035 = vpop.f32.mrf.mxu0
      %v3036 = vadd.f32 %v2342, %v3035
      %v3037 = vpop.f32.mrf.mxu0
      %v3038 = vpop.f32.mrf.mxu0
      %v3039 = vadd.f32 %v2342, %v3038
      %v3040 = vpop.f32.mrf.mxu0
      %3041 = vmatprep.mubr.bf16.mxu0 0
      %3042 = vmatmul.mubr.bf16.gmra.mxu0 %v2245
      %v3043 = vpop.f32.mrf.mxu0
      %v3044 = vadd.f32 %v2342, %v3043
      %v3045 = vpop.f32.mrf.mxu0
      %v3046 = vpop.f32.mrf.mxu0
      %v3047 = vadd.f32 %v2342, %v3046
      %v3048 = vpop.f32.mrf.mxu0
      %3049 = vmatprep.mubr.bf16.mxu0 0
      %3050 = vmatmul.mubr.bf16.gmra.mxu0 %v2246
      %v3051 = vpop.f32.mrf.mxu0
      %v3052 = vadd.f32 %v2342, %v3051
      %v3053 = vpop.f32.mrf.mxu0
      %v3054 = vpop.f32.mrf.mxu0
      %v3055 = vadd.f32 %v2342, %v3054
      %v3056 = vpop.f32.mrf.mxu0
      %3057 = vmatprep.mubr.bf16.mxu0 0
      %3058 = vmatmul.mubr.bf16.gmra.mxu0 %v2247
      %v3059 = vpop.f32.mrf.mxu0
      %v3060 = vadd.f32 %v2342, %v3059
      %v3061 = vpop.f32.mrf.mxu0
      %v3062 = vpop.f32.mrf.mxu0
      %v3063 = vadd.f32 %v2342, %v3062
      %v3064 = vpop.f32.mrf.mxu0
      %3065 = vmatprep.mubr.bf16.mxu0 0
      %3066 = vmatmul.mubr.bf16.gmra.mxu0 %v2248
      %v3067 = vpop.f32.mrf.mxu0
      %v3068 = vadd.f32 %v2342, %v3067
      %v3069 = vpop.f32.mrf.mxu0
      %v3070 = vpop.f32.mrf.mxu0
      %v3071 = vadd.f32 %v2342, %v3070
      %v3072 = vpop.f32.mrf.mxu0
      %3073 = vdwg.mxu0
      %v3074 = vsub.f32 0.0, %v2673
      %v3075 = vsub.f32 0.0, %v2675
      %v3076 = vsub.f32 0.0, %v2786
      %v3077 = vsub.f32 0.0, %v2788
      %v3078 = vsub.f32 0.0, %v2899
      %v3079 = vsub.f32 0.0, %v2901
      %v3080 = vsub.f32 0.0, %v3012
      %v3081 = vsub.f32 0.0, %v2677
      %v3082 = vsub.f32 0.0, %v2679
      %v3083 = vsub.f32 0.0, %v2790
      %v3084 = vsub.f32 0.0, %v2792
      %v3085 = vsub.f32 0.0, %v2903
      %v3086 = vsub.f32 0.0, %v2905
      %v3087 = vsub.f32 0.0, %v3015
      %v3088 = vsub.f32 0.0, %v2683
      %v3089 = vsub.f32 0.0, %v2685
      %v3090 = vsub.f32 0.0, %v2796
      %v3091 = vsub.f32 0.0, %v2798
      %v3092 = vsub.f32 0.0, %v2909
      %v3093 = vsub.f32 0.0, %v2911
      %v3094 = vsub.f32 0.0, %v3020
      %v3095 = vsub.f32 0.0, %v2687
      %v3096 = vsub.f32 0.0, %v2689
      %v3097 = vsub.f32 0.0, %v2800
      %v3098 = vsub.f32 0.0, %v2802
      %v3099 = vsub.f32 0.0, %v2913
      %v3100 = vsub.f32 0.0, %v2915
      %v3101 = vsub.f32 0.0, %v3023
      %v3102 = vsub.f32 0.0, %v2693
      %v3103 = vsub.f32 0.0, %v2695
      %v3104 = vsub.f32 0.0, %v2806
      %v3105 = vsub.f32 0.0, %v2808
      %v3106 = vsub.f32 0.0, %v2919
      %v3107 = vsub.f32 0.0, %v2921
      %v3108 = vsub.f32 0.0, %v3028
      %v3109 = vsub.f32 0.0, %v2697
      %v3110 = vsub.f32 0.0, %v2699
      %v3111 = vsub.f32 0.0, %v2810
      %v3112 = vsub.f32 0.0, %v2812
      %v3113 = vsub.f32 0.0, %v2923
      %v3114 = vsub.f32 0.0, %v2925
      %v3115 = vsub.f32 0.0, %v3031
      %v3116 = vsub.f32 0.0, %v2703
      %v3117 = vsub.f32 0.0, %v2705
      %v3118 = vsub.f32 0.0, %v2816
      %v3119 = vsub.f32 0.0, %v2818
      %v3120 = vsub.f32 0.0, %v2929
      %v3121 = vsub.f32 0.0, %v2931
      %v3122 = vsub.f32 0.0, %v3036
      %v3123 = vsub.f32 0.0, %v2707
      %v3124 = vsub.f32 0.0, %v2709
      %v3125 = vsub.f32 0.0, %v2820
      %v3126 = vsub.f32 0.0, %v2822
      %v3127 = vsub.f32 0.0, %v2933
      %v3128 = vsub.f32 0.0, %v2935
      %v3129 = vsub.f32 0.0, %v3039
      %v3130 = vsub.f32 0.0, %v2713
      %v3131 = vsub.f32 0.0, %v2715
      %v3132 = vsub.f32 0.0, %v2826
      %v3133 = vsub.f32 0.0, %v2828
      %v3134 = vsub.f32 0.0, %v2939
      %v3135 = vsub.f32 0.0, %v2941
      %v3136 = vsub.f32 0.0, %v3044
      %v3137 = vsub.f32 0.0, %v2717
      %v3138 = vsub.f32 0.0, %v2719
      %v3139 = vsub.f32 0.0, %v2830
      %v3140 = vsub.f32 0.0, %v2832
      %v3141 = vsub.f32 0.0, %v2943
      %v3142 = vsub.f32 0.0, %v2945
      %v3143 = vsub.f32 0.0, %v3047
      %v3144 = vsub.f32 0.0, %v2723
      %v3145 = vsub.f32 0.0, %v2725
      %v3146 = vsub.f32 0.0, %v2836
      %v3147 = vsub.f32 0.0, %v2838
      %v3148 = vsub.f32 0.0, %v2949
      %v3149 = vsub.f32 0.0, %v2951
      %v3150 = vsub.f32 0.0, %v3052
      %v3151 = vsub.f32 0.0, %v2727
      %v3152 = vsub.f32 0.0, %v2729
      %v3153 = vsub.f32 0.0, %v2840
      %v3154 = vsub.f32 0.0, %v2842
      %v3155 = vsub.f32 0.0, %v2953
      %v3156 = vsub.f32 0.0, %v2955
      %v3157 = vsub.f32 0.0, %v3055
      %v3158 = vsub.f32 0.0, %v2733
      %v3159 = vsub.f32 0.0, %v2735
      %v3160 = vsub.f32 0.0, %v2846
      %v3161 = vsub.f32 0.0, %v2848
      %v3162 = vsub.f32 0.0, %v2959
      %v3163 = vsub.f32 0.0, %v2961
      %v3164 = vsub.f32 0.0, %v3060
      %v3165 = vsub.f32 0.0, %v2737
      %v3166 = vsub.f32 0.0, %v2739
      %v3167 = vsub.f32 0.0, %v2850
      %v3168 = vsub.f32 0.0, %v2852
      %v3169 = vsub.f32 0.0, %v2963
      %v3170 = vsub.f32 0.0, %v2965
      %v3171 = vsub.f32 0.0, %v3063
      %v3172 = vsub.f32 0.0, %v2743
      %v3173 = vsub.f32 0.0, %v2745
      %v3174 = vsub.f32 0.0, %v2856
      %v3175 = vsub.f32 0.0, %v2858
      %v3176 = vsub.f32 0.0, %v2969
      %v3177 = vsub.f32 0.0, %v2971
      %v3178 = vsub.f32 0.0, %v3068
      %v3179 = vsub.f32 0.0, %v2747
      %v3180 = vsub.f32 0.0, %v2749
      %v3181 = vsub.f32 0.0, %v2860
      %v3182 = vsub.f32 0.0, %v2862
      %v3183 = vsub.f32 0.0, %v2973
      %v3184 = vsub.f32 0.0, %v2975
      %v3185 = vsub.f32 0.0, %v3071
      %v3186 = vmul.f32 %v3074, 1.442695
      %v3187 = vpow.pop %v3186
      %v3188 = vmul.f32 %v3075, 1.442695
      %v3189 = vpow.pop %v3188
      %v3190 = vmul.f32 %v3076, 1.442695
      %v3191 = vpow.pop %v3190
      %v3192 = vmul.f32 %v3077, 1.442695
      %v3193 = vpow.pop %v3192
      %v3194 = vmul.f32 %v3078, 1.442695
      %v3195 = vpow.pop %v3194
      %v3196 = vmul.f32 %v3079, 1.442695
      %v3197 = vpow.pop %v3196
      %v3198 = vmul.f32 %v3080, 1.442695
      %v3199 = vpow.pop %v3198
      %v3200 = vmul.f32 %v3081, 1.442695
      %v3201 = vpow.pop %v3200
      %v3202 = vmul.f32 %v3082, 1.442695
      %v3203 = vpow.pop %v3202
      %v3204 = vmul.f32 %v3083, 1.442695
      %v3205 = vpow.pop %v3204
      %v3206 = vmul.f32 %v3084, 1.442695
      %v3207 = vpow.pop %v3206
      %v3208 = vmul.f32 %v3085, 1.442695
      %v3209 = vpow.pop %v3208
      %v3210 = vmul.f32 %v3086, 1.442695
      %v3211 = vpow.pop %v3210
      %v3212 = vmul.f32 %v3087, 1.442695
      %v3213 = vpow.pop %v3212
      %v3214 = vmul.f32 %v3088, 1.442695
      %v3215 = vpow.pop %v3214
      %v3216 = vmul.f32 %v3089, 1.442695
      %v3217 = vpow.pop %v3216
      %v3218 = vmul.f32 %v3090, 1.442695
      %v3219 = vpow.pop %v3218
      %v3220 = vmul.f32 %v3091, 1.442695
      %v3221 = vpow.pop %v3220
      %v3222 = vmul.f32 %v3092, 1.442695
      %v3223 = vpow.pop %v3222
      %v3224 = vmul.f32 %v3093, 1.442695
      %v3225 = vpow.pop %v3224
      %v3226 = vmul.f32 %v3094, 1.442695
      %v3227 = vpow.pop %v3226
      %v3228 = vmul.f32 %v3095, 1.442695
      %v3229 = vpow.pop %v3228
      %v3230 = vmul.f32 %v3096, 1.442695
      %v3231 = vpow.pop %v3230
      %v3232 = vmul.f32 %v3097, 1.442695
      %v3233 = vpow.pop %v3232
      %v3234 = vmul.f32 %v3098, 1.442695
      %v3235 = vpow.pop %v3234
      %v3236 = vmul.f32 %v3099, 1.442695
      %v3237 = vpow.pop %v3236
      %v3238 = vmul.f32 %v3100, 1.442695
      %v3239 = vpow.pop %v3238
      %v3240 = vmul.f32 %v3101, 1.442695
      %v3241 = vpow.pop %v3240
      %v3242 = vmul.f32 %v3102, 1.442695
      %v3243 = vpow.pop %v3242
      %v3244 = vmul.f32 %v3103, 1.442695
      %v3245 = vpow.pop %v3244
      %v3246 = vmul.f32 %v3104, 1.442695
      %v3247 = vpow.pop %v3246
      %v3248 = vmul.f32 %v3105, 1.442695
      %v3249 = vpow.pop %v3248
      %v3250 = vmul.f32 %v3106, 1.442695
      %v3251 = vpow.pop %v3250
      %v3252 = vmul.f32 %v3107, 1.442695
      %v3253 = vpow.pop %v3252
      %v3254 = vmul.f32 %v3108, 1.442695
      %v3255 = vpow.pop %v3254
      %v3256 = vmul.f32 %v3109, 1.442695
      %v3257 = vpow.pop %v3256
      %v3258 = vmul.f32 %v3110, 1.442695
      %v3259 = vpow.pop %v3258
      %v3260 = vmul.f32 %v3111, 1.442695
      %v3261 = vpow.pop %v3260
      %v3262 = vmul.f32 %v3112, 1.442695
      %v3263 = vpow.pop %v3262
      %v3264 = vmul.f32 %v3113, 1.442695
      %v3265 = vpow.pop %v3264
      %v3266 = vmul.f32 %v3114, 1.442695
      %v3267 = vpow.pop %v3266
      %v3268 = vmul.f32 %v3115, 1.442695
      %v3269 = vpow.pop %v3268
      %v3270 = vmul.f32 %v3116, 1.442695
      %v3271 = vpow.pop %v3270
      %v3272 = vmul.f32 %v3117, 1.442695
      %v3273 = vpow.pop %v3272
      %v3274 = vmul.f32 %v3118, 1.442695
      %v3275 = vpow.pop %v3274
      %v3276 = vmul.f32 %v3119, 1.442695
      %v3277 = vpow.pop %v3276
      %v3278 = vmul.f32 %v3120, 1.442695
      %v3279 = vpow.pop %v3278
      %v3280 = vmul.f32 %v3121, 1.442695
      %v3281 = vpow.pop %v3280
      %v3282 = vmul.f32 %v3122, 1.442695
      %v3283 = vpow.pop %v3282
      %v3284 = vmul.f32 %v3123, 1.442695
      %v3285 = vpow.pop %v3284
      %v3286 = vmul.f32 %v3124, 1.442695
      %v3287 = vpow.pop %v3286
      %v3288 = vmul.f32 %v3125, 1.442695
      %v3289 = vpow.pop %v3288
      %v3290 = vmul.f32 %v3126, 1.442695
      %v3291 = vpow.pop %v3290
      %v3292 = vmul.f32 %v3127, 1.442695
      %v3293 = vpow.pop %v3292
      %v3294 = vmul.f32 %v3128, 1.442695
      %v3295 = vpow.pop %v3294
      %v3296 = vmul.f32 %v3129, 1.442695
      %v3297 = vpow.pop %v3296
      %v3298 = vmul.f32 %v3130, 1.442695
      %v3299 = vpow.pop %v3298
      %v3300 = vmul.f32 %v3131, 1.442695
      %v3301 = vpow.pop %v3300
      %v3302 = vmul.f32 %v3132, 1.442695
      %v3303 = vpow.pop %v3302
      %v3304 = vmul.f32 %v3133, 1.442695
      %v3305 = vpow.pop %v3304
      %v3306 = vmul.f32 %v3134, 1.442695
      %v3307 = vpow.pop %v3306
      %v3308 = vmul.f32 %v3135, 1.442695
      %v3309 = vpow.pop %v3308
      %v3310 = vmul.f32 %v3136, 1.442695
      %v3311 = vpow.pop %v3310
      %v3312 = vmul.f32 %v3137, 1.442695
      %v3313 = vpow.pop %v3312
      %v3314 = vmul.f32 %v3138, 1.442695
      %v3315 = vpow.pop %v3314
      %v3316 = vmul.f32 %v3139, 1.442695
      %v3317 = vpow.pop %v3316
      %v3318 = vmul.f32 %v3140, 1.442695
      %v3319 = vpow.pop %v3318
      %v3320 = vmul.f32 %v3141, 1.442695
      %v3321 = vpow.pop %v3320
      %v3322 = vmul.f32 %v3142, 1.442695
      %v3323 = vpow.pop %v3322
      %v3324 = vmul.f32 %v3143, 1.442695
      %v3325 = vpow.pop %v3324
      %v3326 = vmul.f32 %v3144, 1.442695
      %v3327 = vpow.pop %v3326
      %v3328 = vmul.f32 %v3145, 1.442695
      %v3329 = vpow.pop %v3328
      %v3330 = vmul.f32 %v3146, 1.442695
      %v3331 = vpow.pop %v3330
      %v3332 = vmul.f32 %v3147, 1.442695
      %v3333 = vpow.pop %v3332
      %v3334 = vmul.f32 %v3148, 1.442695
      %v3335 = vpow.pop %v3334
      %v3336 = vmul.f32 %v3149, 1.442695
      %v3337 = vpow.pop %v3336
      %v3338 = vmul.f32 %v3150, 1.442695
      %v3339 = vpow.pop %v3338
      %v3340 = vmul.f32 %v3151, 1.442695
      %v3341 = vpow.pop %v3340
      %v3342 = vmul.f32 %v3152, 1.442695
      %v3343 = vpow.pop %v3342
      %v3344 = vmul.f32 %v3153, 1.442695
      %v3345 = vpow.pop %v3344
      %v3346 = vmul.f32 %v3154, 1.442695
      %v3347 = vpow.pop %v3346
      %v3348 = vmul.f32 %v3155, 1.442695
      %v3349 = vpow.pop %v3348
      %v3350 = vmul.f32 %v3156, 1.442695
      %v3351 = vpow.pop %v3350
      %v3352 = vmul.f32 %v3157, 1.442695
      %v3353 = vpow.pop %v3352
      %v3354 = vmul.f32 %v3158, 1.442695
      %v3355 = vpow.pop %v3354
      %v3356 = vmul.f32 %v3159, 1.442695
      %v3357 = vpow.pop %v3356
      %v3358 = vmul.f32 %v3160, 1.442695
      %v3359 = vpow.pop %v3358
      %v3360 = vmul.f32 %v3161, 1.442695
      %v3361 = vpow.pop %v3360
      %v3362 = vmul.f32 %v3162, 1.442695
      %v3363 = vpow.pop %v3362
      %v3364 = vmul.f32 %v3163, 1.442695
      %v3365 = vpow.pop %v3364
      %v3366 = vmul.f32 %v3164, 1.442695
      %v3367 = vpow.pop %v3366
      %v3368 = vmul.f32 %v3165, 1.442695
      %v3369 = vpow.pop %v3368
      %v3370 = vmul.f32 %v3166, 1.442695
      %v3371 = vpow.pop %v3370
      %v3372 = vmul.f32 %v3167, 1.442695
      %v3373 = vpow.pop %v3372
      %v3374 = vmul.f32 %v3168, 1.442695
      %v3375 = vpow.pop %v3374
      %v3376 = vmul.f32 %v3169, 1.442695
      %v3377 = vpow.pop %v3376
      %v3378 = vmul.f32 %v3170, 1.442695
      %v3379 = vpow.pop %v3378
      %v3380 = vmul.f32 %v3171, 1.442695
      %v3381 = vpow.pop %v3380
      %v3382 = vmul.f32 %v3172, 1.442695
      %v3383 = vpow.pop %v3382
      %v3384 = vmul.f32 %v3173, 1.442695
      %v3385 = vpow.pop %v3384
      %v3386 = vmul.f32 %v3174, 1.442695
      %v3387 = vpow.pop %v3386
      %v3388 = vmul.f32 %v3175, 1.442695
      %v3389 = vpow.pop %v3388
      %v3390 = vmul.f32 %v3176, 1.442695
      %v3391 = vpow.pop %v3390
      %v3392 = vmul.f32 %v3177, 1.442695
      %v3393 = vpow.pop %v3392
      %v3394 = vmul.f32 %v3178, 1.442695
      %v3395 = vpow.pop %v3394
      %v3396 = vmul.f32 %v3179, 1.442695
      %v3397 = vpow.pop %v3396
      %v3398 = vmul.f32 %v3180, 1.442695
      %v3399 = vpow.pop %v3398
      %v3400 = vmul.f32 %v3181, 1.442695
      %v3401 = vpow.pop %v3400
      %v3402 = vmul.f32 %v3182, 1.442695
      %v3403 = vpow.pop %v3402
      %v3404 = vmul.f32 %v3183, 1.442695
      %v3405 = vpow.pop %v3404
      %v3406 = vmul.f32 %v3184, 1.442695
      %v3407 = vpow.pop %v3406
      %v3408 = vmul.f32 %v3185, 1.442695
      %v3409 = vpow.pop %v3408
      %v3410 = vadd.f32 %v3187, 1.0
      %v3411 = vadd.f32 %v3189, 1.0
      %v3412 = vadd.f32 %v3191, 1.0
      %v3413 = vadd.f32 %v3193, 1.0
      %v3414 = vadd.f32 %v3195, 1.0
      %v3415 = vadd.f32 %v3197, 1.0
      %v3416 = vadd.f32 %v3199, 1.0
      %v3417 = vadd.f32 %v3201, 1.0
      %v3418 = vadd.f32 %v3203, 1.0
      %v3419 = vadd.f32 %v3205, 1.0
      %v3420 = vadd.f32 %v3207, 1.0
      %v3421 = vadd.f32 %v3209, 1.0
      %v3422 = vadd.f32 %v3211, 1.0
      %v3423 = vadd.f32 %v3213, 1.0
      %v3424 = vadd.f32 %v3215, 1.0
      %v3425 = vadd.f32 %v3217, 1.0
      %v3426 = vadd.f32 %v3219, 1.0
      %v3427 = vadd.f32 %v3221, 1.0
      %v3428 = vadd.f32 %v3223, 1.0
      %v3429 = vadd.f32 %v3225, 1.0
      %v3430 = vadd.f32 %v3227, 1.0
      %v3431 = vadd.f32 %v3229, 1.0
      %v3432 = vadd.f32 %v3231, 1.0
      %v3433 = vadd.f32 %v3233, 1.0
      %v3434 = vadd.f32 %v3235, 1.0
      %v3435 = vadd.f32 %v3237, 1.0
      %v3436 = vadd.f32 %v3239, 1.0
      %v3437 = vadd.f32 %v3241, 1.0
      %v3438 = vadd.f32 %v3243, 1.0
      %v3439 = vadd.f32 %v3245, 1.0
      %v3440 = vadd.f32 %v3247, 1.0
      %v3441 = vadd.f32 %v3249, 1.0
      %v3442 = vadd.f32 %v3251, 1.0
      %v3443 = vadd.f32 %v3253, 1.0
      %v3444 = vadd.f32 %v3255, 1.0
      %v3445 = vadd.f32 %v3257, 1.0
      %v3446 = vadd.f32 %v3259, 1.0
      %v3447 = vadd.f32 %v3261, 1.0
      %v3448 = vadd.f32 %v3263, 1.0
      %v3449 = vadd.f32 %v3265, 1.0
      %v3450 = vadd.f32 %v3267, 1.0
      %v3451 = vadd.f32 %v3269, 1.0
      %v3452 = vadd.f32 %v3271, 1.0
      %v3453 = vadd.f32 %v3273, 1.0
      %v3454 = vadd.f32 %v3275, 1.0
      %v3455 = vadd.f32 %v3277, 1.0
      %v3456 = vadd.f32 %v3279, 1.0
      %v3457 = vadd.f32 %v3281, 1.0
      %v3458 = vadd.f32 %v3283, 1.0
      %v3459 = vadd.f32 %v3285, 1.0
      %v3460 = vadd.f32 %v3287, 1.0
      %v3461 = vadd.f32 %v3289, 1.0
      %v3462 = vadd.f32 %v3291, 1.0
      %v3463 = vadd.f32 %v3293, 1.0
      %v3464 = vadd.f32 %v3295, 1.0
      %v3465 = vadd.f32 %v3297, 1.0
      %v3466 = vadd.f32 %v3299, 1.0
      %v3467 = vadd.f32 %v3301, 1.0
      %v3468 = vadd.f32 %v3303, 1.0
      %v3469 = vadd.f32 %v3305, 1.0
      %v3470 = vadd.f32 %v3307, 1.0
      %v3471 = vadd.f32 %v3309, 1.0
      %v3472 = vadd.f32 %v3311, 1.0
      %v3473 = vadd.f32 %v3313, 1.0
      %v3474 = vadd.f32 %v3315, 1.0
      %v3475 = vadd.f32 %v3317, 1.0
      %v3476 = vadd.f32 %v3319, 1.0
      %v3477 = vadd.f32 %v3321, 1.0
      %v3478 = vadd.f32 %v3323, 1.0
      %v3479 = vadd.f32 %v3325, 1.0
      %v3480 = vadd.f32 %v3327, 1.0
      %v3481 = vadd.f32 %v3329, 1.0
      %v3482 = vadd.f32 %v3331, 1.0
      %v3483 = vadd.f32 %v3333, 1.0
      %v3484 = vadd.f32 %v3335, 1.0
      %v3485 = vadd.f32 %v3337, 1.0
      %v3486 = vadd.f32 %v3339, 1.0
      %v3487 = vadd.f32 %v3341, 1.0
      %v3488 = vadd.f32 %v3343, 1.0
      %v3489 = vadd.f32 %v3345, 1.0
      %v3490 = vadd.f32 %v3347, 1.0
      %v3491 = vadd.f32 %v3349, 1.0
      %v3492 = vadd.f32 %v3351, 1.0
      %v3493 = vadd.f32 %v3353, 1.0
      %v3494 = vadd.f32 %v3355, 1.0
      %v3495 = vadd.f32 %v3357, 1.0
      %v3496 = vadd.f32 %v3359, 1.0
      %v3497 = vadd.f32 %v3361, 1.0
      %v3498 = vadd.f32 %v3363, 1.0
      %v3499 = vadd.f32 %v3365, 1.0
      %v3500 = vadd.f32 %v3367, 1.0
      %v3501 = vadd.f32 %v3369, 1.0
      %v3502 = vadd.f32 %v3371, 1.0
      %v3503 = vadd.f32 %v3373, 1.0
      %v3504 = vadd.f32 %v3375, 1.0
      %v3505 = vadd.f32 %v3377, 1.0
      %v3506 = vadd.f32 %v3379, 1.0
      %v3507 = vadd.f32 %v3381, 1.0
      %v3508 = vadd.f32 %v3383, 1.0
      %v3509 = vadd.f32 %v3385, 1.0
      %v3510 = vadd.f32 %v3387, 1.0
      %v3511 = vadd.f32 %v3389, 1.0
      %v3512 = vadd.f32 %v3391, 1.0
      %v3513 = vadd.f32 %v3393, 1.0
      %v3514 = vadd.f32 %v3395, 1.0
      %v3515 = vadd.f32 %v3397, 1.0
      %v3516 = vadd.f32 %v3399, 1.0
      %v3517 = vadd.f32 %v3401, 1.0
      %v3518 = vadd.f32 %v3403, 1.0
      %v3519 = vadd.f32 %v3405, 1.0
      %v3520 = vadd.f32 %v3407, 1.0
      %v3521 = vadd.f32 %v3409, 1.0
      %v3522 = vrcp.pop %v3410
      %v3523 = vrcp.pop %v3411
      %v3524 = vrcp.pop %v3412
      %v3525 = vrcp.pop %v3413
      %v3526 = vrcp.pop %v3414
      %v3527 = vrcp.pop %v3415
      %v3528 = vrcp.pop %v3416
      %v3529 = vrcp.pop %v3417
      %v3530 = vrcp.pop %v3418
      %v3531 = vrcp.pop %v3419
      %v3532 = vrcp.pop %v3420
      %v3533 = vrcp.pop %v3421
      %v3534 = vrcp.pop %v3422
      %v3535 = vrcp.pop %v3423
      %v3536 = vrcp.pop %v3424
      %v3537 = vrcp.pop %v3425
      %v3538 = vrcp.pop %v3426
      %v3539 = vrcp.pop %v3427
      %v3540 = vrcp.pop %v3428
      %v3541 = vrcp.pop %v3429
      %v3542 = vrcp.pop %v3430
      %v3543 = vrcp.pop %v3431
      %v3544 = vrcp.pop %v3432
      %v3545 = vrcp.pop %v3433
      %v3546 = vrcp.pop %v3434
      %v3547 = vrcp.pop %v3435
      %v3548 = vrcp.pop %v3436
      %v3549 = vrcp.pop %v3437
      %v3550 = vrcp.pop %v3438
      %v3551 = vrcp.pop %v3439
      %v3552 = vrcp.pop %v3440
      %v3553 = vrcp.pop %v3441
      %v3554 = vrcp.pop %v3442
      %v3555 = vrcp.pop %v3443
      %v3556 = vrcp.pop %v3444
      %v3557 = vrcp.pop %v3445
      %v3558 = vrcp.pop %v3446
      %v3559 = vrcp.pop %v3447
      %v3560 = vrcp.pop %v3448
      %v3561 = vrcp.pop %v3449
      %v3562 = vrcp.pop %v3450
      %v3563 = vrcp.pop %v3451
      %v3564 = vrcp.pop %v3452
      %v3565 = vrcp.pop %v3453
      %v3566 = vrcp.pop %v3454
      %v3567 = vrcp.pop %v3455
      %v3568 = vrcp.pop %v3456
      %v3569 = vrcp.pop %v3457
      %v3570 = vrcp.pop %v3458
      %v3571 = vrcp.pop %v3459
      %v3572 = vrcp.pop %v3460
      %v3573 = vrcp.pop %v3461
      %v3574 = vrcp.pop %v3462
      %v3575 = vrcp.pop %v3463
      %v3576 = vrcp.pop %v3464
      %v3577 = vrcp.pop %v3465
      %v3578 = vrcp.pop %v3466
      %v3579 = vrcp.pop %v3467
      %v3580 = vrcp.pop %v3468
      %v3581 = vrcp.pop %v3469
      %v3582 = vrcp.pop %v3470
      %v3583 = vrcp.pop %v3471
      %v3584 = vrcp.pop %v3472
      %v3585 = vrcp.pop %v3473
      %v3586 = vrcp.pop %v3474
      %v3587 = vrcp.pop %v3475
      %v3588 = vrcp.pop %v3476
      %v3589 = vrcp.pop %v3477
      %v3590 = vrcp.pop %v3478
      %v3591 = vrcp.pop %v3479
      %v3592 = vrcp.pop %v3480
      %v3593 = vrcp.pop %v3481
      %v3594 = vrcp.pop %v3482
      %v3595 = vrcp.pop %v3483
      %v3596 = vrcp.pop %v3484
      %v3597 = vrcp.pop %v3485
      %v3598 = vrcp.pop %v3486
      %v3599 = vrcp.pop %v3487
      %v3600 = vrcp.pop %v3488
      %v3601 = vrcp.pop %v3489
      %v3602 = vrcp.pop %v3490
      %v3603 = vrcp.pop %v3491
      %v3604 = vrcp.pop %v3492
      %v3605 = vrcp.pop %v3493
      %v3606 = vrcp.pop %v3494
      %v3607 = vrcp.pop %v3495
      %v3608 = vrcp.pop %v3496
      %v3609 = vrcp.pop %v3497
      %v3610 = vrcp.pop %v3498
      %v3611 = vrcp.pop %v3499
      %v3612 = vrcp.pop %v3500
      %v3613 = vrcp.pop %v3501
      %v3614 = vrcp.pop %v3502
      %v3615 = vrcp.pop %v3503
      %v3616 = vrcp.pop %v3504
      %v3617 = vrcp.pop %v3505
      %v3618 = vrcp.pop %v3506
      %v3619 = vrcp.pop %v3507
      %v3620 = vrcp.pop %v3508
      %v3621 = vrcp.pop %v3509
      %v3622 = vrcp.pop %v3510
      %v3623 = vrcp.pop %v3511
      %v3624 = vrcp.pop %v3512
      %v3625 = vrcp.pop %v3513
      %v3626 = vrcp.pop %v3514
      %v3627 = vrcp.pop %v3515
      %v3628 = vrcp.pop %v3516
      %v3629 = vrcp.pop %v3517
      %v3630 = vrcp.pop %v3518
      %v3631 = vrcp.pop %v3519
      %v3632 = vrcp.pop %v3520
      %v3633 = vrcp.pop %v3521
      %v3634 = vpack.c.bf16 %v3529, %v3522
      %v3635 = vpack.c.bf16 %v3530, %v3523
      %v3636 = vpack.c.bf16 %v3531, %v3524
      %v3637 = vpack.c.bf16 %v3532, %v3525
      %v3638 = vpack.c.bf16 %v3533, %v3526
      %v3639 = vpack.c.bf16 %v3534, %v3527
      %v3640 = vpack.c.bf16 %v3535, %v3528
      %v3641 = vpack.c.bf16 %v3543, %v3536
      %v3642 = vpack.c.bf16 %v3544, %v3537
      %v3643 = vpack.c.bf16 %v3545, %v3538
      %v3644 = vpack.c.bf16 %v3546, %v3539
      %v3645 = vpack.c.bf16 %v3547, %v3540
      %v3646 = vpack.c.bf16 %v3548, %v3541
      %v3647 = vpack.c.bf16 %v3549, %v3542
      %v3648 = vpack.c.bf16 %v3557, %v3550
      %v3649 = vpack.c.bf16 %v3558, %v3551
      %v3650 = vpack.c.bf16 %v3559, %v3552
      %v3651 = vpack.c.bf16 %v3560, %v3553
      %v3652 = vpack.c.bf16 %v3561, %v3554
      %v3653 = vpack.c.bf16 %v3562, %v3555
      %v3654 = vpack.c.bf16 %v3563, %v3556
      %v3655 = vpack.c.bf16 %v3571, %v3564
      %v3656 = vpack.c.bf16 %v3572, %v3565
      %v3657 = vpack.c.bf16 %v3573, %v3566
      %v3658 = vpack.c.bf16 %v3574, %v3567
      %v3659 = vpack.c.bf16 %v3575, %v3568
      %v3660 = vpack.c.bf16 %v3576, %v3569
      %v3661 = vpack.c.bf16 %v3577, %v3570
      %v3662 = vpack.c.bf16 %v3585, %v3578
      %v3663 = vpack.c.bf16 %v3586, %v3579
      %v3664 = vpack.c.bf16 %v3587, %v3580
      %v3665 = vpack.c.bf16 %v3588, %v3581
      %v3666 = vpack.c.bf16 %v3589, %v3582
      %v3667 = vpack.c.bf16 %v3590, %v3583
      %v3668 = vpack.c.bf16 %v3591, %v3584
      %v3669 = vpack.c.bf16 %v3599, %v3592
      %v3670 = vpack.c.bf16 %v3600, %v3593
      %v3671 = vpack.c.bf16 %v3601, %v3594
      %v3672 = vpack.c.bf16 %v3602, %v3595
      %v3673 = vpack.c.bf16 %v3603, %v3596
      %v3674 = vpack.c.bf16 %v3604, %v3597
      %v3675 = vpack.c.bf16 %v3605, %v3598
      %v3676 = vpack.c.bf16 %v3613, %v3606
      %v3677 = vpack.c.bf16 %v3614, %v3607
      %v3678 = vpack.c.bf16 %v3615, %v3608
      %v3679 = vpack.c.bf16 %v3616, %v3609
      %v3680 = vpack.c.bf16 %v3617, %v3610
      %v3681 = vpack.c.bf16 %v3618, %v3611
      %v3682 = vpack.c.bf16 %v3619, %v3612
      %v3683 = vpack.c.bf16 %v3627, %v3620
      %v3684 = vpack.c.bf16 %v3628, %v3621
      %v3685 = vpack.c.bf16 %v3629, %v3622
      %v3686 = vpack.c.bf16 %v3630, %v3623
      %v3687 = vpack.c.bf16 %v3631, %v3624
      %v3688 = vpack.c.bf16 %v3632, %v3625
      %v3689 = vpack.c.bf16 %v3633, %v3626
      %v3746 = vunpack.c.l.b16 %v3634
      %v3747 = vunpack.c.l.b16 %v3635
      %v3748 = vunpack.c.l.b16 %v3636
      %v3749 = vunpack.c.l.b16 %v3637
      %v3750 = vunpack.c.l.b16 %v3638
      %v3751 = vunpack.c.l.b16 %v3639
      %v3752 = vunpack.c.l.b16 %v3640
      %v3753 = vunpack.c.h.b16 %v3634
      %v3754 = vunpack.c.h.b16 %v3635
      %v3755 = vunpack.c.h.b16 %v3636
      %v3756 = vunpack.c.h.b16 %v3637
      %v3757 = vunpack.c.h.b16 %v3638
      %v3758 = vunpack.c.h.b16 %v3639
      %v3759 = vunpack.c.h.b16 %v3640
      %v3760 = vunpack.c.l.b16 %v3641
      %v3761 = vunpack.c.l.b16 %v3642
      %v3762 = vunpack.c.l.b16 %v3643
      %v3763 = vunpack.c.l.b16 %v3644
      %v3764 = vunpack.c.l.b16 %v3645
      %v3765 = vunpack.c.l.b16 %v3646
      %v3766 = vunpack.c.l.b16 %v3647
      %v3767 = vunpack.c.h.b16 %v3641
      %v3768 = vunpack.c.h.b16 %v3642
      %v3769 = vunpack.c.h.b16 %v3643
      %v3770 = vunpack.c.h.b16 %v3644
      %v3771 = vunpack.c.h.b16 %v3645
      %v3772 = vunpack.c.h.b16 %v3646
      %v3773 = vunpack.c.h.b16 %v3647
      %v3774 = vunpack.c.l.b16 %v3648
      %v3775 = vunpack.c.l.b16 %v3649
      %v3776 = vunpack.c.l.b16 %v3650
      %v3777 = vunpack.c.l.b16 %v3651
      %v3778 = vunpack.c.l.b16 %v3652
      %v3779 = vunpack.c.l.b16 %v3653
      %v3780 = vunpack.c.l.b16 %v3654
      %v3781 = vunpack.c.h.b16 %v3648
      %v3782 = vunpack.c.h.b16 %v3649
      %v3783 = vunpack.c.h.b16 %v3650
      %v3784 = vunpack.c.h.b16 %v3651
      %v3785 = vunpack.c.h.b16 %v3652
      %v3786 = vunpack.c.h.b16 %v3653
      %v3787 = vunpack.c.h.b16 %v3654
      %v3788 = vunpack.c.l.b16 %v3655
      %v3789 = vunpack.c.l.b16 %v3656
      %v3790 = vunpack.c.l.b16 %v3657
      %v3791 = vunpack.c.l.b16 %v3658
      %v3792 = vunpack.c.l.b16 %v3659
      %v3793 = vunpack.c.l.b16 %v3660
      %v3794 = vunpack.c.l.b16 %v3661
      %v3795 = vunpack.c.h.b16 %v3655
      %v3796 = vunpack.c.h.b16 %v3656
      %v3797 = vunpack.c.h.b16 %v3657
      %v3798 = vunpack.c.h.b16 %v3658
      %v3799 = vunpack.c.h.b16 %v3659
      %v3800 = vunpack.c.h.b16 %v3660
      %v3801 = vunpack.c.h.b16 %v3661
      %v3802 = vunpack.c.l.b16 %v3662
      %v3803 = vunpack.c.l.b16 %v3663
      %v3804 = vunpack.c.l.b16 %v3664
      %v3805 = vunpack.c.l.b16 %v3665
      %v3806 = vunpack.c.l.b16 %v3666
      %v3807 = vunpack.c.l.b16 %v3667
      %v3808 = vunpack.c.l.b16 %v3668
      %v3809 = vunpack.c.h.b16 %v3662
      %v3810 = vunpack.c.h.b16 %v3663
      %v3811 = vunpack.c.h.b16 %v3664
      %v3812 = vunpack.c.h.b16 %v3665
      %v3813 = vunpack.c.h.b16 %v3666
      %v3814 = vunpack.c.h.b16 %v3667
      %v3815 = vunpack.c.h.b16 %v3668
      %v3816 = vunpack.c.l.b16 %v3669
      %v3817 = vunpack.c.l.b16 %v3670
      %v3818 = vunpack.c.l.b16 %v3671
      %v3819 = vunpack.c.l.b16 %v3672
      %v3820 = vunpack.c.l.b16 %v3673
      %v3821 = vunpack.c.l.b16 %v3674
      %v3822 = vunpack.c.l.b16 %v3675
      %v3823 = vunpack.c.h.b16 %v3669
      %v3824 = vunpack.c.h.b16 %v3670
      %v3825 = vunpack.c.h.b16 %v3671
      %v3826 = vunpack.c.h.b16 %v3672
      %v3827 = vunpack.c.h.b16 %v3673
      %v3828 = vunpack.c.h.b16 %v3674
      %v3829 = vunpack.c.h.b16 %v3675
      %v3830 = vunpack.c.l.b16 %v3676
      %v3831 = vunpack.c.l.b16 %v3677
      %v3832 = vunpack.c.l.b16 %v3678
      %v3833 = vunpack.c.l.b16 %v3679
      %v3834 = vunpack.c.l.b16 %v3680
      %v3835 = vunpack.c.l.b16 %v3681
      %v3836 = vunpack.c.l.b16 %v3682
      %v3837 = vunpack.c.h.b16 %v3676
      %v3838 = vunpack.c.h.b16 %v3677
      %v3839 = vunpack.c.h.b16 %v3678
      %v3840 = vunpack.c.h.b16 %v3679
      %v3841 = vunpack.c.h.b16 %v3680
      %v3842 = vunpack.c.h.b16 %v3681
      %v3843 = vunpack.c.h.b16 %v3682
      %v3844 = vunpack.c.l.b16 %v3683
      %v3845 = vunpack.c.l.b16 %v3684
      %v3846 = vunpack.c.l.b16 %v3685
      %v3847 = vunpack.c.l.b16 %v3686
      %v3848 = vunpack.c.l.b16 %v3687
      %v3849 = vunpack.c.l.b16 %v3688
      %v3850 = vunpack.c.l.b16 %v3689
      %v3851 = vunpack.c.h.b16 %v3683
      %v3852 = vunpack.c.h.b16 %v3684
      %v3853 = vunpack.c.h.b16 %v3685
      %v3854 = vunpack.c.h.b16 %v3686
      %v3855 = vunpack.c.h.b16 %v3687
      %v3856 = vunpack.c.h.b16 %v3688
      %v3857 = vunpack.c.h.b16 %v3689
      %v3858 = vpack.c.b16 %v3747, %v3746
      %v3859 = vpack.c.b16 %v3749, %v3748
      %v3860 = vpack.c.b16 %v3751, %v3750
      %v3861 = vpack.c.b16 %v3752, %v3752
      %v3862 = vpack.c.b16 %v3754, %v3753
      %v3863 = vpack.c.b16 %v3756, %v3755
      %v3864 = vpack.c.b16 %v3758, %v3757
      %v3865 = vpack.c.b16 %v3759, %v3759
      %v3866 = vpack.c.b16 %v3761, %v3760
      %v3867 = vpack.c.b16 %v3763, %v3762
      %v3868 = vpack.c.b16 %v3765, %v3764
      %v3869 = vpack.c.b16 %v3766, %v3766
      %v3870 = vpack.c.b16 %v3768, %v3767
      %v3871 = vpack.c.b16 %v3770, %v3769
      %v3872 = vpack.c.b16 %v3772, %v3771
      %v3873 = vpack.c.b16 %v3773, %v3773
      %v3874 = vpack.c.b16 %v3775, %v3774
      %v3875 = vpack.c.b16 %v3777, %v3776
      %v3876 = vpack.c.b16 %v3779, %v3778
      %v3877 = vpack.c.b16 %v3780, %v3780
      %v3878 = vpack.c.b16 %v3782, %v3781
      %v3879 = vpack.c.b16 %v3784, %v3783
      %v3880 = vpack.c.b16 %v3786, %v3785
      %v3881 = vpack.c.b16 %v3787, %v3787
      %v3882 = vpack.c.b16 %v3789, %v3788
      %v3883 = vpack.c.b16 %v3791, %v3790
      %v3884 = vpack.c.b16 %v3793, %v3792
      %v3885 = vpack.c.b16 %v3794, %v3794
      %v3886 = vpack.c.b16 %v3796, %v3795
      %v3887 = vpack.c.b16 %v3798, %v3797
      %v3888 = vpack.c.b16 %v3800, %v3799
      %v3889 = vpack.c.b16 %v3801, %v3801
      %v3890 = vpack.c.b16 %v3803, %v3802
      %v3891 = vpack.c.b16 %v3805, %v3804
      %v3892 = vpack.c.b16 %v3807, %v3806
      %v3893 = vpack.c.b16 %v3808, %v3808
      %v3894 = vpack.c.b16 %v3810, %v3809
      %v3895 = vpack.c.b16 %v3812, %v3811
      %v3896 = vpack.c.b16 %v3814, %v3813
      %v3897 = vpack.c.b16 %v3815, %v3815
      %v3898 = vpack.c.b16 %v3817, %v3816
      %v3899 = vpack.c.b16 %v3819, %v3818
      %v3900 = vpack.c.b16 %v3821, %v3820
      %v3901 = vpack.c.b16 %v3822, %v3822
      %v3902 = vpack.c.b16 %v3824, %v3823
      %v3903 = vpack.c.b16 %v3826, %v3825
      %v3904 = vpack.c.b16 %v3828, %v3827
      %v3905 = vpack.c.b16 %v3829, %v3829
      %v3906 = vpack.c.b16 %v3831, %v3830
      %v3907 = vpack.c.b16 %v3833, %v3832
      %v3908 = vpack.c.b16 %v3835, %v3834
      %v3909 = vpack.c.b16 %v3836, %v3836
      %v3910 = vpack.c.b16 %v3838, %v3837
      %v3911 = vpack.c.b16 %v3840, %v3839
      %v3912 = vpack.c.b16 %v3842, %v3841
      %v3913 = vpack.c.b16 %v3843, %v3843
      %v3914 = vpack.c.b16 %v3845, %v3844
      %v3915 = vpack.c.b16 %v3847, %v3846
      %v3916 = vpack.c.b16 %v3849, %v3848
      %v3917 = vpack.c.b16 %v3850, %v3850
      %v3918 = vpack.c.b16 %v3852, %v3851
      %v3919 = vpack.c.b16 %v3854, %v3853
      %v3920 = vpack.c.b16 %v3856, %v3855
      %v3921 = vpack.c.b16 %v3857, %v3857
      %3986 = vst [vmem:[%s488] sm:$0xff] %v3858
      %3987 = vst [vmem:[%s488 + $0x8] sm:$0xff] %v3859
      %3988 = vst [vmem:[%s488 + $0x10] sm:$0xff] %v3860
      %vm3989 = vcmask 125952
      %3990 = vst.msk [vmem:[%s488 + $0x18] sm:$0xf] %vm3989, %v3861
      %3991 = vst [vmem:[%s488 + $0x1c] sm:$0xff] %v3862
      %3992 = vst [vmem:[%s488 + $0x24] sm:$0xff] %v3863
      %3993 = vst [vmem:[%s488 + $0x2c] sm:$0xff] %v3864
      %3994 = vst.msk [vmem:[%s488 + $0x34] sm:$0xf] %vm3989, %v3865
      %3995 = vst [vmem:[%s488 + $0x38] sm:$0xff] %v3866
      %3996 = vst [vmem:[%s488 + $0x40] sm:$0xff] %v3867
      %3997 = vst [vmem:[%s488 + $0x48] sm:$0xff] %v3868
      %3998 = vst.msk [vmem:[%s488 + $0x50] sm:$0xf] %vm3989, %v3869
      %3999 = vst [vmem:[%s488 + $0x54] sm:$0xff] %v3870
      %4000 = vst [vmem:[%s488 + $0x5c] sm:$0xff] %v3871
      %4001 = vst [vmem:[%s488 + $0x64] sm:$0xff] %v3872
      %4002 = vst.msk [vmem:[%s488 + $0x6c] sm:$0xf] %vm3989, %v3873
      %4003 = vst [vmem:[%s488 + $0x70] sm:$0xff] %v3874
      %4004 = vst [vmem:[%s488 + $0x78] sm:$0xff] %v3875
      %4005 = vst [vmem:[%s488 + $0x80] sm:$0xff] %v3876
      %4006 = vst.msk [vmem:[%s488 + $0x88] sm:$0xf] %vm3989, %v3877
      %4007 = vst [vmem:[%s488 + $0x8c] sm:$0xff] %v3878
      %4008 = vst [vmem:[%s488 + $0x94] sm:$0xff] %v3879
      %4009 = vst [vmem:[%s488 + $0x9c] sm:$0xff] %v3880
      %4010 = vst.msk [vmem:[%s488 + $0xa4] sm:$0xf] %vm3989, %v3881
      %4011 = vst [vmem:[%s488 + $0xa8] sm:$0xff] %v3882
      %4012 = vst [vmem:[%s488 + $0xb0] sm:$0xff] %v3883
      %4013 = vst [vmem:[%s488 + $0xb8] sm:$0xff] %v3884
      %4014 = vst.msk [vmem:[%s488 + $0xc0] sm:$0xf] %vm3989, %v3885
      %4015 = vst [vmem:[%s488 + $0xc4] sm:$0xff] %v3886
      %4016 = vst [vmem:[%s488 + $0xcc] sm:$0xff] %v3887
      %4017 = vst [vmem:[%s488 + $0xd4] sm:$0xff] %v3888
      %4018 = vst.msk [vmem:[%s488 + $0xdc] sm:$0xf] %vm3989, %v3889
      %4019 = vst [vmem:[%s488 + $0xe0] sm:$0xff] %v3890
      %4020 = vst [vmem:[%s488 + $0xe8] sm:$0xff] %v3891
      %4021 = vst [vmem:[%s488 + $0xf0] sm:$0xff] %v3892
      %4022 = vst.msk [vmem:[%s488 + $0xf8] sm:$0xf] %vm3989, %v3893
      %4023 = vst [vmem:[%s488 + $0xfc] sm:$0xff] %v3894
      %4024 = vst [vmem:[%s488 + $0x104] sm:$0xff] %v3895
      %4025 = vst [vmem:[%s488 + $0x10c] sm:$0xff] %v3896
      %4026 = vst.msk [vmem:[%s488 + $0x114] sm:$0xf] %vm3989, %v3897
      %4027 = vst [vmem:[%s488 + $0x118] sm:$0xff] %v3898
      %4028 = vst [vmem:[%s488 + $0x120] sm:$0xff] %v3899
      %4029 = vst [vmem:[%s488 + $0x128] sm:$0xff] %v3900
      %4030 = vst.msk [vmem:[%s488 + $0x130] sm:$0xf] %vm3989, %v3901
      %4031 = vst [vmem:[%s488 + $0x134] sm:$0xff] %v3902
      %4032 = vst [vmem:[%s488 + $0x13c] sm:$0xff] %v3903
      %4033 = vst [vmem:[%s488 + $0x144] sm:$0xff] %v3904
      %4034 = vst.msk [vmem:[%s488 + $0x14c] sm:$0xf] %vm3989, %v3905
      %4035 = vst [vmem:[%s488 + $0x150] sm:$0xff] %v3906
      %4036 = vst [vmem:[%s488 + $0x158] sm:$0xff] %v3907
      %4037 = vst [vmem:[%s488 + $0x160] sm:$0xff] %v3908
      %4038 = vst.msk [vmem:[%s488 + $0x168] sm:$0xf] %vm3989, %v3909
      %4039 = vst [vmem:[%s488 + $0x16c] sm:$0xff] %v3910
      %4040 = vst [vmem:[%s488 + $0x174] sm:$0xff] %v3911
      %4041 = vst [vmem:[%s488 + $0x17c] sm:$0xff] %v3912
      %4042 = vst.msk [vmem:[%s488 + $0x184] sm:$0xf] %vm3989, %v3913
      %4043 = vst [vmem:[%s488 + $0x188] sm:$0xff] %v3914
      %4044 = vst [vmem:[%s488 + $0x190] sm:$0xff] %v3915
      %4045 = vst [vmem:[%s488 + $0x198] sm:$0xff] %v3916
      %4046 = vst.msk [vmem:[%s488 + $0x1a0] sm:$0xf] %vm3989, %v3917
      %4047 = vst [vmem:[%s488 + $0x1a4] sm:$0xff] %v3918
      %4048 = vst [vmem:[%s488 + $0x1ac] sm:$0xff] %v3919
      %4049 = vst [vmem:[%s488 + $0x1b4] sm:$0xff] %v3920
      %4050 = vst.msk [vmem:[%s488 + $0x1bc] sm:$0xf] %vm3989, %v3921
      %s4051 = smul.u32 16, %s26
      %p4052 = scmp.lt.s32.totalorder %s4051, 31
      %s4053 = scalar_select %p4052, %s4051, 31
      %s4054 = smul.addr %s4053, 8
      %s4055 = scalar_lea.vmem %s13, %s4054
      %s4056 = smul.u32 16, %s26
      %p4057 = scmp.lt.s32.totalorder %s4056, 31
      %s4058 = scalar_select %p4057, %s4056, 31
      %s4059 = smul.addr %s4058, 7
      %s4060 = smul.addr %s4059, 4
      %s4061 = scalar_lea.vmem %s14, %s4060
      // Predicated region
      $region73: #{autoencoder_forward.1} parent=71 // pred_check
        %p4062 = pneg %p322
      $region74: #{autoencoder_forward.1} parent=71 // pred_check_branch
        %4064 = sbr.rel (%p4062) target = $region76
      $region75: #{autoencoder_forward.1} parent=71 // pred_region
        %s4065 = smul.u32 16, %s26
      $region76: #{autoencoder_forward.1} parent=71 // pred_fallthru
        _
      // Predicated region
      $region77: #{autoencoder_forward.1} parent=71 // pred_check
        %p4066 = pneg %p348
      $region78: #{autoencoder_forward.1} parent=71 // pred_check_branch
        %4068 = sbr.rel (%p4066) target = $region80
      $region79: #{autoencoder_forward.1} parent=71 // pred_region
        %s4069 = smul.u32 16, %s26
      $region80: #{autoencoder_forward.1} parent=71 // pred_fallthru
        _
    $region72: #{autoencoder_forward.1} parent=5 // pred_fallthru
      _
    %p4070 = scmp.le.s32.totalorder 2, %s21
    // Predicated region
    $region81: #{autoencoder_forward.1} parent=5 // pred_check
      %p4071 = pneg %p4070
    $region82: #{autoencoder_forward.1} parent=5 // pred_check_branch
      %4073 = sbr.rel (%p4071) target = $region84
    $region83: #{autoencoder_forward.1} parent=5 // pred_region
      %s4074 = ssub.s32 %s21, 2
      // Predicated region
      $region85: #{autoencoder_forward.1} parent=83 // pred_check
        %p4075 = pneg %p328
      $region86: #{autoencoder_forward.1} parent=83 // pred_check_branch
        %4077 = sbr.rel (%p4075) target = $region88
      $region87: #{autoencoder_forward.1} parent=83 // pred_region
        %s4078 = smul.u32 16, %s27
        %p4079 = scmp.lt.s32.totalorder %s4078, 31
        %s4080 = scalar_select %p4079, %s4078, 31
        %s4081 = smul.addr %s4080, 8
        %s4082 = scalar_lea.vmem %s13, %s4081
      $region88: #{autoencoder_forward.1} parent=83 // pred_fallthru
        _
      // Predicated region
      $region89: #{autoencoder_forward.1} parent=83 // pred_check
        %p4083 = pneg %p354
      $region90: #{autoencoder_forward.1} parent=83 // pred_check_branch
        %4085 = sbr.rel (%p4083) target = $region92
      $region91: #{autoencoder_forward.1} parent=83 // pred_region
        %s4086 = smul.u32 16, %s27
        %p4087 = scmp.lt.s32.totalorder %s4086, 31
        %s4088 = scalar_select %p4087, %s4086, 31
        %s4089 = smul.addr %s4088, 7
        %s4090 = smul.addr %s4089, 4
        %s4091 = scalar_lea.vmem %s14, %s4090
      $region92: #{autoencoder_forward.1} parent=83 // pred_fallthru
        _
    $region84: #{autoencoder_forward.1} parent=5 // pred_fallthru
      _
  $region6: #{autoencoder_forward.1} parent=0 // loop_footer
    %s25 = sadd.s32 1, %s21
  $region7: #{autoencoder_forward.1} parent=0 // loop_footer_branch
    %20 = sbr.rel target = $region3
  $region8: #{autoencoder_forward.1} parent=0 // loop_exit
    _

</llo_original>
